<compile_context>
chip_gen: v7x
topology: tpu7x:2x2x1
jax: 0.10.0
libtpu: 0.0.40
codegen_flags: <defaults>
</compile_context>

<pallas_src>
import functools

import jax
import jax.numpy as jnp
import numpy as np
from jax.experimental import pallas as pl
from jax.experimental.pallas import tpu as pltpu


def _round_up(x, m):
    return (x + m - 1) // m * m


def _classifier_kernel(xc_ref, w1_ref, b1_ref, w2_ref, b2_ref, wfc_ref, bfc_ref,
                       out_ref, h1pad_ref, *, B_blk, H, W, C1, C2, PAD_L):
    HW = H * W
    M = B_blk * HW
    Wp = 2 * PAD_L + W                      # padded scratch width

    # ---- conv1: ONE (M, 9*Cin) @ (9*Cin, C1) matmul, bf16 operands, f32 acc ----
    h1 = jnp.dot(xc_ref[...], w1_ref[...], preferred_element_type=jnp.float32)
    h1 = jnp.maximum(h1 + b1_ref[...], 0.0)                 # (M, C1) f32

    # ---- spatially zero-padded conv1 activation in VMEM (bf16) ----
    # Interior lives at rows [1, H] and columns [PAD_L, PAD_L+W).  PAD_L = 16 is
    # one bf16 sublane tile, so the interior store and the border-column clears
    # below are aligned tile stores (no masked/shifted writes).  Only the border
    # slabs are cleared each step; the interior is fully overwritten.
    zrow = jnp.zeros((B_blk, 1, Wp, C1), jnp.bfloat16)
    h1pad_ref[:, 0:1, :, :] = zrow                           # top zero row
    h1pad_ref[:, H + 1:H + 2, :, :] = zrow                   # bottom zero row
    zcol = jnp.zeros((B_blk, H, PAD_L, C1), jnp.bfloat16)
    h1pad_ref[:, 1:1 + H, 0:PAD_L, :] = zcol                 # left zero tile
    h1pad_ref[:, 1:1 + H, PAD_L + W:Wp, :] = zcol            # right zero tile
    h1pad_ref[:, 1:1 + H, PAD_L:PAD_L + W, :] = (
        h1.astype(jnp.bfloat16).reshape(B_blk, H, W, C1))

    # ---- conv2: 9 tap-accumulated matmuls; shifted windows are the MXU LHS ----
    # (no im2col patch buffer; the +/-1 spatial shifts are on the read side)
    h2 = jnp.zeros((M, C2), jnp.float32)
    for t in range(9):
        ky, kx = divmod(t, 3)
        w0 = PAD_L - 1 + kx
        win = h1pad_ref[:, ky:ky + H, w0:w0 + W, :]          # (B_blk,H,W,C1) bf16
        h2 = h2 + jnp.dot(win.reshape(M, C1), w2_ref[t],
                          preferred_element_type=jnp.float32)
    h2 = jnp.maximum(h2 + b2_ref[...], 0.0)                  # (M, C2) f32

    # ---- AdaptiveAvgPool2d((1,1)) == mean over H*W, then the FC layer ----
    pooled = jnp.sum(h2.reshape(B_blk, HW, C2), axis=1) * (1.0 / HW)   # (B_blk,C2)
    out_ref[0, :, :] = jnp.dot(pooled, wfc_ref[...],
                               preferred_element_type=jnp.float32) + bfc_ref[...]


def distortion_classifier(x_nhwc, params, *, batch_block=16, interpret=False):
    """x_nhwc: [B, H, W, Cin] float32.  Returns logits [B, num_distortions]."""
    w1, b1, w2, b2, wfc, bfc = params
    B, H, W, Cin = x_nhwc.shape
    C1 = w1.shape[-1]          # 64
    C2 = w2.shape[-1]          # 128
    NUM_D = wfc.shape[-1]      # 58

    K1 = 9 * Cin               # conv1 contraction dim (kept unpadded, bf16)
    NDp = _round_up(NUM_D, 128)
    HW = H * W
    PAD_L = 16                 # one bf16 sublane tile -> aligned interior store
    Wp = 2 * PAD_L + W

    # Batch blocking: >= 2 grid steps whenever B >= 2 so both v7x TensorCores
    # get work under dimension_semantics=("parallel",).
    B_blk = max(1, min(batch_block, -(-B // 2)))
    B_pad = _round_up(B, B_blk)
    G = B_pad // B_blk

    xb = x_nhwc.astype(jnp.bfloat16)
    if B_pad != B:
        xb = jnp.concatenate(
            [xb, jnp.zeros((B_pad - B, H, W, Cin), xb.dtype)], axis=0)

    # conv1 im2col in the wrapper (pure rearrangement), bf16, K = 36 lanes
    # (full-array last dim -> legal BlockSpec, small HBM stream).
    x_sp = jnp.pad(xb, ((0, 0), (1, 1), (1, 1), (0, 0)))
    cols = [x_sp[:, ky:ky + H, kx:kx + W, :]
            for ky in range(3) for kx in range(3)]
    x_col = jnp.concatenate(cols, axis=-1).reshape(B_pad * HW, K1)

    # Weights: conv1/conv2 in bf16 (f32 MXU accumulation), FC in f32.
    w1_p = w1.reshape(K1, C1).astype(jnp.bfloat16)           # (36, 64)
    b1_p = b1.reshape(1, C1).astype(jnp.float32)
    w2_p = w2.reshape(9, C1, C2).astype(jnp.bfloat16)        # (9, 64, 128)
    b2_p = b2.reshape(1, C2).astype(jnp.float32)
    wfc_p = jnp.zeros((C2, NDp), jnp.float32).at[:, :NUM_D].set(wfc)
    bfc_p = jnp.zeros((1, NDp), jnp.float32).at[0, :NUM_D].set(bfc)

    kernel = functools.partial(_classifier_kernel, B_blk=B_blk, H=H, W=W,
                               C1=C1, C2=C2, PAD_L=PAD_L)

    out = pl.pallas_call(
        kernel,
        out_shape=jax.ShapeDtypeStruct((G, B_blk, NDp), jnp.float32),
        grid_spec=pltpu.PrefetchScalarGridSpec(
            num_scalar_prefetch=0,
            grid=(G,),
            in_specs=[
                pl.BlockSpec((B_blk * HW, K1), lambda b: (b, 0)),   # x_col (bf16)
                pl.BlockSpec((K1, C1), lambda b: (0, 0)),           # w1
                pl.BlockSpec((1, C1), lambda b: (0, 0)),            # b1
                pl.BlockSpec((9, C1, C2), lambda b: (0, 0, 0)),     # w2 (per tap)
                pl.BlockSpec((1, C2), lambda b: (0, 0)),            # b2
                pl.BlockSpec((C2, NDp), lambda b: (0, 0)),          # wfc
                pl.BlockSpec((1, NDp), lambda b: (0, 0)),           # bfc
            ],
            out_specs=pl.BlockSpec((1, B_blk, NDp), lambda b: (b, 0, 0)),
            scratch_shapes=[
                pltpu.VMEM((B_blk, H + 2, Wp, C1), jnp.bfloat16),   # padded h1
            ],
        ),
        compiler_params=pltpu.CompilerParams(
            dimension_semantics=("parallel",),
            vmem_limit_bytes=32 * 1024 * 1024),
        interpret=interpret,
    )(x_col, w1_p, b1_p, w2_p, b2_p, wfc_p, bfc_p)

    return out.reshape(B_pad, NDp)[:B, :NUM_D]


def reference(x_nhwc, params):
    """Plain-JAX f32 reference (NHWC) matching the PyTorch forward semantics."""
    w1, b1, w2, b2, wfc, bfc = params
    dn = ("NHWC", "HWIO", "NHWC")
    h = jax.lax.conv_general_dilated(x_nhwc, w1, (1, 1), "SAME",
                                     dimension_numbers=dn)
    h = jax.nn.relu(h + b1)
    h = jax.lax.conv_general_dilated(h, w2, (1, 1), "SAME",
                                     dimension_numbers=dn)
    h = jax.nn.relu(h + b2)
    pooled = jnp.mean(h, axis=(1, 2))                 # AdaptiveAvgPool2d((1,1))
    return pooled @ wfc + bfc


if __name__ == "__main__":
    B, C_in, H, W = 2, 4, 16, 16
    NUM_D = 58

    key = jax.random.PRNGKey(0)
    kx_, k1, k2, k3, k4, k5, k6 = jax.random.split(key, 7)

    # Input built in PyTorch-style NCHW, then moved to the kernel's NHWC layout.
    x_nchw = jax.random.normal(kx_, (B, C_in, H, W), jnp.float32)
    x_nhwc = jnp.transpose(x_nchw, (0, 2, 3, 1))

    # Deterministic synthetic parameters (shapes from the module __init__).
    w1 = jax.random.normal(k1, (3, 3, C_in, 64), jnp.float32) / (3 * 3 * C_in) ** 0.5
    b1 = jax.random.normal(k2, (64,), jnp.float32) * 0.05
    w2 = jax.random.normal(k3, (3, 3, 64, 128), jnp.float32) / (3 * 3 * 64) ** 0.5
    b2 = jax.random.normal(k4, (128,), jnp.float32) * 0.05
    wfc = jax.random.normal(k5, (128, NUM_D), jnp.float32) / 128 ** 0.5
    bfc = jax.random.normal(k6, (NUM_D,), jnp.float32) * 0.05
    params = (w1, b1, w2, b2, wfc, bfc)

    out = distortion_classifier(x_nhwc, params)
    out = jax.block_until_ready(out)

    ref = reference(x_nhwc, params)
    np.testing.assert_allclose(np.asarray(out), np.asarray(ref),
                               atol=2e-2, rtol=2e-2)
    print("KERNEL_OK")
</pallas_src>

<mosaic_0001>
module attributes {stable_mosaic.version = 11 : i64} {
  func.func @_classifier_kernel(%arg0: i32, %arg1: memref<256x36xbf16, #tpu.memory_space<vmem>>, %arg2: memref<36x64xbf16, #tpu.memory_space<vmem>>, %arg3: memref<1x64xf32, #tpu.memory_space<vmem>>, %arg4: memref<9x64x128xbf16, #tpu.memory_space<vmem>>, %arg5: memref<1x128xf32, #tpu.memory_space<vmem>>, %arg6: memref<128x128xf32, #tpu.memory_space<vmem>>, %arg7: memref<1x128xf32, #tpu.memory_space<vmem>>, %arg8: memref<1x1x128xf32, #tpu.memory_space<vmem>>, %arg9: memref<1x18x48x64xbf16, #tpu.memory_space<vmem>>) attributes {dimension_semantics = [#tpu.dimension_semantics<parallel>], iteration_bounds = array<i64: 2>, scalar_prefetch = 0 : i64, scratch_operands = 1 : i64, tpu.core_type = #tpu.core_type<tc>, window_params = [{transform_indices = @transform_0, window_bounds = array<i64: 256, 36>}, {pipeline_mode = #tpu.pipeline_mode<synchronous>, transform_indices = @transform_1, window_bounds = array<i64: 36, 64>}, {pipeline_mode = #tpu.pipeline_mode<synchronous>, transform_indices = @transform_2, window_bounds = array<i64: 1, 64>}, {pipeline_mode = #tpu.pipeline_mode<synchronous>, transform_indices = @transform_3, window_bounds = array<i64: 9, 64, 128>}, {pipeline_mode = #tpu.pipeline_mode<synchronous>, transform_indices = @transform_4, window_bounds = array<i64: 1, 128>}, {pipeline_mode = #tpu.pipeline_mode<synchronous>, transform_indices = @transform_5, window_bounds = array<i64: 128, 128>}, {pipeline_mode = #tpu.pipeline_mode<synchronous>, transform_indices = @transform_6, window_bounds = array<i64: 1, 128>}, {transform_indices = @transform_7, window_bounds = array<i64: 1, 1, 128>}]} {
    %c0 = arith.constant 0 : index
    %c0_0 = arith.constant 0 : index
    %0 = vector.load %arg1[%c0, %c0_0] : memref<256x36xbf16, #tpu.memory_space<vmem>>, vector<256x36xbf16>
    %c0_1 = arith.constant 0 : index
    %c0_2 = arith.constant 0 : index
    %1 = vector.load %arg2[%c0_1, %c0_2] : memref<36x64xbf16, #tpu.memory_space<vmem>>, vector<36x64xbf16>
    %cst = arith.constant dense<0.000000e+00> : vector<256x64xf32>
    %2 = tpu.matmul %0, %1, %cst {dimension_numbers = #tpu.dot_dimension_numbers<[1], [0], [0], [1], [0, 0, 1, 1], [], []>} : vector<256x36xbf16>, vector<36x64xbf16>, vector<256x64xf32> -> vector<256x64xf32>
    %c0_3 = arith.constant 0 : index
    %c0_4 = arith.constant 0 : index
    %3 = vector.load %arg3[%c0_3, %c0_4] : memref<1x64xf32, #tpu.memory_space<vmem>>, vector<1x64xf32>
    %4 = vector.broadcast %3 : vector<1x64xf32> to vector<256x64xf32>
    %5 = arith.addf %2, %4 : vector<256x64xf32>
    %cst_5 = arith.constant 0.000000e+00 : f32
    %6 = vector.broadcast %cst_5 : f32 to vector<256x64xf32>
    %7 = arith.maximumf %5, %6 : vector<256x64xf32>
    %cst_6 = arith.constant 0.000000e+00 : bf16
    %8 = vector.broadcast %cst_6 : bf16 to vector<1x1x48x64xbf16>
    %c0_7 = arith.constant 0 : index
    %c0_8 = arith.constant 0 : index
    %c0_9 = arith.constant 0 : index
    %c0_10 = arith.constant 0 : index
    %9 = vector.load %arg9[%c0_7, %c0_8, %c0_9, %c0_10] : memref<1x18x48x64xbf16, #tpu.memory_space<vmem>>, vector<1x1x48x64xbf16>
    tpu.vector_store %arg9[%c0_7, %c0_8, %c0_9, %c0_10], %8 {strides = array<i32>} : memref<1x18x48x64xbf16, #tpu.memory_space<vmem>>, vector<1x1x48x64xbf16>,
    %c0_11 = arith.constant 0 : index
    %c17 = arith.constant 17 : index
    %c0_12 = arith.constant 0 : index
    %c0_13 = arith.constant 0 : index
    %10 = vector.load %arg9[%c0_11, %c17, %c0_12, %c0_13] : memref<1x18x48x64xbf16, #tpu.memory_space<vmem>>, vector<1x1x48x64xbf16>
    tpu.vector_store %arg9[%c0_11, %c17, %c0_12, %c0_13], %8 {strides = array<i32>} : memref<1x18x48x64xbf16, #tpu.memory_space<vmem>>, vector<1x1x48x64xbf16>,
    %cst_14 = arith.constant 0.000000e+00 : bf16
    %11 = vector.broadcast %cst_14 : bf16 to vector<1x16x16x64xbf16>
    %c0_15 = arith.constant 0 : index
    %c1 = arith.constant 1 : index
    %c0_16 = arith.constant 0 : index
    %c0_17 = arith.constant 0 : index
    %12 = vector.load %arg9[%c0_15, %c1, %c0_16, %c0_17] : memref<1x18x48x64xbf16, #tpu.memory_space<vmem>>, vector<1x16x16x64xbf16>
    tpu.vector_store %arg9[%c0_15, %c1, %c0_16, %c0_17], %11 {strides = array<i32>} : memref<1x18x48x64xbf16, #tpu.memory_space<vmem>>, vector<1x16x16x64xbf16>,
    %c0_18 = arith.constant 0 : index
    %c1_19 = arith.constant 1 : index
    %c32 = arith.constant 32 : index
    %c0_20 = arith.constant 0 : index
    %13 = vector.load %arg9[%c0_18, %c1_19, %c32, %c0_20] : memref<1x18x48x64xbf16, #tpu.memory_space<vmem>>, vector<1x16x16x64xbf16>
    tpu.vector_store %arg9[%c0_18, %c1_19, %c32, %c0_20], %11 {strides = array<i32>} : memref<1x18x48x64xbf16, #tpu.memory_space<vmem>>, vector<1x16x16x64xbf16>,
    %14 = arith.truncf %7 : vector<256x64xf32> to vector<256x64xbf16>
    %15 = vector.shape_cast %14 : vector<256x64xbf16> to vector<1x16x16x64xbf16>
    %c0_21 = arith.constant 0 : index
    %c1_22 = arith.constant 1 : index
    %c16 = arith.constant 16 : index
    %c0_23 = arith.constant 0 : index
    %16 = vector.load %arg9[%c0_21, %c1_22, %c16, %c0_23] : memref<1x18x48x64xbf16, #tpu.memory_space<vmem>>, vector<1x16x16x64xbf16>
    tpu.vector_store %arg9[%c0_21, %c1_22, %c16, %c0_23], %15 {strides = array<i32>} : memref<1x18x48x64xbf16, #tpu.memory_space<vmem>>, vector<1x16x16x64xbf16>,
    %cst_24 = arith.constant 0.000000e+00 : f32
    %17 = vector.broadcast %cst_24 : f32 to vector<256x128xf32>
    %c0_25 = arith.constant 0 : index
    %c0_26 = arith.constant 0 : index
    %c15 = arith.constant 15 : index
    %c0_27 = arith.constant 0 : index
    %18 = vector.load %arg9[%c0_25, %c0_26, %c15, %c0_27] : memref<1x18x48x64xbf16, #tpu.memory_space<vmem>>, vector<1x16x16x64xbf16>
    %19 = vector.shape_cast %18 : vector<1x16x16x64xbf16> to vector<256x64xbf16>
    %c0_28 = arith.constant 0 : index
    %c0_29 = arith.constant 0 : index
    %c0_30 = arith.constant 0 : index
    %20 = vector.load %arg4[%c0_28, %c0_29, %c0_30] : memref<9x64x128xbf16, #tpu.memory_space<vmem>>, vector<1x64x128xbf16>
    %21 = vector.shape_cast %20 : vector<1x64x128xbf16> to vector<64x128xbf16>
    %cst_31 = arith.constant dense<0.000000e+00> : vector<256x128xf32>
    %22 = tpu.matmul %19, %21, %cst_31 {dimension_numbers = #tpu.dot_dimension_numbers<[1], [0], [0], [1], [0, 0, 1, 1], [], []>} : vector<256x64xbf16>, vector<64x128xbf16>, vector<256x128xf32> -> vector<256x128xf32>
    %23 = arith.addf %17, %22 : vector<256x128xf32>
    %c0_32 = arith.constant 0 : index
    %c0_33 = arith.constant 0 : index
    %c16_34 = arith.constant 16 : index
    %c0_35 = arith.constant 0 : index
    %24 = vector.load %arg9[%c0_32, %c0_33, %c16_34, %c0_35] : memref<1x18x48x64xbf16, #tpu.memory_space<vmem>>, vector<1x16x16x64xbf16>
    %25 = vector.shape_cast %24 : vector<1x16x16x64xbf16> to vector<256x64xbf16>
    %c1_36 = arith.constant 1 : index
    %c0_37 = arith.constant 0 : index
    %c0_38 = arith.constant 0 : index
    %26 = vector.load %arg4[%c1_36, %c0_37, %c0_38] : memref<9x64x128xbf16, #tpu.memory_space<vmem>>, vector<1x64x128xbf16>
    %27 = vector.shape_cast %26 : vector<1x64x128xbf16> to vector<64x128xbf16>
    %cst_39 = arith.constant dense<0.000000e+00> : vector<256x128xf32>
    %28 = tpu.matmul %25, %27, %cst_39 {dimension_numbers = #tpu.dot_dimension_numbers<[1], [0], [0], [1], [0, 0, 1, 1], [], []>} : vector<256x64xbf16>, vector<64x128xbf16>, vector<256x128xf32> -> vector<256x128xf32>
    %29 = arith.addf %23, %28 : vector<256x128xf32>
    %c0_40 = arith.constant 0 : index
    %c0_41 = arith.constant 0 : index
    %c17_42 = arith.constant 17 : index
    %c0_43 = arith.constant 0 : index
    %30 = vector.load %arg9[%c0_40, %c0_41, %c17_42, %c0_43] : memref<1x18x48x64xbf16, #tpu.memory_space<vmem>>, vector<1x16x16x64xbf16>
    %31 = vector.shape_cast %30 : vector<1x16x16x64xbf16> to vector<256x64xbf16>
    %c2 = arith.constant 2 : index
    %c0_44 = arith.constant 0 : index
    %c0_45 = arith.constant 0 : index
    %32 = vector.load %arg4[%c2, %c0_44, %c0_45] : memref<9x64x128xbf16, #tpu.memory_space<vmem>>, vector<1x64x128xbf16>
    %33 = vector.shape_cast %32 : vector<1x64x128xbf16> to vector<64x128xbf16>
    %cst_46 = arith.constant dense<0.000000e+00> : vector<256x128xf32>
    %34 = tpu.matmul %31, %33, %cst_46 {dimension_numbers = #tpu.dot_dimension_numbers<[1], [0], [0], [1], [0, 0, 1, 1], [], []>} : vector<256x64xbf16>, vector<64x128xbf16>, vector<256x128xf32> -> vector<256x128xf32>
    %35 = arith.addf %29, %34 : vector<256x128xf32>
    %c0_47 = arith.constant 0 : index
    %c1_48 = arith.constant 1 : index
    %c15_49 = arith.constant 15 : index
    %c0_50 = arith.constant 0 : index
    %36 = vector.load %arg9[%c0_47, %c1_48, %c15_49, %c0_50] : memref<1x18x48x64xbf16, #tpu.memory_space<vmem>>, vector<1x16x16x64xbf16>
    %37 = vector.shape_cast %36 : vector<1x16x16x64xbf16> to vector<256x64xbf16>
    %c3 = arith.constant 3 : index
    %c0_51 = arith.constant 0 : index
    %c0_52 = arith.constant 0 : index
    %38 = vector.load %arg4[%c3, %c0_51, %c0_52] : memref<9x64x128xbf16, #tpu.memory_space<vmem>>, vector<1x64x128xbf16>
    %39 = vector.shape_cast %38 : vector<1x64x128xbf16> to vector<64x128xbf16>
    %cst_53 = arith.constant dense<0.000000e+00> : vector<256x128xf32>
    %40 = tpu.matmul %37, %39, %cst_53 {dimension_numbers = #tpu.dot_dimension_numbers<[1], [0], [0], [1], [0, 0, 1, 1], [], []>} : vector<256x64xbf16>, vector<64x128xbf16>, vector<256x128xf32> -> vector<256x128xf32>
    %41 = arith.addf %35, %40 : vector<256x128xf32>
    %c0_54 = arith.constant 0 : index
    %c1_55 = arith.constant 1 : index
    %c16_56 = arith.constant 16 : index
    %c0_57 = arith.constant 0 : index
    %42 = vector.load %arg9[%c0_54, %c1_55, %c16_56, %c0_57] : memref<1x18x48x64xbf16, #tpu.memory_space<vmem>>, vector<1x16x16x64xbf16>
    %43 = vector.shape_cast %42 : vector<1x16x16x64xbf16> to vector<256x64xbf16>
    %c4 = arith.constant 4 : index
    %c0_58 = arith.constant 0 : index
    %c0_59 = arith.constant 0 : index
    %44 = vector.load %arg4[%c4, %c0_58, %c0_59] : memref<9x64x128xbf16, #tpu.memory_space<vmem>>, vector<1x64x128xbf16>
    %45 = vector.shape_cast %44 : vector<1x64x128xbf16> to vector<64x128xbf16>
    %cst_60 = arith.constant dense<0.000000e+00> : vector<256x128xf32>
    %46 = tpu.matmul %43, %45, %cst_60 {dimension_numbers = #tpu.dot_dimension_numbers<[1], [0], [0], [1], [0, 0, 1, 1], [], []>} : vector<256x64xbf16>, vector<64x128xbf16>, vector<256x128xf32> -> vector<256x128xf32>
    %47 = arith.addf %41, %46 : vector<256x128xf32>
    %c0_61 = arith.constant 0 : index
    %c1_62 = arith.constant 1 : index
    %c17_63 = arith.constant 17 : index
    %c0_64 = arith.constant 0 : index
    %48 = vector.load %arg9[%c0_61, %c1_62, %c17_63, %c0_64] : memref<1x18x48x64xbf16, #tpu.memory_space<vmem>>, vector<1x16x16x64xbf16>
    %49 = vector.shape_cast %48 : vector<1x16x16x64xbf16> to vector<256x64xbf16>
    %c5 = arith.constant 5 : index
    %c0_65 = arith.constant 0 : index
    %c0_66 = arith.constant 0 : index
    %50 = vector.load %arg4[%c5, %c0_65, %c0_66] : memref<9x64x128xbf16, #tpu.memory_space<vmem>>, vector<1x64x128xbf16>
    %51 = vector.shape_cast %50 : vector<1x64x128xbf16> to vector<64x128xbf16>
    %cst_67 = arith.constant dense<0.000000e+00> : vector<256x128xf32>
    %52 = tpu.matmul %49, %51, %cst_67 {dimension_numbers = #tpu.dot_dimension_numbers<[1], [0], [0], [1], [0, 0, 1, 1], [], []>} : vector<256x64xbf16>, vector<64x128xbf16>, vector<256x128xf32> -> vector<256x128xf32>
    %53 = arith.addf %47, %52 : vector<256x128xf32>
    %c0_68 = arith.constant 0 : index
    %c2_69 = arith.constant 2 : index
    %c15_70 = arith.constant 15 : index
    %c0_71 = arith.constant 0 : index
    %54 = vector.load %arg9[%c0_68, %c2_69, %c15_70, %c0_71] : memref<1x18x48x64xbf16, #tpu.memory_space<vmem>>, vector<1x16x16x64xbf16>
    %55 = vector.shape_cast %54 : vector<1x16x16x64xbf16> to vector<256x64xbf16>
    %c6 = arith.constant 6 : index
    %c0_72 = arith.constant 0 : index
    %c0_73 = arith.constant 0 : index
    %56 = vector.load %arg4[%c6, %c0_72, %c0_73] : memref<9x64x128xbf16, #tpu.memory_space<vmem>>, vector<1x64x128xbf16>
    %57 = vector.shape_cast %56 : vector<1x64x128xbf16> to vector<64x128xbf16>
    %cst_74 = arith.constant dense<0.000000e+00> : vector<256x128xf32>
    %58 = tpu.matmul %55, %57, %cst_74 {dimension_numbers = #tpu.dot_dimension_numbers<[1], [0], [0], [1], [0, 0, 1, 1], [], []>} : vector<256x64xbf16>, vector<64x128xbf16>, vector<256x128xf32> -> vector<256x128xf32>
    %59 = arith.addf %53, %58 : vector<256x128xf32>
    %c0_75 = arith.constant 0 : index
    %c2_76 = arith.constant 2 : index
    %c16_77 = arith.constant 16 : index
    %c0_78 = arith.constant 0 : index
    %60 = vector.load %arg9[%c0_75, %c2_76, %c16_77, %c0_78] : memref<1x18x48x64xbf16, #tpu.memory_space<vmem>>, vector<1x16x16x64xbf16>
    %61 = vector.shape_cast %60 : vector<1x16x16x64xbf16> to vector<256x64xbf16>
    %c7 = arith.constant 7 : index
    %c0_79 = arith.constant 0 : index
    %c0_80 = arith.constant 0 : index
    %62 = vector.load %arg4[%c7, %c0_79, %c0_80] : memref<9x64x128xbf16, #tpu.memory_space<vmem>>, vector<1x64x128xbf16>
    %63 = vector.shape_cast %62 : vector<1x64x128xbf16> to vector<64x128xbf16>
    %cst_81 = arith.constant dense<0.000000e+00> : vector<256x128xf32>
    %64 = tpu.matmul %61, %63, %cst_81 {dimension_numbers = #tpu.dot_dimension_numbers<[1], [0], [0], [1], [0, 0, 1, 1], [], []>} : vector<256x64xbf16>, vector<64x128xbf16>, vector<256x128xf32> -> vector<256x128xf32>
    %65 = arith.addf %59, %64 : vector<256x128xf32>
    %c0_82 = arith.constant 0 : index
    %c2_83 = arith.constant 2 : index
    %c17_84 = arith.constant 17 : index
    %c0_85 = arith.constant 0 : index
    %66 = vector.load %arg9[%c0_82, %c2_83, %c17_84, %c0_85] : memref<1x18x48x64xbf16, #tpu.memory_space<vmem>>, vector<1x16x16x64xbf16>
    %67 = vector.shape_cast %66 : vector<1x16x16x64xbf16> to vector<256x64xbf16>
    %c8 = arith.constant 8 : index
    %c0_86 = arith.constant 0 : index
    %c0_87 = arith.constant 0 : index
    %68 = vector.load %arg4[%c8, %c0_86, %c0_87] : memref<9x64x128xbf16, #tpu.memory_space<vmem>>, vector<1x64x128xbf16>
    %69 = vector.shape_cast %68 : vector<1x64x128xbf16> to vector<64x128xbf16>
    %cst_88 = arith.constant dense<0.000000e+00> : vector<256x128xf32>
    %70 = tpu.matmul %67, %69, %cst_88 {dimension_numbers = #tpu.dot_dimension_numbers<[1], [0], [0], [1], [0, 0, 1, 1], [], []>} : vector<256x64xbf16>, vector<64x128xbf16>, vector<256x128xf32> -> vector<256x128xf32>
    %71 = arith.addf %65, %70 : vector<256x128xf32>
    %c0_89 = arith.constant 0 : index
    %c0_90 = arith.constant 0 : index
    %72 = vector.load %arg5[%c0_89, %c0_90] : memref<1x128xf32, #tpu.memory_space<vmem>>, vector<1x128xf32>
    %73 = vector.broadcast %72 : vector<1x128xf32> to vector<256x128xf32>
    %74 = arith.addf %71, %73 : vector<256x128xf32>
    %cst_91 = arith.constant 0.000000e+00 : f32
    %75 = vector.broadcast %cst_91 : f32 to vector<256x128xf32>
    %76 = arith.maximumf %74, %75 : vector<256x128xf32>
    %77 = vector.shape_cast %76 : vector<256x128xf32> to vector<1x256x128xf32>
    %cst_92 = arith.constant dense<0.000000e+00> : vector<1x128xf32>
    %78 = vector.multi_reduction <add>, %77, %cst_92 [1] : vector<1x256x128xf32> to vector<1x128xf32>
    %cst_93 = arith.constant 3.906250e-03 : f32
    %79 = vector.broadcast %cst_93 : f32 to vector<1x128xf32>
    %80 = arith.mulf %78, %79 : vector<1x128xf32>
    %c0_94 = arith.constant 0 : index
    %c0_95 = arith.constant 0 : index
    %81 = vector.load %arg6[%c0_94, %c0_95] : memref<128x128xf32, #tpu.memory_space<vmem>>, vector<128x128xf32>
    %cst_96 = arith.constant dense<0.000000e+00> : vector<1x128xf32>
    %82 = tpu.matmul %80, %81, %cst_96 {dimension_numbers = #tpu.dot_dimension_numbers<[1], [0], [0], [1], [0, 0, 1, 1], [], []>} : vector<1x128xf32>, vector<128x128xf32>, vector<1x128xf32> -> vector<1x128xf32>
    %c0_97 = arith.constant 0 : index
    %c0_98 = arith.constant 0 : index
    %83 = vector.load %arg7[%c0_97, %c0_98] : memref<1x128xf32, #tpu.memory_space<vmem>>, vector<1x128xf32>
    %84 = arith.addf %82, %83 : vector<1x128xf32>
    %c0_99 = arith.constant 0 : index
    %c0_100 = arith.constant 0 : index
    %c0_101 = arith.constant 0 : index
    %85 = vector.load %arg8[%c0_99, %c0_100, %c0_101] : memref<1x1x128xf32, #tpu.memory_space<vmem>>, vector<1x1x128xf32>
    %86 = vector.shape_cast %85 : vector<1x1x128xf32> to vector<1x128xf32>
    %87 = vector.shape_cast %84 : vector<1x128xf32> to vector<1x1x128xf32>
    tpu.vector_store %arg8[%c0_99, %c0_100, %c0_101], %87 {strides = array<i32>} : memref<1x1x128xf32, #tpu.memory_space<vmem>>, vector<1x1x128xf32>,
    return
  }
  func.func @transform_0(%arg0: i32) -> (i32, i32) {
    %c0_i32 = arith.constant 0 : i32
    %c0_i32_0 = arith.constant 0 : i32
    return %arg0, %c0_i32 : i32, i32
  }
  func.func @transform_1(%arg0: i32) -> (i32, i32) {
    %c0_i32 = arith.constant 0 : i32
    %c0_i32_0 = arith.constant 0 : i32
    %c0_i32_1 = arith.constant 0 : i32
    return %c0_i32, %c0_i32_0 : i32, i32
  }
  func.func @transform_2(%arg0: i32) -> (i32, i32) {
    %c0_i32 = arith.constant 0 : i32
    %c0_i32_0 = arith.constant 0 : i32
    %c0_i32_1 = arith.constant 0 : i32
    return %c0_i32, %c0_i32_0 : i32, i32
  }
  func.func @transform_3(%arg0: i32) -> (i32, i32, i32) {
    %c0_i32 = arith.constant 0 : i32
    %c0_i32_0 = arith.constant 0 : i32
    %c0_i32_1 = arith.constant 0 : i32
    %c0_i32_2 = arith.constant 0 : i32
    return %c0_i32, %c0_i32_0, %c0_i32_1 : i32, i32, i32
  }
  func.func @transform_4(%arg0: i32) -> (i32, i32) {
    %c0_i32 = arith.constant 0 : i32
    %c0_i32_0 = arith.constant 0 : i32
    %c0_i32_1 = arith.constant 0 : i32
    return %c0_i32, %c0_i32_0 : i32, i32
  }
  func.func @transform_5(%arg0: i32) -> (i32, i32) {
    %c0_i32 = arith.constant 0 : i32
    %c0_i32_0 = arith.constant 0 : i32
    %c0_i32_1 = arith.constant 0 : i32
    return %c0_i32, %c0_i32_0 : i32, i32
  }
  func.func @transform_6(%arg0: i32) -> (i32, i32) {
    %c0_i32 = arith.constant 0 : i32
    %c0_i32_0 = arith.constant 0 : i32
    %c0_i32_1 = arith.constant 0 : i32
    return %c0_i32, %c0_i32_0 : i32, i32
  }
  func.func @transform_7(%arg0: i32) -> (i32, i32, i32) {
    %c0_i32 = arith.constant 0 : i32
    %c0_i32_0 = arith.constant 0 : i32
    %c0_i32_1 = arith.constant 0 : i32
    return %arg0, %c0_i32, %c0_i32_0 : i32, i32, i32
  }
}

</mosaic_0001>

<llo_original>
// kernel: tpu_custom_call.1
$region0: #{tpu_custom_call.1}
  #allocation0 [shape = 'u32[]', space=smem, size = 0x4, offset = 0x4, fixed_abs, tag = 'smem constant byte address 0x4 - core index']
  #allocation1 [shape = 'u32[144,128]{1,0:T(1,128)}', space=vmem, size = 0x12000, scoped, tag = 'internal scratch']
  #allocation2 [shape = 'bf16[1,18,48,64]{3,2,1,0:T(16,128)(2,1)}', space=vmem, size = 0x36000, scoped, tag = 'scratch operand']
  %s0 = inlined_call_operand.vmem [shape: bf16[512,36], index: 0, kind: input, shape index: {}]
  %s1 = inlined_call_operand.vmem [shape: bf16[36,64], index: 1, kind: input, shape index: {}]
  %s2 = inlined_call_operand.vmem [shape: f32[1,64], index: 2, kind: input, shape index: {}]
  %s3 = inlined_call_operand.vmem [shape: bf16[9,64,128], index: 3, kind: input, shape index: {}]
  %s4 = inlined_call_operand.vmem [shape: f32[1,128], index: 4, kind: input, shape index: {}]
  %s5 = inlined_call_operand.hbm [shape: f32[128,128], index: 5, kind: input, shape index: {}]
  %s6 = inlined_call_operand.vmem [shape: f32[1,128], index: 6, kind: input, shape index: {}]
  %s7 = inlined_call_operand.hbm [shape: f32[2,1,128], index: 7, kind: output, shape index: {}]
  %s8 = sld [smem:[#allocation0]]
  $region65: #{tpu_custom_call.1} parent=0
    _
  %s10 = ssub.s32 1, %s8
  %s11 = scalar_select 0, %s10, %s8
  $region1: #{tpu_custom_call.1} parent=0
    #allocation3 [shape = 'u8[65536]{0}', space=vmem, size = 0x10000, scoped, tag = 'input window, operand 5, single buffered']
    #allocation4 [shape = 's32[2]{0}', space=sflag, size = 0x8, scoped, tag = 'scoped memory for tpu_custom_call.1']
    #allocation5 [shape = 's32[2]{0}', space=sflag, size = 0x8, scoped, tag = 'scoped memory for tpu_custom_call.1']
    #allocation6 [shape = 'u8[1024]{0}', space=vmem, size = 0x400, scoped, tag = 'output window, operand 0']
    %12 = vsyncpa [#allocation4], 0
    %13 = vsyncpa [#allocation5], 0
    %s14 = scalar_lea.sflag [#allocation5], 1
    %15 = vsyncpa %s14, 0
    loop: start=0, step=1, limit=4
    $region2: #{tpu_custom_call.1} parent=1 // loop_pre_header
      _
    $region3: #{tpu_custom_call.1} parent=1 // loop_header
      %s17 = sphi 0, %s21
      %p18 = scmp.ge.s32.totalorder %s17, 4
      %s27 = sphi 0, %s29
      %s30 = sphi 0, %s27
      %s31 = sphi 0, %s30
      %s47 = sphi 0, %s31
      %s51 = sphi 0, %s51
      %s53 = sphi 0, %s51
      %s54 = sphi 0, %s53
      %s68 = sphi 0, %s54
      %s72 = sphi 0, %s72
      %s74 = sphi 0, %s72
      %s75 = sphi 0, %s74
      %s89 = sphi 0, %s75
      %s93 = sphi 0, %s93
      %s95 = sphi 0, %s93
      %s96 = sphi 0, %s95
      %s110 = sphi 0, %s96
      %s114 = sphi 0, %s114
      %s116 = sphi 0, %s114
      %s117 = sphi 0, %s116
      %s131 = sphi 0, %s117
      %s135 = sphi 0, %s135
      %s137 = sphi 0, %s135
      %s138 = sphi 0, %s137
      %s152 = sphi 0, %s138
      %s156 = sphi 0, %s156
      %s158 = sphi 0, %s156
      %s159 = sphi 0, %s158
      %s173 = sphi 0, %s159
      %s179 = sphi 0, %s181
      %s182 = sphi 0, %s179
      %s183 = sphi 0, %s182
      %s199 = sphi 0, %s183
    $region4: #{tpu_custom_call.1} parent=1 // loop_header_branch
      %20 = sbr.rel (%p18) target = $region8
    $region5: #{tpu_custom_call.1} parent=1 // loop_body
      %s22 = ssub.s32 %s17, 1
      %s23 = ssub.s32 %s17, 2
      %s24 = sadd.s32 %s17, 1
      %s25 = ssub.s32 %s17, %s24
      %p26 = scmp.eq.s32.totalorder %s25, 0
      %s28 = sadd.s32 %s27, 1
      %s29 = scalar_select %p26, %s27, %s28
      %p32 = pneg %p26
      %p33 = scmp.eq.s32.totalorder %s17, 1
      %p34 = por %p32, %p33
      %p35 = scmp.ne.s32.totalorder %s27, %s30
      %p36 = scmp.eq.s32.totalorder %s17, 0
      %p37 = por %p35, %p36
      %p38 = scmp.ne.s32.totalorder %s27, %s30
      %p39 = scmp.eq.s32.totalorder %s22, 1
      %p40 = por %p38, %p39
      %p41 = scmp.ne.s32.totalorder %s30, %s31
      %p42 = scmp.eq.s32.totalorder %s22, 0
      %p43 = por %p41, %p42
      %p44 = scmp.ne.s32.totalorder %s30, %s31
      %p45 = scmp.eq.s32.totalorder %s23, 1
      %p46 = por %p44, %p45
      %p48 = scmp.ne.s32.totalorder %s31, %s47
      %p49 = scmp.eq.s32.totalorder %s23, 0
      %p50 = por %p48, %p49
      %s52 = sadd.s32 %s51, 1
      %p55 = scmp.eq.s32.totalorder %s17, 1
      %p56 = scmp.ne.s32.totalorder %s51, %s53
      %p57 = scmp.eq.s32.totalorder %s17, 0
      %p58 = por %p56, %p57
      %p59 = scmp.ne.s32.totalorder %s51, %s53
      %p60 = scmp.eq.s32.totalorder %s22, 1
      %p61 = por %p59, %p60
      %p62 = scmp.ne.s32.totalorder %s53, %s54
      %p63 = scmp.eq.s32.totalorder %s22, 0
      %p64 = por %p62, %p63
      %p65 = scmp.ne.s32.totalorder %s53, %s54
      %p66 = scmp.eq.s32.totalorder %s23, 1
      %p67 = por %p65, %p66
      %p69 = scmp.ne.s32.totalorder %s54, %s68
      %p70 = scmp.eq.s32.totalorder %s23, 0
      %p71 = por %p69, %p70
      %s73 = sadd.s32 %s72, 1
      %p76 = scmp.eq.s32.totalorder %s17, 1
      %p77 = scmp.ne.s32.totalorder %s72, %s74
      %p78 = scmp.eq.s32.totalorder %s17, 0
      %p79 = por %p77, %p78
      %p80 = scmp.ne.s32.totalorder %s72, %s74
      %p81 = scmp.eq.s32.totalorder %s22, 1
      %p82 = por %p80, %p81
      %p83 = scmp.ne.s32.totalorder %s74, %s75
      %p84 = scmp.eq.s32.totalorder %s22, 0
      %p85 = por %p83, %p84
      %p86 = scmp.ne.s32.totalorder %s74, %s75
      %p87 = scmp.eq.s32.totalorder %s23, 1
      %p88 = por %p86, %p87
      %p90 = scmp.ne.s32.totalorder %s75, %s89
      %p91 = scmp.eq.s32.totalorder %s23, 0
      %p92 = por %p90, %p91
      %s94 = sadd.s32 %s93, 1
      %p97 = scmp.eq.s32.totalorder %s17, 1
      %p98 = scmp.ne.s32.totalorder %s93, %s95
      %p99 = scmp.eq.s32.totalorder %s17, 0
      %p100 = por %p98, %p99
      %p101 = scmp.ne.s32.totalorder %s93, %s95
      %p102 = scmp.eq.s32.totalorder %s22, 1
      %p103 = por %p101, %p102
      %p104 = scmp.ne.s32.totalorder %s95, %s96
      %p105 = scmp.eq.s32.totalorder %s22, 0
      %p106 = por %p104, %p105
      %p107 = scmp.ne.s32.totalorder %s95, %s96
      %p108 = scmp.eq.s32.totalorder %s23, 1
      %p109 = por %p107, %p108
      %p111 = scmp.ne.s32.totalorder %s96, %s110
      %p112 = scmp.eq.s32.totalorder %s23, 0
      %p113 = por %p111, %p112
      %s115 = sadd.s32 %s114, 1
      %p118 = scmp.eq.s32.totalorder %s17, 1
      %p119 = scmp.ne.s32.totalorder %s114, %s116
      %p120 = scmp.eq.s32.totalorder %s17, 0
      %p121 = por %p119, %p120
      %p122 = scmp.ne.s32.totalorder %s114, %s116
      %p123 = scmp.eq.s32.totalorder %s22, 1
      %p124 = por %p122, %p123
      %p125 = scmp.ne.s32.totalorder %s116, %s117
      %p126 = scmp.eq.s32.totalorder %s22, 0
      %p127 = por %p125, %p126
      %p128 = scmp.ne.s32.totalorder %s116, %s117
      %p129 = scmp.eq.s32.totalorder %s23, 1
      %p130 = por %p128, %p129
      %p132 = scmp.ne.s32.totalorder %s117, %s131
      %p133 = scmp.eq.s32.totalorder %s23, 0
      %p134 = por %p132, %p133
      %s136 = sadd.s32 %s135, 1
      %p139 = scmp.eq.s32.totalorder %s17, 1
      %p140 = scmp.ne.s32.totalorder %s135, %s137
      %p141 = scmp.eq.s32.totalorder %s17, 0
      %p142 = por %p140, %p141
      %p143 = scmp.ne.s32.totalorder %s135, %s137
      %p144 = scmp.eq.s32.totalorder %s22, 1
      %p145 = por %p143, %p144
      %p146 = scmp.ne.s32.totalorder %s137, %s138
      %p147 = scmp.eq.s32.totalorder %s22, 0
      %p148 = por %p146, %p147
      %p149 = scmp.ne.s32.totalorder %s137, %s138
      %p150 = scmp.eq.s32.totalorder %s23, 1
      %p151 = por %p149, %p150
      %p153 = scmp.ne.s32.totalorder %s138, %s152
      %p154 = scmp.eq.s32.totalorder %s23, 0
      %p155 = por %p153, %p154
      %s157 = sadd.s32 %s156, 1
      %p160 = scmp.eq.s32.totalorder %s17, 1
      %p161 = scmp.ne.s32.totalorder %s156, %s158
      %p162 = scmp.eq.s32.totalorder %s17, 0
      %p163 = por %p161, %p162
      %p164 = scmp.ne.s32.totalorder %s156, %s158
      %p165 = scmp.eq.s32.totalorder %s22, 1
      %p166 = por %p164, %p165
      %p167 = scmp.ne.s32.totalorder %s158, %s159
      %p168 = scmp.eq.s32.totalorder %s22, 0
      %p169 = por %p167, %p168
      %p170 = scmp.ne.s32.totalorder %s158, %s159
      %p171 = scmp.eq.s32.totalorder %s23, 1
      %p172 = por %p170, %p171
      %p174 = scmp.ne.s32.totalorder %s159, %s173
      %p175 = scmp.eq.s32.totalorder %s23, 0
      %p176 = por %p174, %p175
      %s177 = ssub.s32 %s17, %s24
      %p178 = scmp.eq.s32.totalorder %s177, 0
      %s180 = sadd.s32 %s179, 1
      %s181 = scalar_select %p178, %s179, %s180
      %p184 = pneg %p178
      %p185 = scmp.eq.s32.totalorder %s17, 1
      %p186 = por %p184, %p185
      %p187 = scmp.ne.s32.totalorder %s179, %s182
      %p188 = scmp.eq.s32.totalorder %s17, 0
      %p189 = por %p187, %p188
      %p190 = scmp.ne.s32.totalorder %s179, %s182
      %p191 = scmp.eq.s32.totalorder %s22, 1
      %p192 = por %p190, %p191
      %p193 = scmp.ne.s32.totalorder %s182, %s183
      %p194 = scmp.eq.s32.totalorder %s22, 0
      %p195 = por %p193, %p194
      %p196 = scmp.ne.s32.totalorder %s182, %s183
      %p197 = scmp.eq.s32.totalorder %s23, 1
      %p198 = por %p196, %p197
      %p200 = scmp.ne.s32.totalorder %s183, %s199
      %p201 = scmp.eq.s32.totalorder %s23, 0
      %p202 = por %p200, %p201
      %p203 = scmp.le.s32.totalorder 1, %s17
      %p204 = scmp.lt.s32.totalorder %s17, 3
      %p205 = pnand %p203, %p204
      %p206 = pneg %p205
      // Predicated region
      $region9: #{tpu_custom_call.1} parent=5 // pred_check
        _
      $region10: #{tpu_custom_call.1} parent=5 // pred_check_branch
        %208 = sbr.rel (%p205) target = $region12
      $region11: #{tpu_custom_call.1} parent=5 // pred_region
        %s209 = ssub.s32 %s17, 1
        // Predicated region
        $region13: #{tpu_custom_call.1} parent=11 // pred_check
          %p210 = pneg %p64
        $region14: #{tpu_custom_call.1} parent=11 // pred_check_branch
          %212 = sbr.rel (%p210) target = $region16
        $region15: #{tpu_custom_call.1} parent=11 // pred_region
          _
        $region16: #{tpu_custom_call.1} parent=11 // pred_fallthru
          _
        // Predicated region
        $region17: #{tpu_custom_call.1} parent=11 // pred_check
          %p213 = pneg %p85
        $region18: #{tpu_custom_call.1} parent=11 // pred_check_branch
          %215 = sbr.rel (%p213) target = $region20
        $region19: #{tpu_custom_call.1} parent=11 // pred_region
          _
        $region20: #{tpu_custom_call.1} parent=11 // pred_fallthru
          _
        // Predicated region
        $region21: #{tpu_custom_call.1} parent=11 // pred_check
          %p216 = pneg %p106
        $region22: #{tpu_custom_call.1} parent=11 // pred_check_branch
          %218 = sbr.rel (%p216) target = $region24
        $region23: #{tpu_custom_call.1} parent=11 // pred_region
          _
        $region24: #{tpu_custom_call.1} parent=11 // pred_fallthru
          _
        // Predicated region
        $region25: #{tpu_custom_call.1} parent=11 // pred_check
          %p219 = pneg %p127
        $region26: #{tpu_custom_call.1} parent=11 // pred_check_branch
          %221 = sbr.rel (%p219) target = $region28
        $region27: #{tpu_custom_call.1} parent=11 // pred_region
          _
        $region28: #{tpu_custom_call.1} parent=11 // pred_fallthru
          _
        // Predicated region
        $region29: #{tpu_custom_call.1} parent=11 // pred_check
          %p222 = pneg %p148
        $region30: #{tpu_custom_call.1} parent=11 // pred_check_branch
          %224 = sbr.rel (%p222) target = $region32
        $region31: #{tpu_custom_call.1} parent=11 // pred_region
          %s226 = ssub.s32 2048, 2048
          %227 = vsyncadd [#allocation4], %s226
          %s228 = sshll.u32 [#allocation3], 4
          %s229 = int_to_ptr.vmem [resolvable:$true] %s228
          %234 = dma.hbm_to_vmem [thread:$0]  %s5, 2048, %s229, [#allocation4], 128, 128, 8
        $region32: #{tpu_custom_call.1} parent=11 // pred_fallthru
          _
        // Predicated region
        $region33: #{tpu_custom_call.1} parent=11 // pred_check
          %p235 = pneg %p169
        $region34: #{tpu_custom_call.1} parent=11 // pred_check_branch
          %237 = sbr.rel (%p235) target = $region36
        $region35: #{tpu_custom_call.1} parent=11 // pred_region
          _
        $region36: #{tpu_custom_call.1} parent=11 // pred_fallthru
          _
      $region12: #{tpu_custom_call.1} parent=5 // pred_fallthru
        _
      %p238 = scmp.lt.s32.totalorder %s17, 2
      // Predicated region
      $region37: #{tpu_custom_call.1} parent=5 // pred_check
        %p239 = pneg %p238
      $region38: #{tpu_custom_call.1} parent=5 // pred_check_branch
        %241 = sbr.rel (%p239) target = $region40
      $region39: #{tpu_custom_call.1} parent=5 // pred_region
        // Predicated region
        $region41: #{tpu_custom_call.1} parent=39 // pred_check
          %p242 = pneg %p37
        $region42: #{tpu_custom_call.1} parent=39 // pred_check_branch
          %244 = sbr.rel (%p242) target = $region44
        $region43: #{tpu_custom_call.1} parent=39 // pred_region
          %s245 = smul.u32 32, %s17
          %p246 = scmp.lt.s32.totalorder %s245, 63
          %s247 = scalar_select %p246, %s245, 63
          %s248 = smul.addr %s247, 4
          %s249 = scalar_lea.vmem %s0, %s248
          %s250 = smul.u32 32, %s17
        $region44: #{tpu_custom_call.1} parent=39 // pred_fallthru
          _
      $region40: #{tpu_custom_call.1} parent=5 // pred_fallthru
        _
      %p251 = scmp.le.s32.totalorder 1, %s17
      %p252 = scmp.lt.s32.totalorder %s17, 3
      %p253 = pnand %p251, %p252
      %p254 = pneg %p253
      // Predicated region
      $region45: #{tpu_custom_call.1} parent=5 // pred_check
        _
      $region46: #{tpu_custom_call.1} parent=5 // pred_check_branch
        %256 = sbr.rel (%p253) target = $region48
      $region47: #{tpu_custom_call.1} parent=5 // pred_region
        %s257 = ssub.s32 %s17, 1
        // Predicated region
        $region49: #{tpu_custom_call.1} parent=47 // pred_check
          %p258 = pneg %p148
        $region50: #{tpu_custom_call.1} parent=47 // pred_check_branch
          %260 = sbr.rel (%p258) target = $region52
        $region51: #{tpu_custom_call.1} parent=47 // pred_region
          %261 = dma.done [#allocation4], 2048
        $region52: #{tpu_custom_call.1} parent=47 // pred_fallthru
          _
        %s262 = smul.u32 32, %s22
        %p263 = scmp.lt.s32.totalorder %s262, 63
        %s264 = scalar_select %p263, %s262, 63
        %s265 = smul.addr %s264, 4
        %s266 = scalar_lea.vmem %s0, %s265
        %p267 = pneg %p43
        %p268 = pneg %p40
        %p269 = pneg %p64
        %p270 = pneg %p61
        %p271 = pneg %p85
        %p272 = pneg %p82
        %p273 = pneg %p106
        %p274 = pneg %p103
        %p275 = pneg %p127
        %p276 = pneg %p124
        %p277 = pneg %p148
        %p278 = pneg %p145
        %p279 = pneg %p169
        %p280 = pneg %p166
        %p281 = pneg %p195
        %p282 = pneg %p192
        %s283 = sand.u32 %s182, 1
        %s284 = scalar_lea.sflag [#allocation5], %s283
        %s285 = sand.u32 %s182, 1
        %s286 = scalar_lea.vmem [#allocation6], %s285
        %s287 = smul.u32 32, %s22
        %p288 = scmp.lt.s32.totalorder %s287, 63
        %s289 = scalar_select %p288, %s287, 63
        %s290 = smul.addr %s289, 4
        %s291 = scalar_lea.vmem %s0, %s290
        %s292 = smul.u32 32, %s22
        %v294 = vld [vmem:[%s291] sm:$0xf]
        %v295 = vld [vmem:[%s291 + $0x4] sm:$0xf]
        %v296 = vld [vmem:[%s291 + $0x8] sm:$0xf]
        %v297 = vld [vmem:[%s291 + $0xc] sm:$0xf]
        %v298 = vld [vmem:[%s291 + $0x10] sm:$0xf]
        %v299 = vld [vmem:[%s291 + $0x14] sm:$0xf]
        %v300 = vld [vmem:[%s291 + $0x18] sm:$0xf]
        %v301 = vld [vmem:[%s291 + $0x1c] sm:$0xf]
        %v302 = vld [vmem:[%s291 + $0x20] sm:$0xf]
        %v303 = vld [vmem:[%s291 + $0x24] sm:$0xf]
        %v304 = vld [vmem:[%s291 + $0x28] sm:$0xf]
        %v305 = vld [vmem:[%s291 + $0x2c] sm:$0xf]
        %v306 = vld [vmem:[%s291 + $0x30] sm:$0xf]
        %v307 = vld [vmem:[%s291 + $0x34] sm:$0xf]
        %v308 = vld [vmem:[%s291 + $0x38] sm:$0xf]
        %v309 = vld [vmem:[%s291 + $0x3c] sm:$0xf]
        %v310 = vld [vmem:[%s291 + $0x40] sm:$0xf]
        %v311 = vld [vmem:[%s291 + $0x44] sm:$0xf]
        %v312 = vld [vmem:[%s291 + $0x48] sm:$0xf]
        %v313 = vld [vmem:[%s291 + $0x4c] sm:$0xf]
        %v314 = vld [vmem:[%s291 + $0x50] sm:$0xf]
        %v315 = vld [vmem:[%s291 + $0x54] sm:$0xf]
        %v316 = vld [vmem:[%s291 + $0x58] sm:$0xf]
        %v317 = vld [vmem:[%s291 + $0x5c] sm:$0xf]
        %v318 = vld [vmem:[%s291 + $0x60] sm:$0xf]
        %v319 = vld [vmem:[%s291 + $0x64] sm:$0xf]
        %v320 = vld [vmem:[%s291 + $0x68] sm:$0xf]
        %v321 = vld [vmem:[%s291 + $0x6c] sm:$0xf]
        %v322 = vld [vmem:[%s291 + $0x70] sm:$0xf]
        %v323 = vld [vmem:[%s291 + $0x74] sm:$0xf]
        %v324 = vld [vmem:[%s291 + $0x78] sm:$0xf]
        %v325 = vld [vmem:[%s291 + $0x7c] sm:$0xf]
        %v326 = vld [vmem:[%s1] sm:$0xf]
        %v327 = vld [vmem:[%s1 + $0x4] sm:$0xf]
        %v328 = vld [vmem:[%s1 + $0x8] sm:$0xf]
        %v329 = vld [vmem:[%s1 + $0xc] sm:$0xf]
        %v330 = vld [vmem:[%s1 + $0x10] sm:$0x3]
        %v331 = vld [vmem:[%s2] sm:$0x1]
        %v333 = vlaneseq
        %v334 = vshrl.u32 %v333, 7
        %v335 = vsub.s32 0, %v334
        %v336 = vrot.slane %v331, %v335
        %v370 = vunpack.c.l.b16 %v294
        %v371 = vunpack.c.l.b16 %v295
        %v372 = vunpack.c.l.b16 %v296
        %v373 = vunpack.c.l.b16 %v297
        %v374 = vunpack.c.l.b16 %v298
        %v375 = vunpack.c.l.b16 %v299
        %v376 = vunpack.c.l.b16 %v300
        %v377 = vunpack.c.l.b16 %v301
        %v378 = vunpack.c.l.b16 %v302
        %v379 = vunpack.c.l.b16 %v303
        %v380 = vunpack.c.l.b16 %v304
        %v381 = vunpack.c.l.b16 %v305
        %v382 = vunpack.c.l.b16 %v306
        %v383 = vunpack.c.l.b16 %v307
        %v384 = vunpack.c.l.b16 %v308
        %v385 = vunpack.c.l.b16 %v309
        %v386 = vunpack.c.l.b16 %v310
        %v387 = vunpack.c.l.b16 %v311
        %v388 = vunpack.c.l.b16 %v312
        %v389 = vunpack.c.l.b16 %v313
        %v390 = vunpack.c.l.b16 %v314
        %v391 = vunpack.c.l.b16 %v315
        %v392 = vunpack.c.l.b16 %v316
        %v393 = vunpack.c.l.b16 %v317
        %v394 = vunpack.c.l.b16 %v318
        %v395 = vunpack.c.l.b16 %v319
        %v396 = vunpack.c.l.b16 %v320
        %v397 = vunpack.c.l.b16 %v321
        %v398 = vunpack.c.l.b16 %v322
        %v399 = vunpack.c.l.b16 %v323
        %v400 = vunpack.c.l.b16 %v324
        %v401 = vunpack.c.l.b16 %v325
        %v402 = vpack.c.b16 %v371, %v370
        %v403 = vpack.c.b16 %v373, %v372
        %v404 = vpack.c.b16 %v375, %v374
        %v405 = vpack.c.b16 %v377, %v376
        %v406 = vpack.c.b16 %v379, %v378
        %v407 = vpack.c.b16 %v381, %v380
        %v408 = vpack.c.b16 %v383, %v382
        %v409 = vpack.c.b16 %v385, %v384
        %v410 = vpack.c.b16 %v387, %v386
        %v411 = vpack.c.b16 %v389, %v388
        %v412 = vpack.c.b16 %v391, %v390
        %v413 = vpack.c.b16 %v393, %v392
        %v414 = vpack.c.b16 %v395, %v394
        %v415 = vpack.c.b16 %v397, %v396
        %v416 = vpack.c.b16 %v399, %v398
        %v417 = vpack.c.b16 %v401, %v400
        %v423 = vunpack.c.l.b16 %v326
        %v424 = vunpack.c.l.b16 %v327
        %v425 = vunpack.c.l.b16 %v328
        %v426 = vunpack.c.l.b16 %v329
        %v427 = vunpack.c.l.b16 %v330
        %v428 = vpack.c.b16 %v424, %v423
        %v429 = vpack.c.b16 %v426, %v425
        %v430 = vpack.c.b16 %v427, %v427
        %vm433 = vcmask 293888
        %v435 = vsel %vm433, %v402, 0
        %v438 = vsel %vm433, %v403, 0
        %v441 = vsel %vm433, %v404, 0
        %v444 = vsel %vm433, %v405, 0
        %v447 = vsel %vm433, %v406, 0
        %v450 = vsel %vm433, %v407, 0
        %v453 = vsel %vm433, %v408, 0
        %v456 = vsel %vm433, %v409, 0
        %v459 = vsel %vm433, %v410, 0
        %v462 = vsel %vm433, %v411, 0
        %v465 = vsel %vm433, %v412, 0
        %v468 = vsel %vm433, %v413, 0
        %v471 = vsel %vm433, %v414, 0
        %v474 = vsel %vm433, %v415, 0
        %v477 = vsel %vm433, %v416, 0
        %v480 = vsel %vm433, %v417, 0
        %vm482 = vcmask 1041408
        %v484 = vsel %vm482, %v430, 0
        %486 = vmatprep.subr.bf16.mxu0 0
        %487 = vmatpush1.bf16.msra.mxu0 %v428
        %488 = vmatprep.subr.bf16.mxu0 0
        %489 = vmatpush1.bf16.msra.mxu0 %v429
        %490 = vmatprep.subr.bf16.mxu0 0
        %491 = vmatpush1.bf16.msra.mxu0 %v484
        %492 = vmatprep.subr.bf16.mxu0 0
        %493 = vmatpush1.bf16.msra.mxu0 0
        %494 = vmatprep.subr.bf16.mxu0 0
        %495 = vmatpush1.bf16.msra.mxu0 0
        %496 = vmatprep.subr.bf16.mxu0 0
        %497 = vmatpush1.bf16.msra.mxu0 0
        %498 = vmatprep.subr.bf16.mxu0 0
        %499 = vmatpush1.bf16.msra.mxu0 0
        %500 = vmatprep.subr.bf16.mxu0 0
        %501 = vmatpush1.bf16.msra.mxu0 0
        %502 = vmatprep.subr.bf16.mxu0 0
        %503 = vmatpush1.bf16.msra.mxu0 0
        %504 = vmatprep.subr.bf16.mxu0 0
        %505 = vmatpush1.bf16.msra.mxu0 0
        %506 = vmatprep.subr.bf16.mxu0 0
        %507 = vmatpush1.bf16.msra.mxu0 0
        %508 = vmatprep.subr.bf16.mxu0 0
        %509 = vmatpush1.bf16.msra.mxu0 0
        %510 = vmatprep.subr.bf16.mxu0 0
        %511 = vmatpush1.bf16.msra.mxu0 0
        %512 = vmatprep.subr.bf16.mxu0 0
        %513 = vmatpush1.bf16.msra.mxu0 0
        %514 = vmatprep.subr.bf16.mxu0 0
        %515 = vmatpush1.bf16.msra.mxu0 0
        %516 = vmatprep.subr.bf16.mxu0 0
        %517 = vmatpush1.bf16.msra.mxu0 0
        %518 = vmatprep.mubr.bf16.mxu0 0
        %519 = vmatmul.mubr.bf16.gmra.mrb[0].mxu0 %v435
        %v520 = vpop.f32.mrb[0].mxu0
        %v521 = vadd.f32 %v336, %v520
        %v522 = vpop.f32.mrb[0].mxu0
        %v523 = vpop.f32.mrb[0].mxu0
        %v524 = vadd.f32 %v336, %v523
        %v525 = vpop.f32.mrb[0].mxu0
        %526 = vmatprep.mubr.bf16.mxu0 0
        %527 = vmatmul.mubr.bf16.gmra.mrb[0].mxu0 %v438
        %v528 = vpop.f32.mrb[0].mxu0
        %v529 = vadd.f32 %v336, %v528
        %v530 = vpop.f32.mrb[0].mxu0
        %v531 = vpop.f32.mrb[0].mxu0
        %v532 = vadd.f32 %v336, %v531
        %v533 = vpop.f32.mrb[0].mxu0
        %534 = vmatprep.mubr.bf16.mxu0 0
        %535 = vmatmul.mubr.bf16.gmra.mrb[0].mxu0 %v441
        %v536 = vpop.f32.mrb[0].mxu0
        %v537 = vadd.f32 %v336, %v536
        %v538 = vpop.f32.mrb[0].mxu0
        %v539 = vpop.f32.mrb[0].mxu0
        %v540 = vadd.f32 %v336, %v539
        %v541 = vpop.f32.mrb[0].mxu0
        %542 = vmatprep.mubr.bf16.mxu0 0
        %543 = vmatmul.mubr.bf16.gmra.mrb[0].mxu0 %v444
        %v544 = vpop.f32.mrb[0].mxu0
        %v545 = vadd.f32 %v336, %v544
        %v546 = vpop.f32.mrb[0].mxu0
        %v547 = vpop.f32.mrb[0].mxu0
        %v548 = vadd.f32 %v336, %v547
        %v549 = vpop.f32.mrb[0].mxu0
        %550 = vmatprep.mubr.bf16.mxu0 0
        %551 = vmatmul.mubr.bf16.gmra.mrb[0].mxu0 %v447
        %v552 = vpop.f32.mrb[0].mxu0
        %v553 = vadd.f32 %v336, %v552
        %v554 = vpop.f32.mrb[0].mxu0
        %v555 = vpop.f32.mrb[0].mxu0
        %v556 = vadd.f32 %v336, %v555
        %v557 = vpop.f32.mrb[0].mxu0
        %558 = vmatprep.mubr.bf16.mxu0 0
        %559 = vmatmul.mubr.bf16.gmra.mrb[0].mxu0 %v450
        %v560 = vpop.f32.mrb[0].mxu0
        %v561 = vadd.f32 %v336, %v560
        %v562 = vpop.f32.mrb[0].mxu0
        %v563 = vpop.f32.mrb[0].mxu0
        %v564 = vadd.f32 %v336, %v563
        %v565 = vpop.f32.mrb[0].mxu0
        %566 = vmatprep.mubr.bf16.mxu0 0
        %567 = vmatmul.mubr.bf16.gmra.mrb[0].mxu0 %v453
        %v568 = vpop.f32.mrb[0].mxu0
        %v569 = vadd.f32 %v336, %v568
        %v570 = vpop.f32.mrb[0].mxu0
        %v571 = vpop.f32.mrb[0].mxu0
        %v572 = vadd.f32 %v336, %v571
        %v573 = vpop.f32.mrb[0].mxu0
        %574 = vmatprep.mubr.bf16.mxu0 0
        %575 = vmatmul.mubr.bf16.gmra.mrb[0].mxu0 %v456
        %v576 = vpop.f32.mrb[0].mxu0
        %v577 = vadd.f32 %v336, %v576
        %v578 = vpop.f32.mrb[0].mxu0
        %v579 = vpop.f32.mrb[0].mxu0
        %v580 = vadd.f32 %v336, %v579
        %v581 = vpop.f32.mrb[0].mxu0
        %582 = vmatprep.mubr.bf16.mxu0 0
        %583 = vmatmul.mubr.bf16.gmra.mrb[0].mxu0 %v459
        %v584 = vpop.f32.mrb[0].mxu0
        %v585 = vadd.f32 %v336, %v584
        %v586 = vpop.f32.mrb[0].mxu0
        %v587 = vpop.f32.mrb[0].mxu0
        %v588 = vadd.f32 %v336, %v587
        %v589 = vpop.f32.mrb[0].mxu0
        %590 = vmatprep.mubr.bf16.mxu0 0
        %591 = vmatmul.mubr.bf16.gmra.mrb[0].mxu0 %v462
        %v592 = vpop.f32.mrb[0].mxu0
        %v593 = vadd.f32 %v336, %v592
        %v594 = vpop.f32.mrb[0].mxu0
        %v595 = vpop.f32.mrb[0].mxu0
        %v596 = vadd.f32 %v336, %v595
        %v597 = vpop.f32.mrb[0].mxu0
        %598 = vmatprep.mubr.bf16.mxu0 0
        %599 = vmatmul.mubr.bf16.gmra.mrb[0].mxu0 %v465
        %v600 = vpop.f32.mrb[0].mxu0
        %v601 = vadd.f32 %v336, %v600
        %v602 = vpop.f32.mrb[0].mxu0
        %v603 = vpop.f32.mrb[0].mxu0
        %v604 = vadd.f32 %v336, %v603
        %v605 = vpop.f32.mrb[0].mxu0
        %606 = vmatprep.mubr.bf16.mxu0 0
        %607 = vmatmul.mubr.bf16.gmra.mrb[0].mxu0 %v468
        %v608 = vpop.f32.mrb[0].mxu0
        %v609 = vadd.f32 %v336, %v608
        %v610 = vpop.f32.mrb[0].mxu0
        %v611 = vpop.f32.mrb[0].mxu0
        %v612 = vadd.f32 %v336, %v611
        %v613 = vpop.f32.mrb[0].mxu0
        %614 = vmatprep.mubr.bf16.mxu0 0
        %615 = vmatmul.mubr.bf16.gmra.mrb[0].mxu0 %v471
        %v616 = vpop.f32.mrb[0].mxu0
        %v617 = vadd.f32 %v336, %v616
        %v618 = vpop.f32.mrb[0].mxu0
        %v619 = vpop.f32.mrb[0].mxu0
        %v620 = vadd.f32 %v336, %v619
        %v621 = vpop.f32.mrb[0].mxu0
        %622 = vmatprep.mubr.bf16.mxu0 0
        %623 = vmatmul.mubr.bf16.gmra.mrb[0].mxu0 %v474
        %v624 = vpop.f32.mrb[0].mxu0
        %v625 = vadd.f32 %v336, %v624
        %v626 = vpop.f32.mrb[0].mxu0
        %v627 = vpop.f32.mrb[0].mxu0
        %v628 = vadd.f32 %v336, %v627
        %v629 = vpop.f32.mrb[0].mxu0
        %630 = vmatprep.mubr.bf16.mxu0 0
        %631 = vmatmul.mubr.bf16.gmra.mrb[0].mxu0 %v477
        %v632 = vpop.f32.mrb[0].mxu0
        %v633 = vadd.f32 %v336, %v632
        %v634 = vpop.f32.mrb[0].mxu0
        %v635 = vpop.f32.mrb[0].mxu0
        %v636 = vadd.f32 %v336, %v635
        %v637 = vpop.f32.mrb[0].mxu0
        %638 = vmatprep.mubr.bf16.mxu0 0
        %639 = vmatmul.mubr.bf16.gmra.mrb[0].mxu0 %v480
        %v640 = vpop.f32.mrb[0].mxu0
        %v641 = vadd.f32 %v336, %v640
        %v642 = vpop.f32.mrb[0].mxu0
        %v643 = vpop.f32.mrb[0].mxu0
        %v644 = vadd.f32 %v336, %v643
        %v645 = vpop.f32.mrb[0].mxu0
        %646 = vdwg.mxu0
        %v647 = vmax.f32 %v521, 0.0
        %v648 = vmax.f32 %v524, 0.0
        %v649 = vmax.f32 %v529, 0.0
        %v650 = vmax.f32 %v532, 0.0
        %v651 = vmax.f32 %v537, 0.0
        %v652 = vmax.f32 %v540, 0.0
        %v653 = vmax.f32 %v545, 0.0
        %v654 = vmax.f32 %v548, 0.0
        %v655 = vmax.f32 %v553, 0.0
        %v656 = vmax.f32 %v556, 0.0
        %v657 = vmax.f32 %v561, 0.0
        %v658 = vmax.f32 %v564, 0.0
        %v659 = vmax.f32 %v569, 0.0
        %v660 = vmax.f32 %v572, 0.0
        %v661 = vmax.f32 %v577, 0.0
        %v662 = vmax.f32 %v580, 0.0
        %v663 = vmax.f32 %v585, 0.0
        %v664 = vmax.f32 %v588, 0.0
        %v665 = vmax.f32 %v593, 0.0
        %v666 = vmax.f32 %v596, 0.0
        %v667 = vmax.f32 %v601, 0.0
        %v668 = vmax.f32 %v604, 0.0
        %v669 = vmax.f32 %v609, 0.0
        %v670 = vmax.f32 %v612, 0.0
        %v671 = vmax.f32 %v617, 0.0
        %v672 = vmax.f32 %v620, 0.0
        %v673 = vmax.f32 %v625, 0.0
        %v674 = vmax.f32 %v628, 0.0
        %v675 = vmax.f32 %v633, 0.0
        %v676 = vmax.f32 %v636, 0.0
        %v677 = vmax.f32 %v641, 0.0
        %v678 = vmax.f32 %v644, 0.0
        %vm679 = vcmask 523264
        %680 = vst.msk [vmem:[#allocation2] sm:$0xff] %vm679, 0
        %681 = vst.msk [vmem:[#allocation2 + $0x8] sm:$0xff] %vm679, 0
        %682 = vst.msk [vmem:[#allocation2 + $0x10] sm:$0xff] %vm679, 0
        %s683 = scalar_lea.vmem [#allocation2], 408
        %684 = vst.msk [vmem:[%s683] sm:$0xff] %vm679, 0
        %685 = vst.msk [vmem:[%s683 + $0x8] sm:$0xff] %vm679, 0
        %686 = vst.msk [vmem:[%s683 + $0x10] sm:$0xff] %vm679, 0
        %s687 = scalar_lea.vmem [#allocation2], 24
        %688 = vst.msk [vmem:[%s687] sm:$0xff] %vm679, 0
        %689 = vst.msk [vmem:[%s687 + $0x18] sm:$0xff] %vm679, 0
        %690 = vst.msk [vmem:[%s687 + $0x30] sm:$0xff] %vm679, 0
        %691 = vst.msk [vmem:[%s687 + $0x48] sm:$0xff] %vm679, 0
        %692 = vst.msk [vmem:[%s687 + $0x60] sm:$0xff] %vm679, 0
        %693 = vst.msk [vmem:[%s687 + $0x78] sm:$0xff] %vm679, 0
        %694 = vst.msk [vmem:[%s687 + $0x90] sm:$0xff] %vm679, 0
        %695 = vst.msk [vmem:[%s687 + $0xa8] sm:$0xff] %vm679, 0
        %696 = vst.msk [vmem:[%s687 + $0xc0] sm:$0xff] %vm679, 0
        %697 = vst.msk [vmem:[%s687 + $0xd8] sm:$0xff] %vm679, 0
        %698 = vst.msk [vmem:[%s687 + $0xf0] sm:$0xff] %vm679, 0
        %699 = vst.msk [vmem:[%s687 + $0x108] sm:$0xff] %vm679, 0
        %700 = vst.msk [vmem:[%s687 + $0x120] sm:$0xff] %vm679, 0
        %701 = vst.msk [vmem:[%s687 + $0x138] sm:$0xff] %vm679, 0
        %702 = vst.msk [vmem:[%s687 + $0x150] sm:$0xff] %vm679, 0
        %703 = vst.msk [vmem:[%s687 + $0x168] sm:$0xff] %vm679, 0
        %704 = vst.msk [vmem:[%s687 + $0x10] sm:$0xff] %vm679, 0
        %705 = vst.msk [vmem:[%s687 + $0x28] sm:$0xff] %vm679, 0
        %706 = vst.msk [vmem:[%s687 + $0x40] sm:$0xff] %vm679, 0
        %707 = vst.msk [vmem:[%s687 + $0x58] sm:$0xff] %vm679, 0
        %708 = vst.msk [vmem:[%s687 + $0x70] sm:$0xff] %vm679, 0
        %709 = vst.msk [vmem:[%s687 + $0x88] sm:$0xff] %vm679, 0
        %710 = vst.msk [vmem:[%s687 + $0xa0] sm:$0xff] %vm679, 0
        %711 = vst.msk [vmem:[%s687 + $0xb8] sm:$0xff] %vm679, 0
        %712 = vst.msk [vmem:[%s687 + $0xd0] sm:$0xff] %vm679, 0
        %713 = vst.msk [vmem:[%s687 + $0xe8] sm:$0xff] %vm679, 0
        %714 = vst.msk [vmem:[%s687 + $0x100] sm:$0xff] %vm679, 0
        %715 = vst.msk [vmem:[%s687 + $0x118] sm:$0xff] %vm679, 0
        %716 = vst.msk [vmem:[%s687 + $0x130] sm:$0xff] %vm679, 0
        %717 = vst.msk [vmem:[%s687 + $0x148] sm:$0xff] %vm679, 0
        %718 = vst.msk [vmem:[%s687 + $0x160] sm:$0xff] %vm679, 0
        %719 = vst.msk [vmem:[%s687 + $0x178] sm:$0xff] %vm679, 0
        %v720 = vpack.c.bf16 %v648, %v647
        %v721 = vpack.c.bf16 %v650, %v649
        %v722 = vpack.c.bf16 %v652, %v651
        %v723 = vpack.c.bf16 %v654, %v653
        %v724 = vpack.c.bf16 %v656, %v655
        %v725 = vpack.c.bf16 %v658, %v657
        %v726 = vpack.c.bf16 %v660, %v659
        %v727 = vpack.c.bf16 %v662, %v661
        %v728 = vpack.c.bf16 %v664, %v663
        %v729 = vpack.c.bf16 %v666, %v665
        %v730 = vpack.c.bf16 %v668, %v667
        %v731 = vpack.c.bf16 %v670, %v669
        %v732 = vpack.c.bf16 %v672, %v671
        %v733 = vpack.c.bf16 %v674, %v673
        %v734 = vpack.c.bf16 %v676, %v675
        %v735 = vpack.c.bf16 %v678, %v677
        %736 = vst.msk [vmem:[%s687 + $0x8] sm:$0xff] %vm679, %v720
        %737 = vst.msk [vmem:[%s687 + $0x20] sm:$0xff] %vm679, %v721
        %738 = vst.msk [vmem:[%s687 + $0x38] sm:$0xff] %vm679, %v722
        %739 = vst.msk [vmem:[%s687 + $0x50] sm:$0xff] %vm679, %v723
        %740 = vst.msk [vmem:[%s687 + $0x68] sm:$0xff] %vm679, %v724
        %741 = vst.msk [vmem:[%s687 + $0x80] sm:$0xff] %vm679, %v725
        %742 = vst.msk [vmem:[%s687 + $0x98] sm:$0xff] %vm679, %v726
        %743 = vst.msk [vmem:[%s687 + $0xb0] sm:$0xff] %vm679, %v727
        %744 = vst.msk [vmem:[%s687 + $0xc8] sm:$0xff] %vm679, %v728
        %745 = vst.msk [vmem:[%s687 + $0xe0] sm:$0xff] %vm679, %v729
        %746 = vst.msk [vmem:[%s687 + $0xf8] sm:$0xff] %vm679, %v730
        %747 = vst.msk [vmem:[%s687 + $0x110] sm:$0xff] %vm679, %v731
        %748 = vst.msk [vmem:[%s687 + $0x128] sm:$0xff] %vm679, %v732
        %749 = vst.msk [vmem:[%s687 + $0x140] sm:$0xff] %vm679, %v733
        %750 = vst.msk [vmem:[%s687 + $0x158] sm:$0xff] %vm679, %v734
        %751 = vst.msk [vmem:[%s687 + $0x170] sm:$0xff] %vm679, %v735
        %v752 = vld [vmem:[#allocation2] sm:$0x80]
        %v753 = vld [vmem:[#allocation2 + $0x8] sm:$0xff]
        %v754 = vld [vmem:[#allocation2 + $0x18] sm:$0x80]
        %v755 = vld [vmem:[#allocation2 + $0x20] sm:$0xff]
        %v756 = vld [vmem:[#allocation2 + $0x30] sm:$0x80]
        %v757 = vld [vmem:[#allocation2 + $0x38] sm:$0xff]
        %v758 = vld [vmem:[#allocation2 + $0x48] sm:$0x80]
        %v759 = vld [vmem:[#allocation2 + $0x50] sm:$0xff]
        %v760 = vld [vmem:[#allocation2 + $0x60] sm:$0x80]
        %v761 = vld [vmem:[#allocation2 + $0x68] sm:$0xff]
        %v762 = vld [vmem:[#allocation2 + $0x78] sm:$0x80]
        %v763 = vld [vmem:[#allocation2 + $0x80] sm:$0xff]
        %v764 = vld [vmem:[#allocation2 + $0x90] sm:$0x80]
        %v765 = vld [vmem:[#allocation2 + $0x98] sm:$0xff]
        %v766 = vld [vmem:[#allocation2 + $0xa8] sm:$0x80]
        %v767 = vld [vmem:[#allocation2 + $0xb0] sm:$0xff]
        %v768 = vld [vmem:[#allocation2 + $0xc0] sm:$0x80]
        %v769 = vld [vmem:[#allocation2 + $0xc8] sm:$0xff]
        %v770 = vld [vmem:[#allocation2 + $0xd8] sm:$0x80]
        %v771 = vld [vmem:[#allocation2 + $0xe0] sm:$0xff]
        %v772 = vld [vmem:[#allocation2 + $0xf0] sm:$0x80]
        %v773 = vld [vmem:[#allocation2 + $0xf8] sm:$0xff]
        %v774 = vld [vmem:[#allocation2 + $0x108] sm:$0x80]
        %v775 = vld [vmem:[#allocation2 + $0x110] sm:$0xff]
        %v776 = vld [vmem:[#allocation2 + $0x120] sm:$0x80]
        %v777 = vld [vmem:[#allocation2 + $0x128] sm:$0xff]
        %v778 = vld [vmem:[#allocation2 + $0x138] sm:$0x80]
        %v779 = vld [vmem:[#allocation2 + $0x140] sm:$0xff]
        %v780 = vld [vmem:[#allocation2 + $0x150] sm:$0x80]
        %v781 = vld [vmem:[#allocation2 + $0x158] sm:$0xff]
        %v782 = vld [vmem:[#allocation2 + $0x168] sm:$0x80]
        %v783 = vld [vmem:[#allocation2 + $0x170] sm:$0xff]
        %vm784 = vsmask.f32 256
        %v786 = vshrl.u32 %v752, 16
        %v788 = vrot.slane %v786, 7
        %v790 = vshrl.u32 %v753, 16
        %v792 = vrot.slane %v790, 7
        %v793 = vshll.u32 %v753, 16
        %v795 = vor.u32 %v792, %v793
        %v796 = vsel %vm784, %v788, %v795
        %v798 = vshrl.u32 %v754, 16
        %v800 = vrot.slane %v798, 7
        %v802 = vshrl.u32 %v755, 16
        %v804 = vrot.slane %v802, 7
        %v805 = vshll.u32 %v755, 16
        %v807 = vor.u32 %v804, %v805
        %v808 = vsel %vm784, %v800, %v807
        %v810 = vshrl.u32 %v756, 16
        %v812 = vrot.slane %v810, 7
        %v814 = vshrl.u32 %v757, 16
        %v816 = vrot.slane %v814, 7
        %v817 = vshll.u32 %v757, 16
        %v819 = vor.u32 %v816, %v817
        %v820 = vsel %vm784, %v812, %v819
        %v822 = vshrl.u32 %v758, 16
        %v824 = vrot.slane %v822, 7
        %v826 = vshrl.u32 %v759, 16
        %v828 = vrot.slane %v826, 7
        %v829 = vshll.u32 %v759, 16
        %v831 = vor.u32 %v828, %v829
        %v832 = vsel %vm784, %v824, %v831
        %v834 = vshrl.u32 %v760, 16
        %v836 = vrot.slane %v834, 7
        %v838 = vshrl.u32 %v761, 16
        %v840 = vrot.slane %v838, 7
        %v841 = vshll.u32 %v761, 16
        %v843 = vor.u32 %v840, %v841
        %v844 = vsel %vm784, %v836, %v843
        %v846 = vshrl.u32 %v762, 16
        %v848 = vrot.slane %v846, 7
        %v850 = vshrl.u32 %v763, 16
        %v852 = vrot.slane %v850, 7
        %v853 = vshll.u32 %v763, 16
        %v855 = vor.u32 %v852, %v853
        %v856 = vsel %vm784, %v848, %v855
        %v858 = vshrl.u32 %v764, 16
        %v860 = vrot.slane %v858, 7
        %v862 = vshrl.u32 %v765, 16
        %v864 = vrot.slane %v862, 7
        %v865 = vshll.u32 %v765, 16
        %v867 = vor.u32 %v864, %v865
        %v868 = vsel %vm784, %v860, %v867
        %v870 = vshrl.u32 %v766, 16
        %v872 = vrot.slane %v870, 7
        %v874 = vshrl.u32 %v767, 16
        %v876 = vrot.slane %v874, 7
        %v877 = vshll.u32 %v767, 16
        %v879 = vor.u32 %v876, %v877
        %v880 = vsel %vm784, %v872, %v879
        %v882 = vshrl.u32 %v768, 16
        %v884 = vrot.slane %v882, 7
        %v886 = vshrl.u32 %v769, 16
        %v888 = vrot.slane %v886, 7
        %v889 = vshll.u32 %v769, 16
        %v891 = vor.u32 %v888, %v889
        %v892 = vsel %vm784, %v884, %v891
        %v894 = vshrl.u32 %v770, 16
        %v896 = vrot.slane %v894, 7
        %v898 = vshrl.u32 %v771, 16
        %v900 = vrot.slane %v898, 7
        %v901 = vshll.u32 %v771, 16
        %v903 = vor.u32 %v900, %v901
        %v904 = vsel %vm784, %v896, %v903
        %v906 = vshrl.u32 %v772, 16
        %v908 = vrot.slane %v906, 7
        %v910 = vshrl.u32 %v773, 16
        %v912 = vrot.slane %v910, 7
        %v913 = vshll.u32 %v773, 16
        %v915 = vor.u32 %v912, %v913
        %v916 = vsel %vm784, %v908, %v915
        %v918 = vshrl.u32 %v774, 16
        %v920 = vrot.slane %v918, 7
        %v922 = vshrl.u32 %v775, 16
        %v924 = vrot.slane %v922, 7
        %v925 = vshll.u32 %v775, 16
        %v927 = vor.u32 %v924, %v925
        %v928 = vsel %vm784, %v920, %v927
        %v930 = vshrl.u32 %v776, 16
        %v932 = vrot.slane %v930, 7
        %v934 = vshrl.u32 %v777, 16
        %v936 = vrot.slane %v934, 7
        %v937 = vshll.u32 %v777, 16
        %v939 = vor.u32 %v936, %v937
        %v940 = vsel %vm784, %v932, %v939
        %v942 = vshrl.u32 %v778, 16
        %v944 = vrot.slane %v942, 7
        %v946 = vshrl.u32 %v779, 16
        %v948 = vrot.slane %v946, 7
        %v949 = vshll.u32 %v779, 16
        %v951 = vor.u32 %v948, %v949
        %v952 = vsel %vm784, %v944, %v951
        %v954 = vshrl.u32 %v780, 16
        %v956 = vrot.slane %v954, 7
        %v958 = vshrl.u32 %v781, 16
        %v960 = vrot.slane %v958, 7
        %v961 = vshll.u32 %v781, 16
        %v963 = vor.u32 %v960, %v961
        %v964 = vsel %vm784, %v956, %v963
        %v966 = vshrl.u32 %v782, 16
        %v968 = vrot.slane %v966, 7
        %v970 = vshrl.u32 %v783, 16
        %v972 = vrot.slane %v970, 7
        %v973 = vshll.u32 %v783, 16
        %v975 = vor.u32 %v972, %v973
        %v976 = vsel %vm784, %v968, %v975
        %v977 = vld [vmem:[%s3] sm:$0xf]
        %v978 = vld [vmem:[%s3 + $0x4] sm:$0xf]
        %v979 = vld [vmem:[%s3 + $0x8] sm:$0xf]
        %v980 = vld [vmem:[%s3 + $0xc] sm:$0xf]
        %v981 = vld [vmem:[%s3 + $0x10] sm:$0xf]
        %v982 = vld [vmem:[%s3 + $0x14] sm:$0xf]
        %v983 = vld [vmem:[%s3 + $0x18] sm:$0xf]
        %v984 = vld [vmem:[%s3 + $0x1c] sm:$0xf]
        %s985 = scalar_lea.vmem %s3, 32
        %v986 = vld [vmem:[%s985] sm:$0xf]
        %v987 = vld [vmem:[%s985 + $0x4] sm:$0xf]
        %v988 = vld [vmem:[%s985 + $0x8] sm:$0xf]
        %v989 = vld [vmem:[%s985 + $0xc] sm:$0xf]
        %v990 = vld [vmem:[%s985 + $0x10] sm:$0xf]
        %v991 = vld [vmem:[%s985 + $0x14] sm:$0xf]
        %v992 = vld [vmem:[%s985 + $0x18] sm:$0xf]
        %v993 = vld [vmem:[%s985 + $0x1c] sm:$0xf]
        %v1002 = vunpack.c.l.b16 %v986
        %v1003 = vunpack.c.l.b16 %v987
        %v1004 = vunpack.c.l.b16 %v988
        %v1005 = vunpack.c.l.b16 %v989
        %v1006 = vunpack.c.l.b16 %v990
        %v1007 = vunpack.c.l.b16 %v991
        %v1008 = vunpack.c.l.b16 %v992
        %v1009 = vunpack.c.l.b16 %v993
        %v1010 = vpack.c.b16 %v1003, %v1002
        %v1011 = vpack.c.b16 %v1005, %v1004
        %v1012 = vpack.c.b16 %v1007, %v1006
        %v1013 = vpack.c.b16 %v1009, %v1008
        %v1018 = vsel %vm679, %v753, 0
        %v1020 = vsel %vm679, %v755, 0
        %v1022 = vsel %vm679, %v757, 0
        %v1024 = vsel %vm679, %v759, 0
        %v1026 = vsel %vm679, %v761, 0
        %v1028 = vsel %vm679, %v763, 0
        %v1030 = vsel %vm679, %v765, 0
        %v1032 = vsel %vm679, %v767, 0
        %v1034 = vsel %vm679, %v769, 0
        %v1036 = vsel %vm679, %v771, 0
        %v1038 = vsel %vm679, %v773, 0
        %v1040 = vsel %vm679, %v775, 0
        %v1042 = vsel %vm679, %v777, 0
        %v1044 = vsel %vm679, %v779, 0
        %v1046 = vsel %vm679, %v781, 0
        %v1048 = vsel %vm679, %v783, 0
        %1050 = vmatprep.subr.bf16.mxu0 0
        %1051 = vmatpush1.bf16.msra.mxu0 %v1010
        %1052 = vmatprep.subr.bf16.mxu0 0
        %1053 = vmatpush1.bf16.msra.mxu0 %v1011
        %1054 = vmatprep.subr.bf16.mxu0 0
        %1055 = vmatpush1.bf16.msra.mxu0 %v1012
        %1056 = vmatprep.subr.bf16.mxu0 0
        %1057 = vmatpush1.bf16.msra.mxu0 %v1013
        %1058 = vmatprep.subr.bf16.mxu0 0
        %1059 = vmatpush1.bf16.msra.mxu0 0
        %1060 = vmatprep.subr.bf16.mxu0 0
        %1061 = vmatpush1.bf16.msra.mxu0 0
        %1062 = vmatprep.subr.bf16.mxu0 0
        %1063 = vmatpush1.bf16.msra.mxu0 0
        %1064 = vmatprep.subr.bf16.mxu0 0
        %1065 = vmatpush1.bf16.msra.mxu0 0
        %1066 = vmatprep.subr.bf16.mxu0 0
        %1067 = vmatpush1.bf16.msra.mxu0 0
        %1068 = vmatprep.subr.bf16.mxu0 0
        %1069 = vmatpush1.bf16.msra.mxu0 0
        %1070 = vmatprep.subr.bf16.mxu0 0
        %1071 = vmatpush1.bf16.msra.mxu0 0
        %1072 = vmatprep.subr.bf16.mxu0 0
        %1073 = vmatpush1.bf16.msra.mxu0 0
        %1074 = vmatprep.subr.bf16.mxu0 0
        %1075 = vmatpush1.bf16.msra.mxu0 0
        %1076 = vmatprep.subr.bf16.mxu0 0
        %1077 = vmatpush1.bf16.msra.mxu0 0
        %1078 = vmatprep.subr.bf16.mxu0 0
        %1079 = vmatpush1.bf16.msra.mxu0 0
        %1080 = vmatprep.subr.bf16.mxu0 0
        %1081 = vmatpush1.bf16.msra.mxu0 0
        %1082 = vmatprep.mubr.bf16.mxu0 0
        %1083 = vmatmul.mubr.bf16.gmra.mrb[0].mxu0 %v1018
        %v1084 = vpop.f32.mrb[0].mxu0
        %v1085 = vadd.f32 0.0, %v1084
        %v1086 = vpop.f32.mrb[0].mxu0
        %v1087 = vpop.f32.mrb[0].mxu0
        %v1088 = vadd.f32 0.0, %v1087
        %v1089 = vpop.f32.mrb[0].mxu0
        %1090 = vmatprep.mubr.bf16.mxu0 0
        %1091 = vmatmul.mubr.bf16.gmra.mrb[0].mxu0 %v1020
        %v1092 = vpop.f32.mrb[0].mxu0
        %v1093 = vadd.f32 0.0, %v1092
        %v1094 = vpop.f32.mrb[0].mxu0
        %v1095 = vpop.f32.mrb[0].mxu0
        %v1096 = vadd.f32 0.0, %v1095
        %v1097 = vpop.f32.mrb[0].mxu0
        %1098 = vmatprep.mubr.bf16.mxu0 0
        %1099 = vmatmul.mubr.bf16.gmra.mrb[0].mxu0 %v1022
        %v1100 = vpop.f32.mrb[0].mxu0
        %v1101 = vadd.f32 0.0, %v1100
        %v1102 = vpop.f32.mrb[0].mxu0
        %v1103 = vpop.f32.mrb[0].mxu0
        %v1104 = vadd.f32 0.0, %v1103
        %v1105 = vpop.f32.mrb[0].mxu0
        %1106 = vmatprep.mubr.bf16.mxu0 0
        %1107 = vmatmul.mubr.bf16.gmra.mrb[0].mxu0 %v1024
        %v1108 = vpop.f32.mrb[0].mxu0
        %v1109 = vadd.f32 0.0, %v1108
        %v1110 = vpop.f32.mrb[0].mxu0
        %v1111 = vpop.f32.mrb[0].mxu0
        %v1112 = vadd.f32 0.0, %v1111
        %v1113 = vpop.f32.mrb[0].mxu0
        %1114 = vmatprep.mubr.bf16.mxu0 0
        %1115 = vmatmul.mubr.bf16.gmra.mrb[0].mxu0 %v1026
        %v1116 = vpop.f32.mrb[0].mxu0
        %v1117 = vadd.f32 0.0, %v1116
        %v1118 = vpop.f32.mrb[0].mxu0
        %v1119 = vpop.f32.mrb[0].mxu0
        %v1120 = vadd.f32 0.0, %v1119
        %v1121 = vpop.f32.mrb[0].mxu0
        %1122 = vmatprep.mubr.bf16.mxu0 0
        %1123 = vmatmul.mubr.bf16.gmra.mrb[0].mxu0 %v1028
        %v1124 = vpop.f32.mrb[0].mxu0
        %v1125 = vadd.f32 0.0, %v1124
        %v1126 = vpop.f32.mrb[0].mxu0
        %v1127 = vpop.f32.mrb[0].mxu0
        %v1128 = vadd.f32 0.0, %v1127
        %v1129 = vpop.f32.mrb[0].mxu0
        %1130 = vmatprep.mubr.bf16.mxu0 0
        %1131 = vmatmul.mubr.bf16.gmra.mrb[0].mxu0 %v1030
        %v1132 = vpop.f32.mrb[0].mxu0
        %v1133 = vadd.f32 0.0, %v1132
        %v1134 = vpop.f32.mrb[0].mxu0
        %v1135 = vpop.f32.mrb[0].mxu0
        %v1136 = vadd.f32 0.0, %v1135
        %v1137 = vpop.f32.mrb[0].mxu0
        %1138 = vmatprep.mubr.bf16.mxu0 0
        %1139 = vmatmul.mubr.bf16.gmra.mrb[0].mxu0 %v1032
        %v1140 = vpop.f32.mrb[0].mxu0
        %v1141 = vadd.f32 0.0, %v1140
        %v1142 = vpop.f32.mrb[0].mxu0
        %v1143 = vpop.f32.mrb[0].mxu0
        %v1144 = vadd.f32 0.0, %v1143
        %v1145 = vpop.f32.mrb[0].mxu0
        %1146 = vmatprep.mubr.bf16.mxu0 0
        %1147 = vmatmul.mubr.bf16.gmra.mrb[0].mxu0 %v1034
        %v1148 = vpop.f32.mrb[0].mxu0
        %v1149 = vadd.f32 0.0, %v1148
        %v1150 = vpop.f32.mrb[0].mxu0
        %v1151 = vpop.f32.mrb[0].mxu0
        %v1152 = vadd.f32 0.0, %v1151
        %v1153 = vpop.f32.mrb[0].mxu0
        %1154 = vmatprep.mubr.bf16.mxu0 0
        %1155 = vmatmul.mubr.bf16.gmra.mrb[0].mxu0 %v1036
        %v1156 = vpop.f32.mrb[0].mxu0
        %v1157 = vadd.f32 0.0, %v1156
        %v1158 = vpop.f32.mrb[0].mxu0
        %v1159 = vpop.f32.mrb[0].mxu0
        %v1160 = vadd.f32 0.0, %v1159
        %v1161 = vpop.f32.mrb[0].mxu0
        %1162 = vmatprep.mubr.bf16.mxu0 0
        %1163 = vmatmul.mubr.bf16.gmra.mrb[0].mxu0 %v1038
        %v1164 = vpop.f32.mrb[0].mxu0
        %v1165 = vadd.f32 0.0, %v1164
        %v1166 = vpop.f32.mrb[0].mxu0
        %v1167 = vpop.f32.mrb[0].mxu0
        %v1168 = vadd.f32 0.0, %v1167
        %v1169 = vpop.f32.mrb[0].mxu0
        %1170 = vmatprep.mubr.bf16.mxu0 0
        %1171 = vmatmul.mubr.bf16.gmra.mrb[0].mxu0 %v1040
        %v1172 = vpop.f32.mrb[0].mxu0
        %v1173 = vadd.f32 0.0, %v1172
        %v1174 = vpop.f32.mrb[0].mxu0
        %v1175 = vpop.f32.mrb[0].mxu0
        %v1176 = vadd.f32 0.0, %v1175
        %v1177 = vpop.f32.mrb[0].mxu0
        %1178 = vmatprep.mubr.bf16.mxu0 0
        %1179 = vmatmul.mubr.bf16.gmra.mrb[0].mxu0 %v1042
        %v1180 = vpop.f32.mrb[0].mxu0
        %v1181 = vadd.f32 0.0, %v1180
        %v1182 = vpop.f32.mrb[0].mxu0
        %v1183 = vpop.f32.mrb[0].mxu0
        %v1184 = vadd.f32 0.0, %v1183
        %v1185 = vpop.f32.mrb[0].mxu0
        %1186 = vmatprep.mubr.bf16.mxu0 0
        %1187 = vmatmul.mubr.bf16.gmra.mrb[0].mxu0 %v1044
        %v1188 = vpop.f32.mrb[0].mxu0
        %v1189 = vadd.f32 0.0, %v1188
        %v1190 = vpop.f32.mrb[0].mxu0
        %v1191 = vpop.f32.mrb[0].mxu0
        %v1192 = vadd.f32 0.0, %v1191
        %v1193 = vpop.f32.mrb[0].mxu0
        %1194 = vmatprep.mubr.bf16.mxu0 0
        %1195 = vmatmul.mubr.bf16.gmra.mrb[0].mxu0 %v1046
        %v1196 = vpop.f32.mrb[0].mxu0
        %v1197 = vadd.f32 0.0, %v1196
        %v1198 = vpop.f32.mrb[0].mxu0
        %v1199 = vpop.f32.mrb[0].mxu0
        %v1200 = vadd.f32 0.0, %v1199
        %v1201 = vpop.f32.mrb[0].mxu0
        %1202 = vmatprep.mubr.bf16.mxu0 0
        %1203 = vmatmul.mubr.bf16.gmra.mrb[0].mxu0 %v1048
        %v1204 = vpop.f32.mrb[0].mxu0
        %v1205 = vadd.f32 0.0, %v1204
        %v1206 = vpop.f32.mrb[0].mxu0
        %v1207 = vpop.f32.mrb[0].mxu0
        %v1208 = vadd.f32 0.0, %v1207
        %v1209 = vpop.f32.mrb[0].mxu0
        %1210 = vdwg.mxu0
        %v1219 = vunpack.c.l.b16 %v977
        %v1220 = vunpack.c.l.b16 %v978
        %v1221 = vunpack.c.l.b16 %v979
        %v1222 = vunpack.c.l.b16 %v980
        %v1223 = vunpack.c.l.b16 %v981
        %v1224 = vunpack.c.l.b16 %v982
        %v1225 = vunpack.c.l.b16 %v983
        %v1226 = vunpack.c.l.b16 %v984
        %v1227 = vpack.c.b16 %v1220, %v1219
        %v1228 = vpack.c.b16 %v1222, %v1221
        %v1229 = vpack.c.b16 %v1224, %v1223
        %v1230 = vpack.c.b16 %v1226, %v1225
        %v1236 = vsel %vm679, %v796, 0
        %v1239 = vsel %vm679, %v808, 0
        %v1242 = vsel %vm679, %v820, 0
        %v1245 = vsel %vm679, %v832, 0
        %v1248 = vsel %vm679, %v844, 0
        %v1251 = vsel %vm679, %v856, 0
        %v1254 = vsel %vm679, %v868, 0
        %v1257 = vsel %vm679, %v880, 0
        %v1260 = vsel %vm679, %v892, 0
        %v1263 = vsel %vm679, %v904, 0
        %v1266 = vsel %vm679, %v916, 0
        %v1269 = vsel %vm679, %v928, 0
        %v1272 = vsel %vm679, %v940, 0
        %v1275 = vsel %vm679, %v952, 0
        %v1278 = vsel %vm679, %v964, 0
        %v1281 = vsel %vm679, %v976, 0
        %1283 = vmatprep.subr.bf16.mxu0 0
        %1284 = vmatpush1.bf16.msra.mxu0 %v1227
        %1285 = vmatprep.subr.bf16.mxu0 0
        %1286 = vmatpush1.bf16.msra.mxu0 %v1228
        %1287 = vmatprep.subr.bf16.mxu0 0
        %1288 = vmatpush1.bf16.msra.mxu0 %v1229
        %1289 = vmatprep.subr.bf16.mxu0 0
        %1290 = vmatpush1.bf16.msra.mxu0 %v1230
        %1291 = vmatprep.subr.bf16.mxu0 0
        %1292 = vmatpush1.bf16.msra.mxu0 0
        %1293 = vmatprep.subr.bf16.mxu0 0
        %1294 = vmatpush1.bf16.msra.mxu0 0
        %1295 = vmatprep.subr.bf16.mxu0 0
        %1296 = vmatpush1.bf16.msra.mxu0 0
        %1297 = vmatprep.subr.bf16.mxu0 0
        %1298 = vmatpush1.bf16.msra.mxu0 0
        %1299 = vmatprep.subr.bf16.mxu0 0
        %1300 = vmatpush1.bf16.msra.mxu0 0
        %1301 = vmatprep.subr.bf16.mxu0 0
        %1302 = vmatpush1.bf16.msra.mxu0 0
        %1303 = vmatprep.subr.bf16.mxu0 0
        %1304 = vmatpush1.bf16.msra.mxu0 0
        %1305 = vmatprep.subr.bf16.mxu0 0
        %1306 = vmatpush1.bf16.msra.mxu0 0
        %1307 = vmatprep.subr.bf16.mxu0 0
        %1308 = vmatpush1.bf16.msra.mxu0 0
        %1309 = vmatprep.subr.bf16.mxu0 0
        %1310 = vmatpush1.bf16.msra.mxu0 0
        %1311 = vmatprep.subr.bf16.mxu0 0
        %1312 = vmatpush1.bf16.msra.mxu0 0
        %1313 = vmatprep.subr.bf16.mxu0 0
        %1314 = vmatpush1.bf16.msra.mxu0 0
        %1315 = vmatprep.mubr.bf16.mxu0 0
        %1316 = vmatmul.mubr.bf16.gmra.mrb[0].mxu0 %v1236
        %v1317 = vpop.f32.mrb[0].mxu0
        %v1318 = vadd.f32 %v1085, %v1317
        %v1319 = vpop.f32.mrb[0].mxu0
        %v1320 = vpop.f32.mrb[0].mxu0
        %v1321 = vadd.f32 %v1088, %v1320
        %v1322 = vpop.f32.mrb[0].mxu0
        %1323 = vmatprep.mubr.bf16.mxu0 0
        %1324 = vmatmul.mubr.bf16.gmra.mrb[0].mxu0 %v1239
        %v1325 = vpop.f32.mrb[0].mxu0
        %v1326 = vadd.f32 %v1093, %v1325
        %v1327 = vpop.f32.mrb[0].mxu0
        %v1328 = vpop.f32.mrb[0].mxu0
        %v1329 = vadd.f32 %v1096, %v1328
        %v1330 = vpop.f32.mrb[0].mxu0
        %1331 = vmatprep.mubr.bf16.mxu0 0
        %1332 = vmatmul.mubr.bf16.gmra.mrb[0].mxu0 %v1242
        %v1333 = vpop.f32.mrb[0].mxu0
        %v1334 = vadd.f32 %v1101, %v1333
        %v1335 = vpop.f32.mrb[0].mxu0
        %v1336 = vpop.f32.mrb[0].mxu0
        %v1337 = vadd.f32 %v1104, %v1336
        %v1338 = vpop.f32.mrb[0].mxu0
        %1339 = vmatprep.mubr.bf16.mxu0 0
        %1340 = vmatmul.mubr.bf16.gmra.mrb[0].mxu0 %v1245
        %v1341 = vpop.f32.mrb[0].mxu0
        %v1342 = vadd.f32 %v1109, %v1341
        %v1343 = vpop.f32.mrb[0].mxu0
        %v1344 = vpop.f32.mrb[0].mxu0
        %v1345 = vadd.f32 %v1112, %v1344
        %v1346 = vpop.f32.mrb[0].mxu0
        %1347 = vmatprep.mubr.bf16.mxu0 0
        %1348 = vmatmul.mubr.bf16.gmra.mrb[0].mxu0 %v1248
        %v1349 = vpop.f32.mrb[0].mxu0
        %v1350 = vadd.f32 %v1117, %v1349
        %v1351 = vpop.f32.mrb[0].mxu0
        %v1352 = vpop.f32.mrb[0].mxu0
        %v1353 = vadd.f32 %v1120, %v1352
        %v1354 = vpop.f32.mrb[0].mxu0
        %1355 = vmatprep.mubr.bf16.mxu0 0
        %1356 = vmatmul.mubr.bf16.gmra.mrb[0].mxu0 %v1251
        %v1357 = vpop.f32.mrb[0].mxu0
        %v1358 = vadd.f32 %v1125, %v1357
        %v1359 = vpop.f32.mrb[0].mxu0
        %v1360 = vpop.f32.mrb[0].mxu0
        %v1361 = vadd.f32 %v1128, %v1360
        %v1362 = vpop.f32.mrb[0].mxu0
        %1363 = vmatprep.mubr.bf16.mxu0 0
        %1364 = vmatmul.mubr.bf16.gmra.mrb[0].mxu0 %v1254
        %v1365 = vpop.f32.mrb[0].mxu0
        %v1366 = vadd.f32 %v1133, %v1365
        %v1367 = vpop.f32.mrb[0].mxu0
        %v1368 = vpop.f32.mrb[0].mxu0
        %v1369 = vadd.f32 %v1136, %v1368
        %v1370 = vpop.f32.mrb[0].mxu0
        %1371 = vmatprep.mubr.bf16.mxu0 0
        %1372 = vmatmul.mubr.bf16.gmra.mrb[0].mxu0 %v1257
        %v1373 = vpop.f32.mrb[0].mxu0
        %v1374 = vadd.f32 %v1141, %v1373
        %v1375 = vpop.f32.mrb[0].mxu0
        %v1376 = vpop.f32.mrb[0].mxu0
        %v1377 = vadd.f32 %v1144, %v1376
        %v1378 = vpop.f32.mrb[0].mxu0
        %1379 = vmatprep.mubr.bf16.mxu0 0
        %1380 = vmatmul.mubr.bf16.gmra.mrb[0].mxu0 %v1260
        %v1381 = vpop.f32.mrb[0].mxu0
        %v1382 = vadd.f32 %v1149, %v1381
        %v1383 = vpop.f32.mrb[0].mxu0
        %v1384 = vpop.f32.mrb[0].mxu0
        %v1385 = vadd.f32 %v1152, %v1384
        %v1386 = vpop.f32.mrb[0].mxu0
        %1387 = vmatprep.mubr.bf16.mxu0 0
        %1388 = vmatmul.mubr.bf16.gmra.mrb[0].mxu0 %v1263
        %v1389 = vpop.f32.mrb[0].mxu0
        %v1390 = vadd.f32 %v1157, %v1389
        %v1391 = vpop.f32.mrb[0].mxu0
        %v1392 = vpop.f32.mrb[0].mxu0
        %v1393 = vadd.f32 %v1160, %v1392
        %v1394 = vpop.f32.mrb[0].mxu0
        %1395 = vmatprep.mubr.bf16.mxu0 0
        %1396 = vmatmul.mubr.bf16.gmra.mrb[0].mxu0 %v1266
        %v1397 = vpop.f32.mrb[0].mxu0
        %v1398 = vadd.f32 %v1165, %v1397
        %v1399 = vpop.f32.mrb[0].mxu0
        %v1400 = vpop.f32.mrb[0].mxu0
        %v1401 = vadd.f32 %v1168, %v1400
        %v1402 = vpop.f32.mrb[0].mxu0
        %1403 = vmatprep.mubr.bf16.mxu0 0
        %1404 = vmatmul.mubr.bf16.gmra.mrb[0].mxu0 %v1269
        %v1405 = vpop.f32.mrb[0].mxu0
        %v1406 = vadd.f32 %v1173, %v1405
        %v1407 = vpop.f32.mrb[0].mxu0
        %v1408 = vpop.f32.mrb[0].mxu0
        %v1409 = vadd.f32 %v1176, %v1408
        %v1410 = vpop.f32.mrb[0].mxu0
        %1411 = vmatprep.mubr.bf16.mxu0 0
        %1412 = vmatmul.mubr.bf16.gmra.mrb[0].mxu0 %v1272
        %v1413 = vpop.f32.mrb[0].mxu0
        %v1414 = vadd.f32 %v1181, %v1413
        %v1415 = vpop.f32.mrb[0].mxu0
        %v1416 = vpop.f32.mrb[0].mxu0
        %v1417 = vadd.f32 %v1184, %v1416
        %v1418 = vpop.f32.mrb[0].mxu0
        %1419 = vmatprep.mubr.bf16.mxu0 0
        %1420 = vmatmul.mubr.bf16.gmra.mrb[0].mxu0 %v1275
        %v1421 = vpop.f32.mrb[0].mxu0
        %v1422 = vadd.f32 %v1189, %v1421
        %v1423 = vpop.f32.mrb[0].mxu0
        %v1424 = vpop.f32.mrb[0].mxu0
        %v1425 = vadd.f32 %v1192, %v1424
        %v1426 = vpop.f32.mrb[0].mxu0
        %1427 = vmatprep.mubr.bf16.mxu0 0
        %1428 = vmatmul.mubr.bf16.gmra.mrb[0].mxu0 %v1278
        %v1429 = vpop.f32.mrb[0].mxu0
        %v1430 = vadd.f32 %v1197, %v1429
        %v1431 = vpop.f32.mrb[0].mxu0
        %v1432 = vpop.f32.mrb[0].mxu0
        %v1433 = vadd.f32 %v1200, %v1432
        %v1434 = vpop.f32.mrb[0].mxu0
        %1435 = vmatprep.mubr.bf16.mxu0 0
        %1436 = vmatmul.mubr.bf16.gmra.mrb[0].mxu0 %v1281
        %v1437 = vpop.f32.mrb[0].mxu0
        %v1438 = vadd.f32 %v1205, %v1437
        %v1439 = vpop.f32.mrb[0].mxu0
        %v1440 = vpop.f32.mrb[0].mxu0
        %v1441 = vadd.f32 %v1208, %v1440
        %v1442 = vpop.f32.mrb[0].mxu0
        %1443 = vdwg.mxu0
        %v1444 = vld [vmem:[#allocation2 + $0x8] sm:$0xff]
        %v1445 = vld [vmem:[#allocation2 + $0x10] sm:$0x1]
        %v1446 = vld [vmem:[#allocation2 + $0x20] sm:$0xff]
        %v1447 = vld [vmem:[#allocation2 + $0x28] sm:$0x1]
        %v1448 = vld [vmem:[#allocation2 + $0x38] sm:$0xff]
        %v1449 = vld [vmem:[#allocation2 + $0x40] sm:$0x1]
        %v1450 = vld [vmem:[#allocation2 + $0x50] sm:$0xff]
        %v1451 = vld [vmem:[#allocation2 + $0x58] sm:$0x1]
        %v1452 = vld [vmem:[#allocation2 + $0x68] sm:$0xff]
        %v1453 = vld [vmem:[#allocation2 + $0x70] sm:$0x1]
        %v1454 = vld [vmem:[#allocation2 + $0x80] sm:$0xff]
        %v1455 = vld [vmem:[#allocation2 + $0x88] sm:$0x1]
        %v1456 = vld [vmem:[#allocation2 + $0x98] sm:$0xff]
        %v1457 = vld [vmem:[#allocation2 + $0xa0] sm:$0x1]
        %v1458 = vld [vmem:[#allocation2 + $0xb0] sm:$0xff]
        %v1459 = vld [vmem:[#allocation2 + $0xb8] sm:$0x1]
        %v1460 = vld [vmem:[#allocation2 + $0xc8] sm:$0xff]
        %v1461 = vld [vmem:[#allocation2 + $0xd0] sm:$0x1]
        %v1462 = vld [vmem:[#allocation2 + $0xe0] sm:$0xff]
        %v1463 = vld [vmem:[#allocation2 + $0xe8] sm:$0x1]
        %v1464 = vld [vmem:[#allocation2 + $0xf8] sm:$0xff]
        %v1465 = vld [vmem:[#allocation2 + $0x100] sm:$0x1]
        %v1466 = vld [vmem:[#allocation2 + $0x110] sm:$0xff]
        %v1467 = vld [vmem:[#allocation2 + $0x118] sm:$0x1]
        %v1468 = vld [vmem:[#allocation2 + $0x128] sm:$0xff]
        %v1469 = vld [vmem:[#allocation2 + $0x130] sm:$0x1]
        %v1470 = vld [vmem:[#allocation2 + $0x140] sm:$0xff]
        %v1471 = vld [vmem:[#allocation2 + $0x148] sm:$0x1]
        %v1472 = vld [vmem:[#allocation2 + $0x158] sm:$0xff]
        %v1473 = vld [vmem:[#allocation2 + $0x160] sm:$0x1]
        %v1474 = vld [vmem:[#allocation2 + $0x170] sm:$0xff]
        %v1475 = vld [vmem:[#allocation2 + $0x178] sm:$0x1]
        %vm1476 = vsmask.f32 7424
        %v1478 = vshrl.u32 %v1444, 16
        %v1480 = vshll.u32 %v1444, 16
        %v1482 = vrot.slane %v1480, 1
        %v1483 = vor.u32 %v1478, %v1482
        %v1485 = vshll.u32 %v1445, 16
        %v1487 = vrot.slane %v1485, 1
        %v1488 = vsel %vm1476, %v1483, %v1487
        %v1490 = vshrl.u32 %v1446, 16
        %v1492 = vshll.u32 %v1446, 16
        %v1494 = vrot.slane %v1492, 1
        %v1495 = vor.u32 %v1490, %v1494
        %v1497 = vshll.u32 %v1447, 16
        %v1499 = vrot.slane %v1497, 1
        %v1500 = vsel %vm1476, %v1495, %v1499
        %v1502 = vshrl.u32 %v1448, 16
        %v1504 = vshll.u32 %v1448, 16
        %v1506 = vrot.slane %v1504, 1
        %v1507 = vor.u32 %v1502, %v1506
        %v1509 = vshll.u32 %v1449, 16
        %v1511 = vrot.slane %v1509, 1
        %v1512 = vsel %vm1476, %v1507, %v1511
        %v1514 = vshrl.u32 %v1450, 16
        %v1516 = vshll.u32 %v1450, 16
        %v1518 = vrot.slane %v1516, 1
        %v1519 = vor.u32 %v1514, %v1518
        %v1521 = vshll.u32 %v1451, 16
        %v1523 = vrot.slane %v1521, 1
        %v1524 = vsel %vm1476, %v1519, %v1523
        %v1526 = vshrl.u32 %v1452, 16
        %v1528 = vshll.u32 %v1452, 16
        %v1530 = vrot.slane %v1528, 1
        %v1531 = vor.u32 %v1526, %v1530
        %v1533 = vshll.u32 %v1453, 16
        %v1535 = vrot.slane %v1533, 1
        %v1536 = vsel %vm1476, %v1531, %v1535
        %v1538 = vshrl.u32 %v1454, 16
        %v1540 = vshll.u32 %v1454, 16
        %v1542 = vrot.slane %v1540, 1
        %v1543 = vor.u32 %v1538, %v1542
        %v1545 = vshll.u32 %v1455, 16
        %v1547 = vrot.slane %v1545, 1
        %v1548 = vsel %vm1476, %v1543, %v1547
        %v1550 = vshrl.u32 %v1456, 16
        %v1552 = vshll.u32 %v1456, 16
        %v1554 = vrot.slane %v1552, 1
        %v1555 = vor.u32 %v1550, %v1554
        %v1557 = vshll.u32 %v1457, 16
        %v1559 = vrot.slane %v1557, 1
        %v1560 = vsel %vm1476, %v1555, %v1559
        %v1562 = vshrl.u32 %v1458, 16
        %v1564 = vshll.u32 %v1458, 16
        %v1566 = vrot.slane %v1564, 1
        %v1567 = vor.u32 %v1562, %v1566
        %v1569 = vshll.u32 %v1459, 16
        %v1571 = vrot.slane %v1569, 1
        %v1572 = vsel %vm1476, %v1567, %v1571
        %v1574 = vshrl.u32 %v1460, 16
        %v1576 = vshll.u32 %v1460, 16
        %v1578 = vrot.slane %v1576, 1
        %v1579 = vor.u32 %v1574, %v1578
        %v1581 = vshll.u32 %v1461, 16
        %v1583 = vrot.slane %v1581, 1
        %v1584 = vsel %vm1476, %v1579, %v1583
        %v1586 = vshrl.u32 %v1462, 16
        %v1588 = vshll.u32 %v1462, 16
        %v1590 = vrot.slane %v1588, 1
        %v1591 = vor.u32 %v1586, %v1590
        %v1593 = vshll.u32 %v1463, 16
        %v1595 = vrot.slane %v1593, 1
        %v1596 = vsel %vm1476, %v1591, %v1595
        %v1598 = vshrl.u32 %v1464, 16
        %v1600 = vshll.u32 %v1464, 16
        %v1602 = vrot.slane %v1600, 1
        %v1603 = vor.u32 %v1598, %v1602
        %v1605 = vshll.u32 %v1465, 16
        %v1607 = vrot.slane %v1605, 1
        %v1608 = vsel %vm1476, %v1603, %v1607
        %v1610 = vshrl.u32 %v1466, 16
        %v1612 = vshll.u32 %v1466, 16
        %v1614 = vrot.slane %v1612, 1
        %v1615 = vor.u32 %v1610, %v1614
        %v1617 = vshll.u32 %v1467, 16
        %v1619 = vrot.slane %v1617, 1
        %v1620 = vsel %vm1476, %v1615, %v1619
        %v1622 = vshrl.u32 %v1468, 16
        %v1624 = vshll.u32 %v1468, 16
        %v1626 = vrot.slane %v1624, 1
        %v1627 = vor.u32 %v1622, %v1626
        %v1629 = vshll.u32 %v1469, 16
        %v1631 = vrot.slane %v1629, 1
        %v1632 = vsel %vm1476, %v1627, %v1631
        %v1634 = vshrl.u32 %v1470, 16
        %v1636 = vshll.u32 %v1470, 16
        %v1638 = vrot.slane %v1636, 1
        %v1639 = vor.u32 %v1634, %v1638
        %v1641 = vshll.u32 %v1471, 16
        %v1643 = vrot.slane %v1641, 1
        %v1644 = vsel %vm1476, %v1639, %v1643
        %v1646 = vshrl.u32 %v1472, 16
        %v1648 = vshll.u32 %v1472, 16
        %v1650 = vrot.slane %v1648, 1
        %v1651 = vor.u32 %v1646, %v1650
        %v1653 = vshll.u32 %v1473, 16
        %v1655 = vrot.slane %v1653, 1
        %v1656 = vsel %vm1476, %v1651, %v1655
        %v1658 = vshrl.u32 %v1474, 16
        %v1660 = vshll.u32 %v1474, 16
        %v1662 = vrot.slane %v1660, 1
        %v1663 = vor.u32 %v1658, %v1662
        %v1665 = vshll.u32 %v1475, 16
        %v1667 = vrot.slane %v1665, 1
        %v1668 = vsel %vm1476, %v1663, %v1667
        %s1669 = scalar_lea.vmem %s3, 64
        %v1670 = vld [vmem:[%s1669] sm:$0xf]
        %v1671 = vld [vmem:[%s1669 + $0x4] sm:$0xf]
        %v1672 = vld [vmem:[%s1669 + $0x8] sm:$0xf]
        %v1673 = vld [vmem:[%s1669 + $0xc] sm:$0xf]
        %v1674 = vld [vmem:[%s1669 + $0x10] sm:$0xf]
        %v1675 = vld [vmem:[%s1669 + $0x14] sm:$0xf]
        %v1676 = vld [vmem:[%s1669 + $0x18] sm:$0xf]
        %v1677 = vld [vmem:[%s1669 + $0x1c] sm:$0xf]
        %v1686 = vunpack.c.l.b16 %v1670
        %v1687 = vunpack.c.l.b16 %v1671
        %v1688 = vunpack.c.l.b16 %v1672
        %v1689 = vunpack.c.l.b16 %v1673
        %v1690 = vunpack.c.l.b16 %v1674
        %v1691 = vunpack.c.l.b16 %v1675
        %v1692 = vunpack.c.l.b16 %v1676
        %v1693 = vunpack.c.l.b16 %v1677
        %v1694 = vpack.c.b16 %v1687, %v1686
        %v1695 = vpack.c.b16 %v1689, %v1688
        %v1696 = vpack.c.b16 %v1691, %v1690
        %v1697 = vpack.c.b16 %v1693, %v1692
        %v1703 = vsel %vm679, %v1488, 0
        %v1706 = vsel %vm679, %v1500, 0
        %v1709 = vsel %vm679, %v1512, 0
        %v1712 = vsel %vm679, %v1524, 0
        %v1715 = vsel %vm679, %v1536, 0
        %v1718 = vsel %vm679, %v1548, 0
        %v1721 = vsel %vm679, %v1560, 0
        %v1724 = vsel %vm679, %v1572, 0
        %v1727 = vsel %vm679, %v1584, 0
        %v1730 = vsel %vm679, %v1596, 0
        %v1733 = vsel %vm679, %v1608, 0
        %v1736 = vsel %vm679, %v1620, 0
        %v1739 = vsel %vm679, %v1632, 0
        %v1742 = vsel %vm679, %v1644, 0
        %v1745 = vsel %vm679, %v1656, 0
        %v1748 = vsel %vm679, %v1668, 0
        %1750 = vmatprep.subr.bf16.mxu0 0
        %1751 = vmatpush1.bf16.msra.mxu0 %v1694
        %1752 = vmatprep.subr.bf16.mxu0 0
        %1753 = vmatpush1.bf16.msra.mxu0 %v1695
        %1754 = vmatprep.subr.bf16.mxu0 0
        %1755 = vmatpush1.bf16.msra.mxu0 %v1696
        %1756 = vmatprep.subr.bf16.mxu0 0
        %1757 = vmatpush1.bf16.msra.mxu0 %v1697
        %1758 = vmatprep.subr.bf16.mxu0 0
        %1759 = vmatpush1.bf16.msra.mxu0 0
        %1760 = vmatprep.subr.bf16.mxu0 0
        %1761 = vmatpush1.bf16.msra.mxu0 0
        %1762 = vmatprep.subr.bf16.mxu0 0
        %1763 = vmatpush1.bf16.msra.mxu0 0
        %1764 = vmatprep.subr.bf16.mxu0 0
        %1765 = vmatpush1.bf16.msra.mxu0 0
        %1766 = vmatprep.subr.bf16.mxu0 0
        %1767 = vmatpush1.bf16.msra.mxu0 0
        %1768 = vmatprep.subr.bf16.mxu0 0
        %1769 = vmatpush1.bf16.msra.mxu0 0
        %1770 = vmatprep.subr.bf16.mxu0 0
        %1771 = vmatpush1.bf16.msra.mxu0 0
        %1772 = vmatprep.subr.bf16.mxu0 0
        %1773 = vmatpush1.bf16.msra.mxu0 0
        %1774 = vmatprep.subr.bf16.mxu0 0
        %1775 = vmatpush1.bf16.msra.mxu0 0
        %1776 = vmatprep.subr.bf16.mxu0 0
        %1777 = vmatpush1.bf16.msra.mxu0 0
        %1778 = vmatprep.subr.bf16.mxu0 0
        %1779 = vmatpush1.bf16.msra.mxu0 0
        %1780 = vmatprep.subr.bf16.mxu0 0
        %1781 = vmatpush1.bf16.msra.mxu0 0
        %1782 = vmatprep.mubr.bf16.mxu0 0
        %1783 = vmatmul.mubr.bf16.gmra.mrb[0].mxu0 %v1703
        %v1784 = vpop.f32.mrb[0].mxu0
        %v1785 = vadd.f32 0.0, %v1784
        %v1786 = vpop.f32.mrb[0].mxu0
        %v1787 = vpop.f32.mrb[0].mxu0
        %v1788 = vadd.f32 0.0, %v1787
        %v1789 = vpop.f32.mrb[0].mxu0
        %1790 = vmatprep.mubr.bf16.mxu0 0
        %1791 = vmatmul.mubr.bf16.gmra.mrb[0].mxu0 %v1706
        %v1792 = vpop.f32.mrb[0].mxu0
        %v1793 = vadd.f32 0.0, %v1792
        %v1794 = vpop.f32.mrb[0].mxu0
        %v1795 = vpop.f32.mrb[0].mxu0
        %v1796 = vadd.f32 0.0, %v1795
        %v1797 = vpop.f32.mrb[0].mxu0
        %1798 = vmatprep.mubr.bf16.mxu0 0
        %1799 = vmatmul.mubr.bf16.gmra.mrb[0].mxu0 %v1709
        %v1800 = vpop.f32.mrb[0].mxu0
        %v1801 = vadd.f32 0.0, %v1800
        %v1802 = vpop.f32.mrb[0].mxu0
        %v1803 = vpop.f32.mrb[0].mxu0
        %v1804 = vadd.f32 0.0, %v1803
        %v1805 = vpop.f32.mrb[0].mxu0
        %1806 = vmatprep.mubr.bf16.mxu0 0
        %1807 = vmatmul.mubr.bf16.gmra.mrb[0].mxu0 %v1712
        %v1808 = vpop.f32.mrb[0].mxu0
        %v1809 = vadd.f32 0.0, %v1808
        %v1810 = vpop.f32.mrb[0].mxu0
        %v1811 = vpop.f32.mrb[0].mxu0
        %v1812 = vadd.f32 0.0, %v1811
        %v1813 = vpop.f32.mrb[0].mxu0
        %1814 = vmatprep.mubr.bf16.mxu0 0
        %1815 = vmatmul.mubr.bf16.gmra.mrb[0].mxu0 %v1715
        %v1816 = vpop.f32.mrb[0].mxu0
        %v1817 = vadd.f32 0.0, %v1816
        %v1818 = vpop.f32.mrb[0].mxu0
        %v1819 = vpop.f32.mrb[0].mxu0
        %v1820 = vadd.f32 0.0, %v1819
        %v1821 = vpop.f32.mrb[0].mxu0
        %1822 = vmatprep.mubr.bf16.mxu0 0
        %1823 = vmatmul.mubr.bf16.gmra.mrb[0].mxu0 %v1718
        %v1824 = vpop.f32.mrb[0].mxu0
        %v1825 = vadd.f32 0.0, %v1824
        %v1826 = vpop.f32.mrb[0].mxu0
        %v1827 = vpop.f32.mrb[0].mxu0
        %v1828 = vadd.f32 0.0, %v1827
        %v1829 = vpop.f32.mrb[0].mxu0
        %1830 = vmatprep.mubr.bf16.mxu0 0
        %1831 = vmatmul.mubr.bf16.gmra.mrb[0].mxu0 %v1721
        %v1832 = vpop.f32.mrb[0].mxu0
        %v1833 = vadd.f32 0.0, %v1832
        %v1834 = vpop.f32.mrb[0].mxu0
        %v1835 = vpop.f32.mrb[0].mxu0
        %v1836 = vadd.f32 0.0, %v1835
        %v1837 = vpop.f32.mrb[0].mxu0
        %1838 = vmatprep.mubr.bf16.mxu0 0
        %1839 = vmatmul.mubr.bf16.gmra.mrb[0].mxu0 %v1724
        %v1840 = vpop.f32.mrb[0].mxu0
        %v1841 = vadd.f32 0.0, %v1840
        %v1842 = vpop.f32.mrb[0].mxu0
        %v1843 = vpop.f32.mrb[0].mxu0
        %v1844 = vadd.f32 0.0, %v1843
        %v1845 = vpop.f32.mrb[0].mxu0
        %1846 = vmatprep.mubr.bf16.mxu0 0
        %1847 = vmatmul.mubr.bf16.gmra.mrb[0].mxu0 %v1727
        %v1848 = vpop.f32.mrb[0].mxu0
        %v1849 = vadd.f32 0.0, %v1848
        %v1850 = vpop.f32.mrb[0].mxu0
        %v1851 = vpop.f32.mrb[0].mxu0
        %v1852 = vadd.f32 0.0, %v1851
        %v1853 = vpop.f32.mrb[0].mxu0
        %1854 = vmatprep.mubr.bf16.mxu0 0
        %1855 = vmatmul.mubr.bf16.gmra.mrb[0].mxu0 %v1730
        %v1856 = vpop.f32.mrb[0].mxu0
        %v1857 = vadd.f32 0.0, %v1856
        %v1858 = vpop.f32.mrb[0].mxu0
        %v1859 = vpop.f32.mrb[0].mxu0
        %v1860 = vadd.f32 0.0, %v1859
        %v1861 = vpop.f32.mrb[0].mxu0
        %1862 = vmatprep.mubr.bf16.mxu0 0
        %1863 = vmatmul.mubr.bf16.gmra.mrb[0].mxu0 %v1733
        %v1864 = vpop.f32.mrb[0].mxu0
        %v1865 = vadd.f32 0.0, %v1864
        %v1866 = vpop.f32.mrb[0].mxu0
        %v1867 = vpop.f32.mrb[0].mxu0
        %v1868 = vadd.f32 0.0, %v1867
        %v1869 = vpop.f32.mrb[0].mxu0
        %1870 = vmatprep.mubr.bf16.mxu0 0
        %1871 = vmatmul.mubr.bf16.gmra.mrb[0].mxu0 %v1736
        %v1872 = vpop.f32.mrb[0].mxu0
        %v1873 = vadd.f32 0.0, %v1872
        %v1874 = vpop.f32.mrb[0].mxu0
        %v1875 = vpop.f32.mrb[0].mxu0
        %v1876 = vadd.f32 0.0, %v1875
        %v1877 = vpop.f32.mrb[0].mxu0
        %1878 = vmatprep.mubr.bf16.mxu0 0
        %1879 = vmatmul.mubr.bf16.gmra.mrb[0].mxu0 %v1739
        %v1880 = vpop.f32.mrb[0].mxu0
        %v1881 = vadd.f32 0.0, %v1880
        %v1882 = vpop.f32.mrb[0].mxu0
        %v1883 = vpop.f32.mrb[0].mxu0
        %v1884 = vadd.f32 0.0, %v1883
        %v1885 = vpop.f32.mrb[0].mxu0
        %1886 = vmatprep.mubr.bf16.mxu0 0
        %1887 = vmatmul.mubr.bf16.gmra.mrb[0].mxu0 %v1742
        %v1888 = vpop.f32.mrb[0].mxu0
        %v1889 = vadd.f32 0.0, %v1888
        %v1890 = vpop.f32.mrb[0].mxu0
        %v1891 = vpop.f32.mrb[0].mxu0
        %v1892 = vadd.f32 0.0, %v1891
        %v1893 = vpop.f32.mrb[0].mxu0
        %1894 = vmatprep.mubr.bf16.mxu0 0
        %1895 = vmatmul.mubr.bf16.gmra.mrb[0].mxu0 %v1745
        %v1896 = vpop.f32.mrb[0].mxu0
        %v1897 = vadd.f32 0.0, %v1896
        %v1898 = vpop.f32.mrb[0].mxu0
        %v1899 = vpop.f32.mrb[0].mxu0
        %v1900 = vadd.f32 0.0, %v1899
        %v1901 = vpop.f32.mrb[0].mxu0
        %1902 = vmatprep.mubr.bf16.mxu0 0
        %1903 = vmatmul.mubr.bf16.gmra.mrb[0].mxu0 %v1748
        %v1904 = vpop.f32.mrb[0].mxu0
        %v1905 = vadd.f32 0.0, %v1904
        %v1906 = vpop.f32.mrb[0].mxu0
        %v1907 = vpop.f32.mrb[0].mxu0
        %v1908 = vadd.f32 0.0, %v1907
        %v1909 = vpop.f32.mrb[0].mxu0
        %1910 = vdwg.mxu0
        %v1911 = vadd.f32 %v1318, %v1785
        %v1912 = vadd.f32 %v1321, %v1788
        %v1913 = vadd.f32 %v1326, %v1793
        %v1914 = vadd.f32 %v1329, %v1796
        %v1915 = vadd.f32 %v1334, %v1801
        %v1916 = vadd.f32 %v1337, %v1804
        %v1917 = vadd.f32 %v1342, %v1809
        %v1918 = vadd.f32 %v1345, %v1812
        %v1919 = vadd.f32 %v1350, %v1817
        %v1920 = vadd.f32 %v1353, %v1820
        %v1921 = vadd.f32 %v1358, %v1825
        %v1922 = vadd.f32 %v1361, %v1828
        %v1923 = vadd.f32 %v1366, %v1833
        %v1924 = vadd.f32 %v1369, %v1836
        %v1925 = vadd.f32 %v1374, %v1841
        %v1926 = vadd.f32 %v1377, %v1844
        %v1927 = vadd.f32 %v1382, %v1849
        %v1928 = vadd.f32 %v1385, %v1852
        %v1929 = vadd.f32 %v1390, %v1857
        %v1930 = vadd.f32 %v1393, %v1860
        %v1931 = vadd.f32 %v1398, %v1865
        %v1932 = vadd.f32 %v1401, %v1868
        %v1933 = vadd.f32 %v1406, %v1873
        %v1934 = vadd.f32 %v1409, %v1876
        %v1935 = vadd.f32 %v1414, %v1881
        %v1936 = vadd.f32 %v1417, %v1884
        %v1937 = vadd.f32 %v1422, %v1889
        %v1938 = vadd.f32 %v1425, %v1892
        %v1939 = vadd.f32 %v1430, %v1897
        %v1940 = vadd.f32 %v1433, %v1900
        %v1941 = vadd.f32 %v1438, %v1905
        %v1942 = vadd.f32 %v1441, %v1908
        %v1943 = vld [vmem:[%s687] sm:$0x80]
        %v1944 = vld [vmem:[%s687 + $0x8] sm:$0xff]
        %v1945 = vld [vmem:[%s687 + $0x18] sm:$0x80]
        %v1946 = vld [vmem:[%s687 + $0x20] sm:$0xff]
        %v1947 = vld [vmem:[%s687 + $0x30] sm:$0x80]
        %v1948 = vld [vmem:[%s687 + $0x38] sm:$0xff]
        %v1949 = vld [vmem:[%s687 + $0x48] sm:$0x80]
        %v1950 = vld [vmem:[%s687 + $0x50] sm:$0xff]
        %v1951 = vld [vmem:[%s687 + $0x60] sm:$0x80]
        %v1952 = vld [vmem:[%s687 + $0x68] sm:$0xff]
        %v1953 = vld [vmem:[%s687 + $0x78] sm:$0x80]
        %v1954 = vld [vmem:[%s687 + $0x80] sm:$0xff]
        %v1955 = vld [vmem:[%s687 + $0x90] sm:$0x80]
        %v1956 = vld [vmem:[%s687 + $0x98] sm:$0xff]
        %v1957 = vld [vmem:[%s687 + $0xa8] sm:$0x80]
        %v1958 = vld [vmem:[%s687 + $0xb0] sm:$0xff]
        %v1959 = vld [vmem:[%s687 + $0xc0] sm:$0x80]
        %v1960 = vld [vmem:[%s687 + $0xc8] sm:$0xff]
        %v1961 = vld [vmem:[%s687 + $0xd8] sm:$0x80]
        %v1962 = vld [vmem:[%s687 + $0xe0] sm:$0xff]
        %v1963 = vld [vmem:[%s687 + $0xf0] sm:$0x80]
        %v1964 = vld [vmem:[%s687 + $0xf8] sm:$0xff]
        %v1965 = vld [vmem:[%s687 + $0x108] sm:$0x80]
        %v1966 = vld [vmem:[%s687 + $0x110] sm:$0xff]
        %v1967 = vld [vmem:[%s687 + $0x120] sm:$0x80]
        %v1968 = vld [vmem:[%s687 + $0x128] sm:$0xff]
        %v1969 = vld [vmem:[%s687 + $0x138] sm:$0x80]
        %v1970 = vld [vmem:[%s687 + $0x140] sm:$0xff]
        %v1971 = vld [vmem:[%s687 + $0x150] sm:$0x80]
        %v1972 = vld [vmem:[%s687 + $0x158] sm:$0xff]
        %v1973 = vld [vmem:[%s687 + $0x168] sm:$0x80]
        %v1974 = vld [vmem:[%s687 + $0x170] sm:$0xff]
        %v1976 = vshrl.u32 %v1943, 16
        %v1978 = vrot.slane %v1976, 7
        %v1980 = vshrl.u32 %v1944, 16
        %v1982 = vrot.slane %v1980, 7
        %v1983 = vshll.u32 %v1944, 16
        %v1985 = vor.u32 %v1982, %v1983
        %v1986 = vsel %vm784, %v1978, %v1985
        %v1988 = vshrl.u32 %v1945, 16
        %v1990 = vrot.slane %v1988, 7
        %v1992 = vshrl.u32 %v1946, 16
        %v1994 = vrot.slane %v1992, 7
        %v1995 = vshll.u32 %v1946, 16
        %v1997 = vor.u32 %v1994, %v1995
        %v1998 = vsel %vm784, %v1990, %v1997
        %v2000 = vshrl.u32 %v1947, 16
        %v2002 = vrot.slane %v2000, 7
        %v2004 = vshrl.u32 %v1948, 16
        %v2006 = vrot.slane %v2004, 7
        %v2007 = vshll.u32 %v1948, 16
        %v2009 = vor.u32 %v2006, %v2007
        %v2010 = vsel %vm784, %v2002, %v2009
        %v2012 = vshrl.u32 %v1949, 16
        %v2014 = vrot.slane %v2012, 7
        %v2016 = vshrl.u32 %v1950, 16
        %v2018 = vrot.slane %v2016, 7
        %v2019 = vshll.u32 %v1950, 16
        %v2021 = vor.u32 %v2018, %v2019
        %v2022 = vsel %vm784, %v2014, %v2021
        %v2024 = vshrl.u32 %v1951, 16
        %v2026 = vrot.slane %v2024, 7
        %v2028 = vshrl.u32 %v1952, 16
        %v2030 = vrot.slane %v2028, 7
        %v2031 = vshll.u32 %v1952, 16
        %v2033 = vor.u32 %v2030, %v2031
        %v2034 = vsel %vm784, %v2026, %v2033
        %v2036 = vshrl.u32 %v1953, 16
        %v2038 = vrot.slane %v2036, 7
        %v2040 = vshrl.u32 %v1954, 16
        %v2042 = vrot.slane %v2040, 7
        %v2043 = vshll.u32 %v1954, 16
        %v2045 = vor.u32 %v2042, %v2043
        %v2046 = vsel %vm784, %v2038, %v2045
        %v2048 = vshrl.u32 %v1955, 16
        %v2050 = vrot.slane %v2048, 7
        %v2052 = vshrl.u32 %v1956, 16
        %v2054 = vrot.slane %v2052, 7
        %v2055 = vshll.u32 %v1956, 16
        %v2057 = vor.u32 %v2054, %v2055
        %v2058 = vsel %vm784, %v2050, %v2057
        %v2060 = vshrl.u32 %v1957, 16
        %v2062 = vrot.slane %v2060, 7
        %v2064 = vshrl.u32 %v1958, 16
        %v2066 = vrot.slane %v2064, 7
        %v2067 = vshll.u32 %v1958, 16
        %v2069 = vor.u32 %v2066, %v2067
        %v2070 = vsel %vm784, %v2062, %v2069
        %v2072 = vshrl.u32 %v1959, 16
        %v2074 = vrot.slane %v2072, 7
        %v2076 = vshrl.u32 %v1960, 16
        %v2078 = vrot.slane %v2076, 7
        %v2079 = vshll.u32 %v1960, 16
        %v2081 = vor.u32 %v2078, %v2079
        %v2082 = vsel %vm784, %v2074, %v2081
        %v2084 = vshrl.u32 %v1961, 16
        %v2086 = vrot.slane %v2084, 7
        %v2088 = vshrl.u32 %v1962, 16
        %v2090 = vrot.slane %v2088, 7
        %v2091 = vshll.u32 %v1962, 16
        %v2093 = vor.u32 %v2090, %v2091
        %v2094 = vsel %vm784, %v2086, %v2093
        %v2096 = vshrl.u32 %v1963, 16
        %v2098 = vrot.slane %v2096, 7
        %v2100 = vshrl.u32 %v1964, 16
        %v2102 = vrot.slane %v2100, 7
        %v2103 = vshll.u32 %v1964, 16
        %v2105 = vor.u32 %v2102, %v2103
        %v2106 = vsel %vm784, %v2098, %v2105
        %v2108 = vshrl.u32 %v1965, 16
        %v2110 = vrot.slane %v2108, 7
        %v2112 = vshrl.u32 %v1966, 16
        %v2114 = vrot.slane %v2112, 7
        %v2115 = vshll.u32 %v1966, 16
        %v2117 = vor.u32 %v2114, %v2115
        %v2118 = vsel %vm784, %v2110, %v2117
        %v2120 = vshrl.u32 %v1967, 16
        %v2122 = vrot.slane %v2120, 7
        %v2124 = vshrl.u32 %v1968, 16
        %v2126 = vrot.slane %v2124, 7
        %v2127 = vshll.u32 %v1968, 16
        %v2129 = vor.u32 %v2126, %v2127
        %v2130 = vsel %vm784, %v2122, %v2129
        %v2132 = vshrl.u32 %v1969, 16
        %v2134 = vrot.slane %v2132, 7
        %v2136 = vshrl.u32 %v1970, 16
        %v2138 = vrot.slane %v2136, 7
        %v2139 = vshll.u32 %v1970, 16
        %v2141 = vor.u32 %v2138, %v2139
        %v2142 = vsel %vm784, %v2134, %v2141
        %v2144 = vshrl.u32 %v1971, 16
        %v2146 = vrot.slane %v2144, 7
        %v2148 = vshrl.u32 %v1972, 16
        %v2150 = vrot.slane %v2148, 7
        %v2151 = vshll.u32 %v1972, 16
        %v2153 = vor.u32 %v2150, %v2151
        %v2154 = vsel %vm784, %v2146, %v2153
        %v2156 = vshrl.u32 %v1973, 16
        %v2158 = vrot.slane %v2156, 7
        %v2160 = vshrl.u32 %v1974, 16
        %v2162 = vrot.slane %v2160, 7
        %v2163 = vshll.u32 %v1974, 16
        %v2165 = vor.u32 %v2162, %v2163
        %v2166 = vsel %vm784, %v2158, %v2165
        %s2167 = scalar_lea.vmem %s3, 96
        %v2168 = vld [vmem:[%s2167] sm:$0xf]
        %v2169 = vld [vmem:[%s2167 + $0x4] sm:$0xf]
        %v2170 = vld [vmem:[%s2167 + $0x8] sm:$0xf]
        %v2171 = vld [vmem:[%s2167 + $0xc] sm:$0xf]
        %v2172 = vld [vmem:[%s2167 + $0x10] sm:$0xf]
        %v2173 = vld [vmem:[%s2167 + $0x14] sm:$0xf]
        %v2174 = vld [vmem:[%s2167 + $0x18] sm:$0xf]
        %v2175 = vld [vmem:[%s2167 + $0x1c] sm:$0xf]
        %v2184 = vunpack.c.l.b16 %v2168
        %v2185 = vunpack.c.l.b16 %v2169
        %v2186 = vunpack.c.l.b16 %v2170
        %v2187 = vunpack.c.l.b16 %v2171
        %v2188 = vunpack.c.l.b16 %v2172
        %v2189 = vunpack.c.l.b16 %v2173
        %v2190 = vunpack.c.l.b16 %v2174
        %v2191 = vunpack.c.l.b16 %v2175
        %v2192 = vpack.c.b16 %v2185, %v2184
        %v2193 = vpack.c.b16 %v2187, %v2186
        %v2194 = vpack.c.b16 %v2189, %v2188
        %v2195 = vpack.c.b16 %v2191, %v2190
        %v2201 = vsel %vm679, %v1986, 0
        %v2204 = vsel %vm679, %v1998, 0
        %v2207 = vsel %vm679, %v2010, 0
        %v2210 = vsel %vm679, %v2022, 0
        %v2213 = vsel %vm679, %v2034, 0
        %v2216 = vsel %vm679, %v2046, 0
        %v2219 = vsel %vm679, %v2058, 0
        %v2222 = vsel %vm679, %v2070, 0
        %v2225 = vsel %vm679, %v2082, 0
        %v2228 = vsel %vm679, %v2094, 0
        %v2231 = vsel %vm679, %v2106, 0
        %v2234 = vsel %vm679, %v2118, 0
        %v2237 = vsel %vm679, %v2130, 0
        %v2240 = vsel %vm679, %v2142, 0
        %v2243 = vsel %vm679, %v2154, 0
        %v2246 = vsel %vm679, %v2166, 0
        %2248 = vmatprep.subr.bf16.mxu0 0
        %2249 = vmatpush1.bf16.msra.mxu0 %v2192
        %2250 = vmatprep.subr.bf16.mxu0 0
        %2251 = vmatpush1.bf16.msra.mxu0 %v2193
        %2252 = vmatprep.subr.bf16.mxu0 0
        %2253 = vmatpush1.bf16.msra.mxu0 %v2194
        %2254 = vmatprep.subr.bf16.mxu0 0
        %2255 = vmatpush1.bf16.msra.mxu0 %v2195
        %2256 = vmatprep.subr.bf16.mxu0 0
        %2257 = vmatpush1.bf16.msra.mxu0 0
        %2258 = vmatprep.subr.bf16.mxu0 0
        %2259 = vmatpush1.bf16.msra.mxu0 0
        %2260 = vmatprep.subr.bf16.mxu0 0
        %2261 = vmatpush1.bf16.msra.mxu0 0
        %2262 = vmatprep.subr.bf16.mxu0 0
        %2263 = vmatpush1.bf16.msra.mxu0 0
        %2264 = vmatprep.subr.bf16.mxu0 0
        %2265 = vmatpush1.bf16.msra.mxu0 0
        %2266 = vmatprep.subr.bf16.mxu0 0
        %2267 = vmatpush1.bf16.msra.mxu0 0
        %2268 = vmatprep.subr.bf16.mxu0 0
        %2269 = vmatpush1.bf16.msra.mxu0 0
        %2270 = vmatprep.subr.bf16.mxu0 0
        %2271 = vmatpush1.bf16.msra.mxu0 0
        %2272 = vmatprep.subr.bf16.mxu0 0
        %2273 = vmatpush1.bf16.msra.mxu0 0
        %2274 = vmatprep.subr.bf16.mxu0 0
        %2275 = vmatpush1.bf16.msra.mxu0 0
        %2276 = vmatprep.subr.bf16.mxu0 0
        %2277 = vmatpush1.bf16.msra.mxu0 0
        %2278 = vmatprep.subr.bf16.mxu0 0
        %2279 = vmatpush1.bf16.msra.mxu0 0
        %2280 = vmatprep.mubr.bf16.mxu0 0
        %2281 = vmatmul.mubr.bf16.gmra.mrb[0].mxu0 %v2201
        %v2282 = vpop.f32.mrb[0].mxu0
        %v2283 = vadd.f32 0.0, %v2282
        %v2284 = vpop.f32.mrb[0].mxu0
        %v2285 = vpop.f32.mrb[0].mxu0
        %v2286 = vadd.f32 0.0, %v2285
        %v2287 = vpop.f32.mrb[0].mxu0
        %2288 = vmatprep.mubr.bf16.mxu0 0
        %2289 = vmatmul.mubr.bf16.gmra.mrb[0].mxu0 %v2204
        %v2290 = vpop.f32.mrb[0].mxu0
        %v2291 = vadd.f32 0.0, %v2290
        %v2292 = vpop.f32.mrb[0].mxu0
        %v2293 = vpop.f32.mrb[0].mxu0
        %v2294 = vadd.f32 0.0, %v2293
        %v2295 = vpop.f32.mrb[0].mxu0
        %2296 = vmatprep.mubr.bf16.mxu0 0
        %2297 = vmatmul.mubr.bf16.gmra.mrb[0].mxu0 %v2207
        %v2298 = vpop.f32.mrb[0].mxu0
        %v2299 = vadd.f32 0.0, %v2298
        %v2300 = vpop.f32.mrb[0].mxu0
        %v2301 = vpop.f32.mrb[0].mxu0
        %v2302 = vadd.f32 0.0, %v2301
        %v2303 = vpop.f32.mrb[0].mxu0
        %2304 = vmatprep.mubr.bf16.mxu0 0
        %2305 = vmatmul.mubr.bf16.gmra.mrb[0].mxu0 %v2210
        %v2306 = vpop.f32.mrb[0].mxu0
        %v2307 = vadd.f32 0.0, %v2306
        %v2308 = vpop.f32.mrb[0].mxu0
        %v2309 = vpop.f32.mrb[0].mxu0
        %v2310 = vadd.f32 0.0, %v2309
        %v2311 = vpop.f32.mrb[0].mxu0
        %2312 = vmatprep.mubr.bf16.mxu0 0
        %2313 = vmatmul.mubr.bf16.gmra.mrb[0].mxu0 %v2213
        %v2314 = vpop.f32.mrb[0].mxu0
        %v2315 = vadd.f32 0.0, %v2314
        %v2316 = vpop.f32.mrb[0].mxu0
        %v2317 = vpop.f32.mrb[0].mxu0
        %v2318 = vadd.f32 0.0, %v2317
        %v2319 = vpop.f32.mrb[0].mxu0
        %2320 = vmatprep.mubr.bf16.mxu0 0
        %2321 = vmatmul.mubr.bf16.gmra.mrb[0].mxu0 %v2216
        %v2322 = vpop.f32.mrb[0].mxu0
        %v2323 = vadd.f32 0.0, %v2322
        %v2324 = vpop.f32.mrb[0].mxu0
        %v2325 = vpop.f32.mrb[0].mxu0
        %v2326 = vadd.f32 0.0, %v2325
        %v2327 = vpop.f32.mrb[0].mxu0
        %2328 = vmatprep.mubr.bf16.mxu0 0
        %2329 = vmatmul.mubr.bf16.gmra.mrb[0].mxu0 %v2219
        %v2330 = vpop.f32.mrb[0].mxu0
        %v2331 = vadd.f32 0.0, %v2330
        %v2332 = vpop.f32.mrb[0].mxu0
        %v2333 = vpop.f32.mrb[0].mxu0
        %v2334 = vadd.f32 0.0, %v2333
        %v2335 = vpop.f32.mrb[0].mxu0
        %2336 = vmatprep.mubr.bf16.mxu0 0
        %2337 = vmatmul.mubr.bf16.gmra.mrb[0].mxu0 %v2222
        %v2338 = vpop.f32.mrb[0].mxu0
        %v2339 = vadd.f32 0.0, %v2338
        %v2340 = vpop.f32.mrb[0].mxu0
        %v2341 = vpop.f32.mrb[0].mxu0
        %v2342 = vadd.f32 0.0, %v2341
        %v2343 = vpop.f32.mrb[0].mxu0
        %2344 = vmatprep.mubr.bf16.mxu0 0
        %2345 = vmatmul.mubr.bf16.gmra.mrb[0].mxu0 %v2225
        %v2346 = vpop.f32.mrb[0].mxu0
        %v2347 = vadd.f32 0.0, %v2346
        %v2348 = vpop.f32.mrb[0].mxu0
        %v2349 = vpop.f32.mrb[0].mxu0
        %v2350 = vadd.f32 0.0, %v2349
        %v2351 = vpop.f32.mrb[0].mxu0
        %2352 = vmatprep.mubr.bf16.mxu0 0
        %2353 = vmatmul.mubr.bf16.gmra.mrb[0].mxu0 %v2228
        %v2354 = vpop.f32.mrb[0].mxu0
        %v2355 = vadd.f32 0.0, %v2354
        %v2356 = vpop.f32.mrb[0].mxu0
        %v2357 = vpop.f32.mrb[0].mxu0
        %v2358 = vadd.f32 0.0, %v2357
        %v2359 = vpop.f32.mrb[0].mxu0
        %2360 = vmatprep.mubr.bf16.mxu0 0
        %2361 = vmatmul.mubr.bf16.gmra.mrb[0].mxu0 %v2231
        %v2362 = vpop.f32.mrb[0].mxu0
        %v2363 = vadd.f32 0.0, %v2362
        %v2364 = vpop.f32.mrb[0].mxu0
        %v2365 = vpop.f32.mrb[0].mxu0
        %v2366 = vadd.f32 0.0, %v2365
        %v2367 = vpop.f32.mrb[0].mxu0
        %2368 = vmatprep.mubr.bf16.mxu0 0
        %2369 = vmatmul.mubr.bf16.gmra.mrb[0].mxu0 %v2234
        %v2370 = vpop.f32.mrb[0].mxu0
        %v2371 = vadd.f32 0.0, %v2370
        %v2372 = vpop.f32.mrb[0].mxu0
        %v2373 = vpop.f32.mrb[0].mxu0
        %v2374 = vadd.f32 0.0, %v2373
        %v2375 = vpop.f32.mrb[0].mxu0
        %2376 = vmatprep.mubr.bf16.mxu0 0
        %2377 = vmatmul.mubr.bf16.gmra.mrb[0].mxu0 %v2237
        %v2378 = vpop.f32.mrb[0].mxu0
        %v2379 = vadd.f32 0.0, %v2378
        %v2380 = vpop.f32.mrb[0].mxu0
        %v2381 = vpop.f32.mrb[0].mxu0
        %v2382 = vadd.f32 0.0, %v2381
        %v2383 = vpop.f32.mrb[0].mxu0
        %2384 = vmatprep.mubr.bf16.mxu0 0
        %2385 = vmatmul.mubr.bf16.gmra.mrb[0].mxu0 %v2240
        %v2386 = vpop.f32.mrb[0].mxu0
        %v2387 = vadd.f32 0.0, %v2386
        %v2388 = vpop.f32.mrb[0].mxu0
        %v2389 = vpop.f32.mrb[0].mxu0
        %v2390 = vadd.f32 0.0, %v2389
        %v2391 = vpop.f32.mrb[0].mxu0
        %2392 = vmatprep.mubr.bf16.mxu0 0
        %2393 = vmatmul.mubr.bf16.gmra.mrb[0].mxu0 %v2243
        %v2394 = vpop.f32.mrb[0].mxu0
        %v2395 = vadd.f32 0.0, %v2394
        %v2396 = vpop.f32.mrb[0].mxu0
        %v2397 = vpop.f32.mrb[0].mxu0
        %v2398 = vadd.f32 0.0, %v2397
        %v2399 = vpop.f32.mrb[0].mxu0
        %2400 = vmatprep.mubr.bf16.mxu0 0
        %2401 = vmatmul.mubr.bf16.gmra.mrb[0].mxu0 %v2246
        %v2402 = vpop.f32.mrb[0].mxu0
        %v2403 = vadd.f32 0.0, %v2402
        %v2404 = vpop.f32.mrb[0].mxu0
        %v2405 = vpop.f32.mrb[0].mxu0
        %v2406 = vadd.f32 0.0, %v2405
        %v2407 = vpop.f32.mrb[0].mxu0
        %2408 = vdwg.mxu0
        %v2409 = vadd.f32 %v1911, %v2283
        %v2410 = vadd.f32 %v1912, %v2286
        %v2411 = vadd.f32 %v1913, %v2291
        %v2412 = vadd.f32 %v1914, %v2294
        %v2413 = vadd.f32 %v1915, %v2299
        %v2414 = vadd.f32 %v1916, %v2302
        %v2415 = vadd.f32 %v1917, %v2307
        %v2416 = vadd.f32 %v1918, %v2310
        %v2417 = vadd.f32 %v1919, %v2315
        %v2418 = vadd.f32 %v1920, %v2318
        %v2419 = vadd.f32 %v1921, %v2323
        %v2420 = vadd.f32 %v1922, %v2326
        %v2421 = vadd.f32 %v1923, %v2331
        %v2422 = vadd.f32 %v1924, %v2334
        %v2423 = vadd.f32 %v1925, %v2339
        %v2424 = vadd.f32 %v1926, %v2342
        %v2425 = vadd.f32 %v1927, %v2347
        %v2426 = vadd.f32 %v1928, %v2350
        %v2427 = vadd.f32 %v1929, %v2355
        %v2428 = vadd.f32 %v1930, %v2358
        %v2429 = vadd.f32 %v1931, %v2363
        %v2430 = vadd.f32 %v1932, %v2366
        %v2431 = vadd.f32 %v1933, %v2371
        %v2432 = vadd.f32 %v1934, %v2374
        %v2433 = vadd.f32 %v1935, %v2379
        %v2434 = vadd.f32 %v1936, %v2382
        %v2435 = vadd.f32 %v1937, %v2387
        %v2436 = vadd.f32 %v1938, %v2390
        %v2437 = vadd.f32 %v1939, %v2395
        %v2438 = vadd.f32 %v1940, %v2398
        %v2439 = vadd.f32 %v1941, %v2403
        %v2440 = vadd.f32 %v1942, %v2406
        %s2441 = scalar_lea.vmem %s3, 128
        %v2442 = vld [vmem:[%s2441] sm:$0xf]
        %v2443 = vld [vmem:[%s2441 + $0x4] sm:$0xf]
        %v2444 = vld [vmem:[%s2441 + $0x8] sm:$0xf]
        %v2445 = vld [vmem:[%s2441 + $0xc] sm:$0xf]
        %v2446 = vld [vmem:[%s2441 + $0x10] sm:$0xf]
        %v2447 = vld [vmem:[%s2441 + $0x14] sm:$0xf]
        %v2448 = vld [vmem:[%s2441 + $0x18] sm:$0xf]
        %v2449 = vld [vmem:[%s2441 + $0x1c] sm:$0xf]
        %v2458 = vunpack.c.l.b16 %v2442
        %v2459 = vunpack.c.l.b16 %v2443
        %v2460 = vunpack.c.l.b16 %v2444
        %v2461 = vunpack.c.l.b16 %v2445
        %v2462 = vunpack.c.l.b16 %v2446
        %v2463 = vunpack.c.l.b16 %v2447
        %v2464 = vunpack.c.l.b16 %v2448
        %v2465 = vunpack.c.l.b16 %v2449
        %v2466 = vpack.c.b16 %v2459, %v2458
        %v2467 = vpack.c.b16 %v2461, %v2460
        %v2468 = vpack.c.b16 %v2463, %v2462
        %v2469 = vpack.c.b16 %v2465, %v2464
        %v2474 = vsel %vm679, %v1944, 0
        %v2476 = vsel %vm679, %v1946, 0
        %v2478 = vsel %vm679, %v1948, 0
        %v2480 = vsel %vm679, %v1950, 0
        %v2482 = vsel %vm679, %v1952, 0
        %v2484 = vsel %vm679, %v1954, 0
        %v2486 = vsel %vm679, %v1956, 0
        %v2488 = vsel %vm679, %v1958, 0
        %v2490 = vsel %vm679, %v1960, 0
        %v2492 = vsel %vm679, %v1962, 0
        %v2494 = vsel %vm679, %v1964, 0
        %v2496 = vsel %vm679, %v1966, 0
        %v2498 = vsel %vm679, %v1968, 0
        %v2500 = vsel %vm679, %v1970, 0
        %v2502 = vsel %vm679, %v1972, 0
        %v2504 = vsel %vm679, %v1974, 0
        %2506 = vmatprep.subr.bf16.mxu0 0
        %2507 = vmatpush1.bf16.msra.mxu0 %v2466
        %2508 = vmatprep.subr.bf16.mxu0 0
        %2509 = vmatpush1.bf16.msra.mxu0 %v2467
        %2510 = vmatprep.subr.bf16.mxu0 0
        %2511 = vmatpush1.bf16.msra.mxu0 %v2468
        %2512 = vmatprep.subr.bf16.mxu0 0
        %2513 = vmatpush1.bf16.msra.mxu0 %v2469
        %2514 = vmatprep.subr.bf16.mxu0 0
        %2515 = vmatpush1.bf16.msra.mxu0 0
        %2516 = vmatprep.subr.bf16.mxu0 0
        %2517 = vmatpush1.bf16.msra.mxu0 0
        %2518 = vmatprep.subr.bf16.mxu0 0
        %2519 = vmatpush1.bf16.msra.mxu0 0
        %2520 = vmatprep.subr.bf16.mxu0 0
        %2521 = vmatpush1.bf16.msra.mxu0 0
        %2522 = vmatprep.subr.bf16.mxu0 0
        %2523 = vmatpush1.bf16.msra.mxu0 0
        %2524 = vmatprep.subr.bf16.mxu0 0
        %2525 = vmatpush1.bf16.msra.mxu0 0
        %2526 = vmatprep.subr.bf16.mxu0 0
        %2527 = vmatpush1.bf16.msra.mxu0 0
        %2528 = vmatprep.subr.bf16.mxu0 0
        %2529 = vmatpush1.bf16.msra.mxu0 0
        %2530 = vmatprep.subr.bf16.mxu0 0
        %2531 = vmatpush1.bf16.msra.mxu0 0
        %2532 = vmatprep.subr.bf16.mxu0 0
        %2533 = vmatpush1.bf16.msra.mxu0 0
        %2534 = vmatprep.subr.bf16.mxu0 0
        %2535 = vmatpush1.bf16.msra.mxu0 0
        %2536 = vmatprep.subr.bf16.mxu0 0
        %2537 = vmatpush1.bf16.msra.mxu0 0
        %2538 = vmatprep.mubr.bf16.mxu0 0
        %2539 = vmatmul.mubr.bf16.gmra.mrb[0].mxu0 %v2474
        %v2540 = vpop.f32.mrb[0].mxu0
        %v2541 = vadd.f32 0.0, %v2540
        %v2542 = vpop.f32.mrb[0].mxu0
        %v2543 = vpop.f32.mrb[0].mxu0
        %v2544 = vadd.f32 0.0, %v2543
        %v2545 = vpop.f32.mrb[0].mxu0
        %2546 = vmatprep.mubr.bf16.mxu0 0
        %2547 = vmatmul.mubr.bf16.gmra.mrb[0].mxu0 %v2476
        %v2548 = vpop.f32.mrb[0].mxu0
        %v2549 = vadd.f32 0.0, %v2548
        %v2550 = vpop.f32.mrb[0].mxu0
        %v2551 = vpop.f32.mrb[0].mxu0
        %v2552 = vadd.f32 0.0, %v2551
        %v2553 = vpop.f32.mrb[0].mxu0
        %2554 = vmatprep.mubr.bf16.mxu0 0
        %2555 = vmatmul.mubr.bf16.gmra.mrb[0].mxu0 %v2478
        %v2556 = vpop.f32.mrb[0].mxu0
        %v2557 = vadd.f32 0.0, %v2556
        %v2558 = vpop.f32.mrb[0].mxu0
        %v2559 = vpop.f32.mrb[0].mxu0
        %v2560 = vadd.f32 0.0, %v2559
        %v2561 = vpop.f32.mrb[0].mxu0
        %2562 = vmatprep.mubr.bf16.mxu0 0
        %2563 = vmatmul.mubr.bf16.gmra.mrb[0].mxu0 %v2480
        %v2564 = vpop.f32.mrb[0].mxu0
        %v2565 = vadd.f32 0.0, %v2564
        %v2566 = vpop.f32.mrb[0].mxu0
        %v2567 = vpop.f32.mrb[0].mxu0
        %v2568 = vadd.f32 0.0, %v2567
        %v2569 = vpop.f32.mrb[0].mxu0
        %2570 = vmatprep.mubr.bf16.mxu0 0
        %2571 = vmatmul.mubr.bf16.gmra.mrb[0].mxu0 %v2482
        %v2572 = vpop.f32.mrb[0].mxu0
        %v2573 = vadd.f32 0.0, %v2572
        %v2574 = vpop.f32.mrb[0].mxu0
        %v2575 = vpop.f32.mrb[0].mxu0
        %v2576 = vadd.f32 0.0, %v2575
        %v2577 = vpop.f32.mrb[0].mxu0
        %2578 = vmatprep.mubr.bf16.mxu0 0
        %2579 = vmatmul.mubr.bf16.gmra.mrb[0].mxu0 %v2484
        %v2580 = vpop.f32.mrb[0].mxu0
        %v2581 = vadd.f32 0.0, %v2580
        %v2582 = vpop.f32.mrb[0].mxu0
        %v2583 = vpop.f32.mrb[0].mxu0
        %v2584 = vadd.f32 0.0, %v2583
        %v2585 = vpop.f32.mrb[0].mxu0
        %2586 = vmatprep.mubr.bf16.mxu0 0
        %2587 = vmatmul.mubr.bf16.gmra.mrb[0].mxu0 %v2486
        %v2588 = vpop.f32.mrb[0].mxu0
        %v2589 = vadd.f32 0.0, %v2588
        %v2590 = vpop.f32.mrb[0].mxu0
        %v2591 = vpop.f32.mrb[0].mxu0
        %v2592 = vadd.f32 0.0, %v2591
        %v2593 = vpop.f32.mrb[0].mxu0
        %2594 = vmatprep.mubr.bf16.mxu0 0
        %2595 = vmatmul.mubr.bf16.gmra.mrb[0].mxu0 %v2488
        %v2596 = vpop.f32.mrb[0].mxu0
        %v2597 = vadd.f32 0.0, %v2596
        %v2598 = vpop.f32.mrb[0].mxu0
        %v2599 = vpop.f32.mrb[0].mxu0
        %v2600 = vadd.f32 0.0, %v2599
        %v2601 = vpop.f32.mrb[0].mxu0
        %2602 = vmatprep.mubr.bf16.mxu0 0
        %2603 = vmatmul.mubr.bf16.gmra.mrb[0].mxu0 %v2490
        %v2604 = vpop.f32.mrb[0].mxu0
        %v2605 = vadd.f32 0.0, %v2604
        %v2606 = vpop.f32.mrb[0].mxu0
        %v2607 = vpop.f32.mrb[0].mxu0
        %v2608 = vadd.f32 0.0, %v2607
        %v2609 = vpop.f32.mrb[0].mxu0
        %2610 = vmatprep.mubr.bf16.mxu0 0
        %2611 = vmatmul.mubr.bf16.gmra.mrb[0].mxu0 %v2492
        %v2612 = vpop.f32.mrb[0].mxu0
        %v2613 = vadd.f32 0.0, %v2612
        %v2614 = vpop.f32.mrb[0].mxu0
        %v2615 = vpop.f32.mrb[0].mxu0
        %v2616 = vadd.f32 0.0, %v2615
        %v2617 = vpop.f32.mrb[0].mxu0
        %2618 = vmatprep.mubr.bf16.mxu0 0
        %2619 = vmatmul.mubr.bf16.gmra.mrb[0].mxu0 %v2494
        %v2620 = vpop.f32.mrb[0].mxu0
        %v2621 = vadd.f32 0.0, %v2620
        %v2622 = vpop.f32.mrb[0].mxu0
        %v2623 = vpop.f32.mrb[0].mxu0
        %v2624 = vadd.f32 0.0, %v2623
        %v2625 = vpop.f32.mrb[0].mxu0
        %2626 = vmatprep.mubr.bf16.mxu0 0
        %2627 = vmatmul.mubr.bf16.gmra.mrb[0].mxu0 %v2496
        %v2628 = vpop.f32.mrb[0].mxu0
        %v2629 = vadd.f32 0.0, %v2628
        %v2630 = vpop.f32.mrb[0].mxu0
        %v2631 = vpop.f32.mrb[0].mxu0
        %v2632 = vadd.f32 0.0, %v2631
        %v2633 = vpop.f32.mrb[0].mxu0
        %2634 = vmatprep.mubr.bf16.mxu0 0
        %2635 = vmatmul.mubr.bf16.gmra.mrb[0].mxu0 %v2498
        %v2636 = vpop.f32.mrb[0].mxu0
        %v2637 = vadd.f32 0.0, %v2636
        %v2638 = vpop.f32.mrb[0].mxu0
        %v2639 = vpop.f32.mrb[0].mxu0
        %v2640 = vadd.f32 0.0, %v2639
        %v2641 = vpop.f32.mrb[0].mxu0
        %2642 = vmatprep.mubr.bf16.mxu0 0
        %2643 = vmatmul.mubr.bf16.gmra.mrb[0].mxu0 %v2500
        %v2644 = vpop.f32.mrb[0].mxu0
        %v2645 = vadd.f32 0.0, %v2644
        %v2646 = vpop.f32.mrb[0].mxu0
        %v2647 = vpop.f32.mrb[0].mxu0
        %v2648 = vadd.f32 0.0, %v2647
        %v2649 = vpop.f32.mrb[0].mxu0
        %2650 = vmatprep.mubr.bf16.mxu0 0
        %2651 = vmatmul.mubr.bf16.gmra.mrb[0].mxu0 %v2502
        %v2652 = vpop.f32.mrb[0].mxu0
        %v2653 = vadd.f32 0.0, %v2652
        %v2654 = vpop.f32.mrb[0].mxu0
        %v2655 = vpop.f32.mrb[0].mxu0
        %v2656 = vadd.f32 0.0, %v2655
        %v2657 = vpop.f32.mrb[0].mxu0
        %2658 = vmatprep.mubr.bf16.mxu0 0
        %2659 = vmatmul.mubr.bf16.gmra.mrb[0].mxu0 %v2504
        %v2660 = vpop.f32.mrb[0].mxu0
        %v2661 = vadd.f32 0.0, %v2660
        %v2662 = vpop.f32.mrb[0].mxu0
        %v2663 = vpop.f32.mrb[0].mxu0
        %v2664 = vadd.f32 0.0, %v2663
        %v2665 = vpop.f32.mrb[0].mxu0
        %2666 = vdwg.mxu0
        %v2667 = vadd.f32 %v2409, %v2541
        %v2668 = vadd.f32 %v2410, %v2544
        %v2669 = vadd.f32 %v2411, %v2549
        %v2670 = vadd.f32 %v2412, %v2552
        %v2671 = vadd.f32 %v2413, %v2557
        %v2672 = vadd.f32 %v2414, %v2560
        %v2673 = vadd.f32 %v2415, %v2565
        %v2674 = vadd.f32 %v2416, %v2568
        %v2675 = vadd.f32 %v2417, %v2573
        %v2676 = vadd.f32 %v2418, %v2576
        %v2677 = vadd.f32 %v2419, %v2581
        %v2678 = vadd.f32 %v2420, %v2584
        %v2679 = vadd.f32 %v2421, %v2589
        %v2680 = vadd.f32 %v2422, %v2592
        %v2681 = vadd.f32 %v2423, %v2597
        %v2682 = vadd.f32 %v2424, %v2600
        %v2683 = vadd.f32 %v2425, %v2605
        %v2684 = vadd.f32 %v2426, %v2608
        %v2685 = vadd.f32 %v2427, %v2613
        %v2686 = vadd.f32 %v2428, %v2616
        %v2687 = vadd.f32 %v2429, %v2621
        %v2688 = vadd.f32 %v2430, %v2624
        %v2689 = vadd.f32 %v2431, %v2629
        %v2690 = vadd.f32 %v2432, %v2632
        %v2691 = vadd.f32 %v2433, %v2637
        %v2692 = vadd.f32 %v2434, %v2640
        %v2693 = vadd.f32 %v2435, %v2645
        %v2694 = vadd.f32 %v2436, %v2648
        %v2695 = vadd.f32 %v2437, %v2653
        %v2696 = vadd.f32 %v2438, %v2656
        %v2697 = vadd.f32 %v2439, %v2661
        %v2698 = vadd.f32 %v2440, %v2664
        %v2699 = vld [vmem:[%s687 + $0x8] sm:$0xff]
        %v2700 = vld [vmem:[%s687 + $0x10] sm:$0x1]
        %v2701 = vld [vmem:[%s687 + $0x20] sm:$0xff]
        %v2702 = vld [vmem:[%s687 + $0x28] sm:$0x1]
        %v2703 = vld [vmem:[%s687 + $0x38] sm:$0xff]
        %v2704 = vld [vmem:[%s687 + $0x40] sm:$0x1]
        %v2705 = vld [vmem:[%s687 + $0x50] sm:$0xff]
        %v2706 = vld [vmem:[%s687 + $0x58] sm:$0x1]
        %v2707 = vld [vmem:[%s687 + $0x68] sm:$0xff]
        %v2708 = vld [vmem:[%s687 + $0x70] sm:$0x1]
        %v2709 = vld [vmem:[%s687 + $0x80] sm:$0xff]
        %v2710 = vld [vmem:[%s687 + $0x88] sm:$0x1]
        %v2711 = vld [vmem:[%s687 + $0x98] sm:$0xff]
        %v2712 = vld [vmem:[%s687 + $0xa0] sm:$0x1]
        %v2713 = vld [vmem:[%s687 + $0xb0] sm:$0xff]
        %v2714 = vld [vmem:[%s687 + $0xb8] sm:$0x1]
        %v2715 = vld [vmem:[%s687 + $0xc8] sm:$0xff]
        %v2716 = vld [vmem:[%s687 + $0xd0] sm:$0x1]
        %v2717 = vld [vmem:[%s687 + $0xe0] sm:$0xff]
        %v2718 = vld [vmem:[%s687 + $0xe8] sm:$0x1]
        %v2719 = vld [vmem:[%s687 + $0xf8] sm:$0xff]
        %v2720 = vld [vmem:[%s687 + $0x100] sm:$0x1]
        %v2721 = vld [vmem:[%s687 + $0x110] sm:$0xff]
        %v2722 = vld [vmem:[%s687 + $0x118] sm:$0x1]
        %v2723 = vld [vmem:[%s687 + $0x128] sm:$0xff]
        %v2724 = vld [vmem:[%s687 + $0x130] sm:$0x1]
        %v2725 = vld [vmem:[%s687 + $0x140] sm:$0xff]
        %v2726 = vld [vmem:[%s687 + $0x148] sm:$0x1]
        %v2727 = vld [vmem:[%s687 + $0x158] sm:$0xff]
        %v2728 = vld [vmem:[%s687 + $0x160] sm:$0x1]
        %v2729 = vld [vmem:[%s687 + $0x170] sm:$0xff]
        %v2730 = vld [vmem:[%s687 + $0x178] sm:$0x1]
        %v2732 = vshrl.u32 %v2699, 16
        %v2734 = vshll.u32 %v2699, 16
        %v2736 = vrot.slane %v2734, 1
        %v2737 = vor.u32 %v2732, %v2736
        %v2739 = vshll.u32 %v2700, 16
        %v2741 = vrot.slane %v2739, 1
        %v2742 = vsel %vm1476, %v2737, %v2741
        %v2744 = vshrl.u32 %v2701, 16
        %v2746 = vshll.u32 %v2701, 16
        %v2748 = vrot.slane %v2746, 1
        %v2749 = vor.u32 %v2744, %v2748
        %v2751 = vshll.u32 %v2702, 16
        %v2753 = vrot.slane %v2751, 1
        %v2754 = vsel %vm1476, %v2749, %v2753
        %v2756 = vshrl.u32 %v2703, 16
        %v2758 = vshll.u32 %v2703, 16
        %v2760 = vrot.slane %v2758, 1
        %v2761 = vor.u32 %v2756, %v2760
        %v2763 = vshll.u32 %v2704, 16
        %v2765 = vrot.slane %v2763, 1
        %v2766 = vsel %vm1476, %v2761, %v2765
        %v2768 = vshrl.u32 %v2705, 16
        %v2770 = vshll.u32 %v2705, 16
        %v2772 = vrot.slane %v2770, 1
        %v2773 = vor.u32 %v2768, %v2772
        %v2775 = vshll.u32 %v2706, 16
        %v2777 = vrot.slane %v2775, 1
        %v2778 = vsel %vm1476, %v2773, %v2777
        %v2780 = vshrl.u32 %v2707, 16
        %v2782 = vshll.u32 %v2707, 16
        %v2784 = vrot.slane %v2782, 1
        %v2785 = vor.u32 %v2780, %v2784
        %v2787 = vshll.u32 %v2708, 16
        %v2789 = vrot.slane %v2787, 1
        %v2790 = vsel %vm1476, %v2785, %v2789
        %v2792 = vshrl.u32 %v2709, 16
        %v2794 = vshll.u32 %v2709, 16
        %v2796 = vrot.slane %v2794, 1
        %v2797 = vor.u32 %v2792, %v2796
        %v2799 = vshll.u32 %v2710, 16
        %v2801 = vrot.slane %v2799, 1
        %v2802 = vsel %vm1476, %v2797, %v2801
        %v2804 = vshrl.u32 %v2711, 16
        %v2806 = vshll.u32 %v2711, 16
        %v2808 = vrot.slane %v2806, 1
        %v2809 = vor.u32 %v2804, %v2808
        %v2811 = vshll.u32 %v2712, 16
        %v2813 = vrot.slane %v2811, 1
        %v2814 = vsel %vm1476, %v2809, %v2813
        %v2816 = vshrl.u32 %v2713, 16
        %v2818 = vshll.u32 %v2713, 16
        %v2820 = vrot.slane %v2818, 1
        %v2821 = vor.u32 %v2816, %v2820
        %v2823 = vshll.u32 %v2714, 16
        %v2825 = vrot.slane %v2823, 1
        %v2826 = vsel %vm1476, %v2821, %v2825
        %v2828 = vshrl.u32 %v2715, 16
        %v2830 = vshll.u32 %v2715, 16
        %v2832 = vrot.slane %v2830, 1
        %v2833 = vor.u32 %v2828, %v2832
        %v2835 = vshll.u32 %v2716, 16
        %v2837 = vrot.slane %v2835, 1
        %v2838 = vsel %vm1476, %v2833, %v2837
        %v2840 = vshrl.u32 %v2717, 16
        %v2842 = vshll.u32 %v2717, 16
        %v2844 = vrot.slane %v2842, 1
        %v2845 = vor.u32 %v2840, %v2844
        %v2847 = vshll.u32 %v2718, 16
        %v2849 = vrot.slane %v2847, 1
        %v2850 = vsel %vm1476, %v2845, %v2849
        %v2852 = vshrl.u32 %v2719, 16
        %v2854 = vshll.u32 %v2719, 16
        %v2856 = vrot.slane %v2854, 1
        %v2857 = vor.u32 %v2852, %v2856
        %v2859 = vshll.u32 %v2720, 16
        %v2861 = vrot.slane %v2859, 1
        %v2862 = vsel %vm1476, %v2857, %v2861
        %v2864 = vshrl.u32 %v2721, 16
        %v2866 = vshll.u32 %v2721, 16
        %v2868 = vrot.slane %v2866, 1
        %v2869 = vor.u32 %v2864, %v2868
        %v2871 = vshll.u32 %v2722, 16
        %v2873 = vrot.slane %v2871, 1
        %v2874 = vsel %vm1476, %v2869, %v2873
        %v2876 = vshrl.u32 %v2723, 16
        %v2878 = vshll.u32 %v2723, 16
        %v2880 = vrot.slane %v2878, 1
        %v2881 = vor.u32 %v2876, %v2880
        %v2883 = vshll.u32 %v2724, 16
        %v2885 = vrot.slane %v2883, 1
        %v2886 = vsel %vm1476, %v2881, %v2885
        %v2888 = vshrl.u32 %v2725, 16
        %v2890 = vshll.u32 %v2725, 16
        %v2892 = vrot.slane %v2890, 1
        %v2893 = vor.u32 %v2888, %v2892
        %v2895 = vshll.u32 %v2726, 16
        %v2897 = vrot.slane %v2895, 1
        %v2898 = vsel %vm1476, %v2893, %v2897
        %v2900 = vshrl.u32 %v2727, 16
        %v2902 = vshll.u32 %v2727, 16
        %v2904 = vrot.slane %v2902, 1
        %v2905 = vor.u32 %v2900, %v2904
        %v2907 = vshll.u32 %v2728, 16
        %v2909 = vrot.slane %v2907, 1
        %v2910 = vsel %vm1476, %v2905, %v2909
        %v2912 = vshrl.u32 %v2729, 16
        %v2914 = vshll.u32 %v2729, 16
        %v2916 = vrot.slane %v2914, 1
        %v2917 = vor.u32 %v2912, %v2916
        %v2919 = vshll.u32 %v2730, 16
        %v2921 = vrot.slane %v2919, 1
        %v2922 = vsel %vm1476, %v2917, %v2921
        %s2923 = scalar_lea.vmem %s3, 160
        %v2924 = vld [vmem:[%s2923] sm:$0xf]
        %v2925 = vld [vmem:[%s2923 + $0x4] sm:$0xf]
        %v2926 = vld [vmem:[%s2923 + $0x8] sm:$0xf]
        %v2927 = vld [vmem:[%s2923 + $0xc] sm:$0xf]
        %v2928 = vld [vmem:[%s2923 + $0x10] sm:$0xf]
        %v2929 = vld [vmem:[%s2923 + $0x14] sm:$0xf]
        %v2930 = vld [vmem:[%s2923 + $0x18] sm:$0xf]
        %v2931 = vld [vmem:[%s2923 + $0x1c] sm:$0xf]
        %v2940 = vunpack.c.l.b16 %v2924
        %v2941 = vunpack.c.l.b16 %v2925
        %v2942 = vunpack.c.l.b16 %v2926
        %v2943 = vunpack.c.l.b16 %v2927
        %v2944 = vunpack.c.l.b16 %v2928
        %v2945 = vunpack.c.l.b16 %v2929
        %v2946 = vunpack.c.l.b16 %v2930
        %v2947 = vunpack.c.l.b16 %v2931
        %v2948 = vpack.c.b16 %v2941, %v2940
        %v2949 = vpack.c.b16 %v2943, %v2942
        %v2950 = vpack.c.b16 %v2945, %v2944
        %v2951 = vpack.c.b16 %v2947, %v2946
        %v2957 = vsel %vm679, %v2742, 0
        %v2960 = vsel %vm679, %v2754, 0
        %v2963 = vsel %vm679, %v2766, 0
        %v2966 = vsel %vm679, %v2778, 0
        %v2969 = vsel %vm679, %v2790, 0
        %v2972 = vsel %vm679, %v2802, 0
        %v2975 = vsel %vm679, %v2814, 0
        %v2978 = vsel %vm679, %v2826, 0
        %v2981 = vsel %vm679, %v2838, 0
        %v2984 = vsel %vm679, %v2850, 0
        %v2987 = vsel %vm679, %v2862, 0
        %v2990 = vsel %vm679, %v2874, 0
        %v2993 = vsel %vm679, %v2886, 0
        %v2996 = vsel %vm679, %v2898, 0
        %v2999 = vsel %vm679, %v2910, 0
        %v3002 = vsel %vm679, %v2922, 0
        %3004 = vmatprep.subr.bf16.mxu0 0
        %3005 = vmatpush1.bf16.msra.mxu0 %v2948
        %3006 = vmatprep.subr.bf16.mxu0 0
        %3007 = vmatpush1.bf16.msra.mxu0 %v2949
        %3008 = vmatprep.subr.bf16.mxu0 0
        %3009 = vmatpush1.bf16.msra.mxu0 %v2950
        %3010 = vmatprep.subr.bf16.mxu0 0
        %3011 = vmatpush1.bf16.msra.mxu0 %v2951
        %3012 = vmatprep.subr.bf16.mxu0 0
        %3013 = vmatpush1.bf16.msra.mxu0 0
        %3014 = vmatprep.subr.bf16.mxu0 0
        %3015 = vmatpush1.bf16.msra.mxu0 0
        %3016 = vmatprep.subr.bf16.mxu0 0
        %3017 = vmatpush1.bf16.msra.mxu0 0
        %3018 = vmatprep.subr.bf16.mxu0 0
        %3019 = vmatpush1.bf16.msra.mxu0 0
        %3020 = vmatprep.subr.bf16.mxu0 0
        %3021 = vmatpush1.bf16.msra.mxu0 0
        %3022 = vmatprep.subr.bf16.mxu0 0
        %3023 = vmatpush1.bf16.msra.mxu0 0
        %3024 = vmatprep.subr.bf16.mxu0 0
        %3025 = vmatpush1.bf16.msra.mxu0 0
        %3026 = vmatprep.subr.bf16.mxu0 0
        %3027 = vmatpush1.bf16.msra.mxu0 0
        %3028 = vmatprep.subr.bf16.mxu0 0
        %3029 = vmatpush1.bf16.msra.mxu0 0
        %3030 = vmatprep.subr.bf16.mxu0 0
        %3031 = vmatpush1.bf16.msra.mxu0 0
        %3032 = vmatprep.subr.bf16.mxu0 0
        %3033 = vmatpush1.bf16.msra.mxu0 0
        %3034 = vmatprep.subr.bf16.mxu0 0
        %3035 = vmatpush1.bf16.msra.mxu0 0
        %3036 = vmatprep.mubr.bf16.mxu0 0
        %3037 = vmatmul.mubr.bf16.gmra.mrb[0].mxu0 %v2957
        %v3038 = vpop.f32.mrb[0].mxu0
        %v3039 = vadd.f32 0.0, %v3038
        %v3040 = vpop.f32.mrb[0].mxu0
        %v3041 = vpop.f32.mrb[0].mxu0
        %v3042 = vadd.f32 0.0, %v3041
        %v3043 = vpop.f32.mrb[0].mxu0
        %3044 = vmatprep.mubr.bf16.mxu0 0
        %3045 = vmatmul.mubr.bf16.gmra.mrb[0].mxu0 %v2960
        %v3046 = vpop.f32.mrb[0].mxu0
        %v3047 = vadd.f32 0.0, %v3046
        %v3048 = vpop.f32.mrb[0].mxu0
        %v3049 = vpop.f32.mrb[0].mxu0
        %v3050 = vadd.f32 0.0, %v3049
        %v3051 = vpop.f32.mrb[0].mxu0
        %3052 = vmatprep.mubr.bf16.mxu0 0
        %3053 = vmatmul.mubr.bf16.gmra.mrb[0].mxu0 %v2963
        %v3054 = vpop.f32.mrb[0].mxu0
        %v3055 = vadd.f32 0.0, %v3054
        %v3056 = vpop.f32.mrb[0].mxu0
        %v3057 = vpop.f32.mrb[0].mxu0
        %v3058 = vadd.f32 0.0, %v3057
        %v3059 = vpop.f32.mrb[0].mxu0
        %3060 = vmatprep.mubr.bf16.mxu0 0
        %3061 = vmatmul.mubr.bf16.gmra.mrb[0].mxu0 %v2966
        %v3062 = vpop.f32.mrb[0].mxu0
        %v3063 = vadd.f32 0.0, %v3062
        %v3064 = vpop.f32.mrb[0].mxu0
        %v3065 = vpop.f32.mrb[0].mxu0
        %v3066 = vadd.f32 0.0, %v3065
        %v3067 = vpop.f32.mrb[0].mxu0
        %3068 = vmatprep.mubr.bf16.mxu0 0
        %3069 = vmatmul.mubr.bf16.gmra.mrb[0].mxu0 %v2969
        %v3070 = vpop.f32.mrb[0].mxu0
        %v3071 = vadd.f32 0.0, %v3070
        %v3072 = vpop.f32.mrb[0].mxu0
        %v3073 = vpop.f32.mrb[0].mxu0
        %v3074 = vadd.f32 0.0, %v3073
        %v3075 = vpop.f32.mrb[0].mxu0
        %3076 = vmatprep.mubr.bf16.mxu0 0
        %3077 = vmatmul.mubr.bf16.gmra.mrb[0].mxu0 %v2972
        %v3078 = vpop.f32.mrb[0].mxu0
        %v3079 = vadd.f32 0.0, %v3078
        %v3080 = vpop.f32.mrb[0].mxu0
        %v3081 = vpop.f32.mrb[0].mxu0
        %v3082 = vadd.f32 0.0, %v3081
        %v3083 = vpop.f32.mrb[0].mxu0
        %3084 = vmatprep.mubr.bf16.mxu0 0
        %3085 = vmatmul.mubr.bf16.gmra.mrb[0].mxu0 %v2975
        %v3086 = vpop.f32.mrb[0].mxu0
        %v3087 = vadd.f32 0.0, %v3086
        %v3088 = vpop.f32.mrb[0].mxu0
        %v3089 = vpop.f32.mrb[0].mxu0
        %v3090 = vadd.f32 0.0, %v3089
        %v3091 = vpop.f32.mrb[0].mxu0
        %3092 = vmatprep.mubr.bf16.mxu0 0
        %3093 = vmatmul.mubr.bf16.gmra.mrb[0].mxu0 %v2978
        %v3094 = vpop.f32.mrb[0].mxu0
        %v3095 = vadd.f32 0.0, %v3094
        %v3096 = vpop.f32.mrb[0].mxu0
        %v3097 = vpop.f32.mrb[0].mxu0
        %v3098 = vadd.f32 0.0, %v3097
        %v3099 = vpop.f32.mrb[0].mxu0
        %3100 = vmatprep.mubr.bf16.mxu0 0
        %3101 = vmatmul.mubr.bf16.gmra.mrb[0].mxu0 %v2981
        %v3102 = vpop.f32.mrb[0].mxu0
        %v3103 = vadd.f32 0.0, %v3102
        %v3104 = vpop.f32.mrb[0].mxu0
        %v3105 = vpop.f32.mrb[0].mxu0
        %v3106 = vadd.f32 0.0, %v3105
        %v3107 = vpop.f32.mrb[0].mxu0
        %3108 = vmatprep.mubr.bf16.mxu0 0
        %3109 = vmatmul.mubr.bf16.gmra.mrb[0].mxu0 %v2984
        %v3110 = vpop.f32.mrb[0].mxu0
        %v3111 = vadd.f32 0.0, %v3110
        %v3112 = vpop.f32.mrb[0].mxu0
        %v3113 = vpop.f32.mrb[0].mxu0
        %v3114 = vadd.f32 0.0, %v3113
        %v3115 = vpop.f32.mrb[0].mxu0
        %3116 = vmatprep.mubr.bf16.mxu0 0
        %3117 = vmatmul.mubr.bf16.gmra.mrb[0].mxu0 %v2987
        %v3118 = vpop.f32.mrb[0].mxu0
        %v3119 = vadd.f32 0.0, %v3118
        %v3120 = vpop.f32.mrb[0].mxu0
        %v3121 = vpop.f32.mrb[0].mxu0
        %v3122 = vadd.f32 0.0, %v3121
        %v3123 = vpop.f32.mrb[0].mxu0
        %3124 = vmatprep.mubr.bf16.mxu0 0
        %3125 = vmatmul.mubr.bf16.gmra.mrb[0].mxu0 %v2990
        %v3126 = vpop.f32.mrb[0].mxu0
        %v3127 = vadd.f32 0.0, %v3126
        %v3128 = vpop.f32.mrb[0].mxu0
        %v3129 = vpop.f32.mrb[0].mxu0
        %v3130 = vadd.f32 0.0, %v3129
        %v3131 = vpop.f32.mrb[0].mxu0
        %3132 = vmatprep.mubr.bf16.mxu0 0
        %3133 = vmatmul.mubr.bf16.gmra.mrb[0].mxu0 %v2993
        %v3134 = vpop.f32.mrb[0].mxu0
        %v3135 = vadd.f32 0.0, %v3134
        %v3136 = vpop.f32.mrb[0].mxu0
        %v3137 = vpop.f32.mrb[0].mxu0
        %v3138 = vadd.f32 0.0, %v3137
        %v3139 = vpop.f32.mrb[0].mxu0
        %3140 = vmatprep.mubr.bf16.mxu0 0
        %3141 = vmatmul.mubr.bf16.gmra.mrb[0].mxu0 %v2996
        %v3142 = vpop.f32.mrb[0].mxu0
        %v3143 = vadd.f32 0.0, %v3142
        %v3144 = vpop.f32.mrb[0].mxu0
        %v3145 = vpop.f32.mrb[0].mxu0
        %v3146 = vadd.f32 0.0, %v3145
        %v3147 = vpop.f32.mrb[0].mxu0
        %3148 = vmatprep.mubr.bf16.mxu0 0
        %3149 = vmatmul.mubr.bf16.gmra.mrb[0].mxu0 %v2999
        %v3150 = vpop.f32.mrb[0].mxu0
        %v3151 = vadd.f32 0.0, %v3150
        %v3152 = vpop.f32.mrb[0].mxu0
        %v3153 = vpop.f32.mrb[0].mxu0
        %v3154 = vadd.f32 0.0, %v3153
        %v3155 = vpop.f32.mrb[0].mxu0
        %3156 = vmatprep.mubr.bf16.mxu0 0
        %3157 = vmatmul.mubr.bf16.gmra.mrb[0].mxu0 %v3002
        %v3158 = vpop.f32.mrb[0].mxu0
        %v3159 = vadd.f32 0.0, %v3158
        %v3160 = vpop.f32.mrb[0].mxu0
        %v3161 = vpop.f32.mrb[0].mxu0
        %v3162 = vadd.f32 0.0, %v3161
        %v3163 = vpop.f32.mrb[0].mxu0
        %3164 = vdwg.mxu0
        %v3165 = vadd.f32 %v2667, %v3039
        %v3166 = vadd.f32 %v2668, %v3042
        %v3167 = vadd.f32 %v2669, %v3047
        %v3168 = vadd.f32 %v2670, %v3050
        %v3169 = vadd.f32 %v2671, %v3055
        %v3170 = vadd.f32 %v2672, %v3058
        %v3171 = vadd.f32 %v2673, %v3063
        %v3172 = vadd.f32 %v2674, %v3066
        %v3173 = vadd.f32 %v2675, %v3071
        %v3174 = vadd.f32 %v2676, %v3074
        %v3175 = vadd.f32 %v2677, %v3079
        %v3176 = vadd.f32 %v2678, %v3082
        %v3177 = vadd.f32 %v2679, %v3087
        %v3178 = vadd.f32 %v2680, %v3090
        %v3179 = vadd.f32 %v2681, %v3095
        %v3180 = vadd.f32 %v2682, %v3098
        %v3181 = vadd.f32 %v2683, %v3103
        %v3182 = vadd.f32 %v2684, %v3106
        %v3183 = vadd.f32 %v2685, %v3111
        %v3184 = vadd.f32 %v2686, %v3114
        %v3185 = vadd.f32 %v2687, %v3119
        %v3186 = vadd.f32 %v2688, %v3122
        %v3187 = vadd.f32 %v2689, %v3127
        %v3188 = vadd.f32 %v2690, %v3130
        %v3189 = vadd.f32 %v2691, %v3135
        %v3190 = vadd.f32 %v2692, %v3138
        %v3191 = vadd.f32 %v2693, %v3143
        %v3192 = vadd.f32 %v2694, %v3146
        %v3193 = vadd.f32 %v2695, %v3151
        %v3194 = vadd.f32 %v2696, %v3154
        %v3195 = vadd.f32 %v2697, %v3159
        %v3196 = vadd.f32 %v2698, %v3162
        %s3197 = scalar_lea.vmem [#allocation2], 48
        %v3198 = vld [vmem:[%s3197] sm:$0x80]
        %v3199 = vld [vmem:[%s3197 + $0x8] sm:$0xff]
        %v3200 = vld [vmem:[%s3197 + $0x18] sm:$0x80]
        %v3201 = vld [vmem:[%s3197 + $0x20] sm:$0xff]
        %v3202 = vld [vmem:[%s3197 + $0x30] sm:$0x80]
        %v3203 = vld [vmem:[%s3197 + $0x38] sm:$0xff]
        %v3204 = vld [vmem:[%s3197 + $0x48] sm:$0x80]
        %v3205 = vld [vmem:[%s3197 + $0x50] sm:$0xff]
        %v3206 = vld [vmem:[%s3197 + $0x60] sm:$0x80]
        %v3207 = vld [vmem:[%s3197 + $0x68] sm:$0xff]
        %v3208 = vld [vmem:[%s3197 + $0x78] sm:$0x80]
        %v3209 = vld [vmem:[%s3197 + $0x80] sm:$0xff]
        %v3210 = vld [vmem:[%s3197 + $0x90] sm:$0x80]
        %v3211 = vld [vmem:[%s3197 + $0x98] sm:$0xff]
        %v3212 = vld [vmem:[%s3197 + $0xa8] sm:$0x80]
        %v3213 = vld [vmem:[%s3197 + $0xb0] sm:$0xff]
        %v3214 = vld [vmem:[%s3197 + $0xc0] sm:$0x80]
        %v3215 = vld [vmem:[%s3197 + $0xc8] sm:$0xff]
        %v3216 = vld [vmem:[%s3197 + $0xd8] sm:$0x80]
        %v3217 = vld [vmem:[%s3197 + $0xe0] sm:$0xff]
        %v3218 = vld [vmem:[%s3197 + $0xf0] sm:$0x80]
        %v3219 = vld [vmem:[%s3197 + $0xf8] sm:$0xff]
        %v3220 = vld [vmem:[%s3197 + $0x108] sm:$0x80]
        %v3221 = vld [vmem:[%s3197 + $0x110] sm:$0xff]
        %v3222 = vld [vmem:[%s3197 + $0x120] sm:$0x80]
        %v3223 = vld [vmem:[%s3197 + $0x128] sm:$0xff]
        %v3224 = vld [vmem:[%s3197 + $0x138] sm:$0x80]
        %v3225 = vld [vmem:[%s3197 + $0x140] sm:$0xff]
        %v3226 = vld [vmem:[%s3197 + $0x150] sm:$0x80]
        %v3227 = vld [vmem:[%s3197 + $0x158] sm:$0xff]
        %v3228 = vld [vmem:[%s3197 + $0x168] sm:$0x80]
        %v3229 = vld [vmem:[%s3197 + $0x170] sm:$0xff]
        %v3231 = vshrl.u32 %v3198, 16
        %v3233 = vrot.slane %v3231, 7
        %v3235 = vshrl.u32 %v3199, 16
        %v3237 = vrot.slane %v3235, 7
        %v3238 = vshll.u32 %v3199, 16
        %v3240 = vor.u32 %v3237, %v3238
        %v3241 = vsel %vm784, %v3233, %v3240
        %v3243 = vshrl.u32 %v3200, 16
        %v3245 = vrot.slane %v3243, 7
        %v3247 = vshrl.u32 %v3201, 16
        %v3249 = vrot.slane %v3247, 7
        %v3250 = vshll.u32 %v3201, 16
        %v3252 = vor.u32 %v3249, %v3250
        %v3253 = vsel %vm784, %v3245, %v3252
        %v3255 = vshrl.u32 %v3202, 16
        %v3257 = vrot.slane %v3255, 7
        %v3259 = vshrl.u32 %v3203, 16
        %v3261 = vrot.slane %v3259, 7
        %v3262 = vshll.u32 %v3203, 16
        %v3264 = vor.u32 %v3261, %v3262
        %v3265 = vsel %vm784, %v3257, %v3264
        %v3267 = vshrl.u32 %v3204, 16
        %v3269 = vrot.slane %v3267, 7
        %v3271 = vshrl.u32 %v3205, 16
        %v3273 = vrot.slane %v3271, 7
        %v3274 = vshll.u32 %v3205, 16
        %v3276 = vor.u32 %v3273, %v3274
        %v3277 = vsel %vm784, %v3269, %v3276
        %v3279 = vshrl.u32 %v3206, 16
        %v3281 = vrot.slane %v3279, 7
        %v3283 = vshrl.u32 %v3207, 16
        %v3285 = vrot.slane %v3283, 7
        %v3286 = vshll.u32 %v3207, 16
        %v3288 = vor.u32 %v3285, %v3286
        %v3289 = vsel %vm784, %v3281, %v3288
        %v3291 = vshrl.u32 %v3208, 16
        %v3293 = vrot.slane %v3291, 7
        %v3295 = vshrl.u32 %v3209, 16
        %v3297 = vrot.slane %v3295, 7
        %v3298 = vshll.u32 %v3209, 16
        %v3300 = vor.u32 %v3297, %v3298
        %v3301 = vsel %vm784, %v3293, %v3300
        %v3303 = vshrl.u32 %v3210, 16
        %v3305 = vrot.slane %v3303, 7
        %v3307 = vshrl.u32 %v3211, 16
        %v3309 = vrot.slane %v3307, 7
        %v3310 = vshll.u32 %v3211, 16
        %v3312 = vor.u32 %v3309, %v3310
        %v3313 = vsel %vm784, %v3305, %v3312
        %v3315 = vshrl.u32 %v3212, 16
        %v3317 = vrot.slane %v3315, 7
        %v3319 = vshrl.u32 %v3213, 16
        %v3321 = vrot.slane %v3319, 7
        %v3322 = vshll.u32 %v3213, 16
        %v3324 = vor.u32 %v3321, %v3322
        %v3325 = vsel %vm784, %v3317, %v3324
        %v3327 = vshrl.u32 %v3214, 16
        %v3329 = vrot.slane %v3327, 7
        %v3331 = vshrl.u32 %v3215, 16
        %v3333 = vrot.slane %v3331, 7
        %v3334 = vshll.u32 %v3215, 16
        %v3336 = vor.u32 %v3333, %v3334
        %v3337 = vsel %vm784, %v3329, %v3336
        %v3339 = vshrl.u32 %v3216, 16
        %v3341 = vrot.slane %v3339, 7
        %v3343 = vshrl.u32 %v3217, 16
        %v3345 = vrot.slane %v3343, 7
        %v3346 = vshll.u32 %v3217, 16
        %v3348 = vor.u32 %v3345, %v3346
        %v3349 = vsel %vm784, %v3341, %v3348
        %v3351 = vshrl.u32 %v3218, 16
        %v3353 = vrot.slane %v3351, 7
        %v3355 = vshrl.u32 %v3219, 16
        %v3357 = vrot.slane %v3355, 7
        %v3358 = vshll.u32 %v3219, 16
        %v3360 = vor.u32 %v3357, %v3358
        %v3361 = vsel %vm784, %v3353, %v3360
        %v3363 = vshrl.u32 %v3220, 16
        %v3365 = vrot.slane %v3363, 7
        %v3367 = vshrl.u32 %v3221, 16
        %v3369 = vrot.slane %v3367, 7
        %v3370 = vshll.u32 %v3221, 16
        %v3372 = vor.u32 %v3369, %v3370
        %v3373 = vsel %vm784, %v3365, %v3372
        %v3375 = vshrl.u32 %v3222, 16
        %v3377 = vrot.slane %v3375, 7
        %v3379 = vshrl.u32 %v3223, 16
        %v3381 = vrot.slane %v3379, 7
        %v3382 = vshll.u32 %v3223, 16
        %v3384 = vor.u32 %v3381, %v3382
        %v3385 = vsel %vm784, %v3377, %v3384
        %v3387 = vshrl.u32 %v3224, 16
        %v3389 = vrot.slane %v3387, 7
        %v3391 = vshrl.u32 %v3225, 16
        %v3393 = vrot.slane %v3391, 7
        %v3394 = vshll.u32 %v3225, 16
        %v3396 = vor.u32 %v3393, %v3394
        %v3397 = vsel %vm784, %v3389, %v3396
        %v3399 = vshrl.u32 %v3226, 16
        %v3401 = vrot.slane %v3399, 7
        %v3403 = vshrl.u32 %v3227, 16
        %v3405 = vrot.slane %v3403, 7
        %v3406 = vshll.u32 %v3227, 16
        %v3408 = vor.u32 %v3405, %v3406
        %v3409 = vsel %vm784, %v3401, %v3408
        %v3411 = vshrl.u32 %v3228, 16
        %v3413 = vrot.slane %v3411, 7
        %v3415 = vshrl.u32 %v3229, 16
        %v3417 = vrot.slane %v3415, 7
        %v3418 = vshll.u32 %v3229, 16
        %v3420 = vor.u32 %v3417, %v3418
        %v3421 = vsel %vm784, %v3413, %v3420
        %s3422 = scalar_lea.vmem %s3, 192
        %v3423 = vld [vmem:[%s3422] sm:$0xf]
        %v3424 = vld [vmem:[%s3422 + $0x4] sm:$0xf]
        %v3425 = vld [vmem:[%s3422 + $0x8] sm:$0xf]
        %v3426 = vld [vmem:[%s3422 + $0xc] sm:$0xf]
        %v3427 = vld [vmem:[%s3422 + $0x10] sm:$0xf]
        %v3428 = vld [vmem:[%s3422 + $0x14] sm:$0xf]
        %v3429 = vld [vmem:[%s3422 + $0x18] sm:$0xf]
        %v3430 = vld [vmem:[%s3422 + $0x1c] sm:$0xf]
        %v3439 = vunpack.c.l.b16 %v3423
        %v3440 = vunpack.c.l.b16 %v3424
        %v3441 = vunpack.c.l.b16 %v3425
        %v3442 = vunpack.c.l.b16 %v3426
        %v3443 = vunpack.c.l.b16 %v3427
        %v3444 = vunpack.c.l.b16 %v3428
        %v3445 = vunpack.c.l.b16 %v3429
        %v3446 = vunpack.c.l.b16 %v3430
        %v3447 = vpack.c.b16 %v3440, %v3439
        %v3448 = vpack.c.b16 %v3442, %v3441
        %v3449 = vpack.c.b16 %v3444, %v3443
        %v3450 = vpack.c.b16 %v3446, %v3445
        %v3456 = vsel %vm679, %v3241, 0
        %v3459 = vsel %vm679, %v3253, 0
        %v3462 = vsel %vm679, %v3265, 0
        %v3465 = vsel %vm679, %v3277, 0
        %v3468 = vsel %vm679, %v3289, 0
        %v3471 = vsel %vm679, %v3301, 0
        %v3474 = vsel %vm679, %v3313, 0
        %v3477 = vsel %vm679, %v3325, 0
        %v3480 = vsel %vm679, %v3337, 0
        %v3483 = vsel %vm679, %v3349, 0
        %v3486 = vsel %vm679, %v3361, 0
        %v3489 = vsel %vm679, %v3373, 0
        %v3492 = vsel %vm679, %v3385, 0
        %v3495 = vsel %vm679, %v3397, 0
        %v3498 = vsel %vm679, %v3409, 0
        %v3501 = vsel %vm679, %v3421, 0
        %3503 = vmatprep.subr.bf16.mxu0 0
        %3504 = vmatpush1.bf16.msra.mxu0 %v3447
        %3505 = vmatprep.subr.bf16.mxu0 0
        %3506 = vmatpush1.bf16.msra.mxu0 %v3448
        %3507 = vmatprep.subr.bf16.mxu0 0
        %3508 = vmatpush1.bf16.msra.mxu0 %v3449
        %3509 = vmatprep.subr.bf16.mxu0 0
        %3510 = vmatpush1.bf16.msra.mxu0 %v3450
        %3511 = vmatprep.subr.bf16.mxu0 0
        %3512 = vmatpush1.bf16.msra.mxu0 0
        %3513 = vmatprep.subr.bf16.mxu0 0
        %3514 = vmatpush1.bf16.msra.mxu0 0
        %3515 = vmatprep.subr.bf16.mxu0 0
        %3516 = vmatpush1.bf16.msra.mxu0 0
        %3517 = vmatprep.subr.bf16.mxu0 0
        %3518 = vmatpush1.bf16.msra.mxu0 0
        %3519 = vmatprep.subr.bf16.mxu0 0
        %3520 = vmatpush1.bf16.msra.mxu0 0
        %3521 = vmatprep.subr.bf16.mxu0 0
        %3522 = vmatpush1.bf16.msra.mxu0 0
        %3523 = vmatprep.subr.bf16.mxu0 0
        %3524 = vmatpush1.bf16.msra.mxu0 0
        %3525 = vmatprep.subr.bf16.mxu0 0
        %3526 = vmatpush1.bf16.msra.mxu0 0
        %3527 = vmatprep.subr.bf16.mxu0 0
        %3528 = vmatpush1.bf16.msra.mxu0 0
        %3529 = vmatprep.subr.bf16.mxu0 0
        %3530 = vmatpush1.bf16.msra.mxu0 0
        %3531 = vmatprep.subr.bf16.mxu0 0
        %3532 = vmatpush1.bf16.msra.mxu0 0
        %3533 = vmatprep.subr.bf16.mxu0 0
        %3534 = vmatpush1.bf16.msra.mxu0 0
        %3535 = vmatprep.mubr.bf16.mxu0 0
        %3536 = vmatmul.mubr.bf16.gmra.mrb[0].mxu0 %v3456
        %v3537 = vpop.f32.mrb[0].mxu0
        %v3538 = vadd.f32 0.0, %v3537
        %v3539 = vpop.f32.mrb[0].mxu0
        %v3540 = vpop.f32.mrb[0].mxu0
        %v3541 = vadd.f32 0.0, %v3540
        %v3542 = vpop.f32.mrb[0].mxu0
        %3543 = vmatprep.mubr.bf16.mxu0 0
        %3544 = vmatmul.mubr.bf16.gmra.mrb[0].mxu0 %v3459
        %v3545 = vpop.f32.mrb[0].mxu0
        %v3546 = vadd.f32 0.0, %v3545
        %v3547 = vpop.f32.mrb[0].mxu0
        %v3548 = vpop.f32.mrb[0].mxu0
        %v3549 = vadd.f32 0.0, %v3548
        %v3550 = vpop.f32.mrb[0].mxu0
        %3551 = vmatprep.mubr.bf16.mxu0 0
        %3552 = vmatmul.mubr.bf16.gmra.mrb[0].mxu0 %v3462
        %v3553 = vpop.f32.mrb[0].mxu0
        %v3554 = vadd.f32 0.0, %v3553
        %v3555 = vpop.f32.mrb[0].mxu0
        %v3556 = vpop.f32.mrb[0].mxu0
        %v3557 = vadd.f32 0.0, %v3556
        %v3558 = vpop.f32.mrb[0].mxu0
        %3559 = vmatprep.mubr.bf16.mxu0 0
        %3560 = vmatmul.mubr.bf16.gmra.mrb[0].mxu0 %v3465
        %v3561 = vpop.f32.mrb[0].mxu0
        %v3562 = vadd.f32 0.0, %v3561
        %v3563 = vpop.f32.mrb[0].mxu0
        %v3564 = vpop.f32.mrb[0].mxu0
        %v3565 = vadd.f32 0.0, %v3564
        %v3566 = vpop.f32.mrb[0].mxu0
        %3567 = vmatprep.mubr.bf16.mxu0 0
        %3568 = vmatmul.mubr.bf16.gmra.mrb[0].mxu0 %v3468
        %v3569 = vpop.f32.mrb[0].mxu0
        %v3570 = vadd.f32 0.0, %v3569
        %v3571 = vpop.f32.mrb[0].mxu0
        %v3572 = vpop.f32.mrb[0].mxu0
        %v3573 = vadd.f32 0.0, %v3572
        %v3574 = vpop.f32.mrb[0].mxu0
        %3575 = vmatprep.mubr.bf16.mxu0 0
        %3576 = vmatmul.mubr.bf16.gmra.mrb[0].mxu0 %v3471
        %v3577 = vpop.f32.mrb[0].mxu0
        %v3578 = vadd.f32 0.0, %v3577
        %v3579 = vpop.f32.mrb[0].mxu0
        %v3580 = vpop.f32.mrb[0].mxu0
        %v3581 = vadd.f32 0.0, %v3580
        %v3582 = vpop.f32.mrb[0].mxu0
        %3583 = vmatprep.mubr.bf16.mxu0 0
        %3584 = vmatmul.mubr.bf16.gmra.mrb[0].mxu0 %v3474
        %v3585 = vpop.f32.mrb[0].mxu0
        %v3586 = vadd.f32 0.0, %v3585
        %v3587 = vpop.f32.mrb[0].mxu0
        %v3588 = vpop.f32.mrb[0].mxu0
        %v3589 = vadd.f32 0.0, %v3588
        %v3590 = vpop.f32.mrb[0].mxu0
        %3591 = vmatprep.mubr.bf16.mxu0 0
        %3592 = vmatmul.mubr.bf16.gmra.mrb[0].mxu0 %v3477
        %v3593 = vpop.f32.mrb[0].mxu0
        %v3594 = vadd.f32 0.0, %v3593
        %v3595 = vpop.f32.mrb[0].mxu0
        %v3596 = vpop.f32.mrb[0].mxu0
        %v3597 = vadd.f32 0.0, %v3596
        %v3598 = vpop.f32.mrb[0].mxu0
        %3599 = vmatprep.mubr.bf16.mxu0 0
        %3600 = vmatmul.mubr.bf16.gmra.mrb[0].mxu0 %v3480
        %v3601 = vpop.f32.mrb[0].mxu0
        %v3602 = vadd.f32 0.0, %v3601
        %v3603 = vpop.f32.mrb[0].mxu0
        %v3604 = vpop.f32.mrb[0].mxu0
        %v3605 = vadd.f32 0.0, %v3604
        %v3606 = vpop.f32.mrb[0].mxu0
        %3607 = vmatprep.mubr.bf16.mxu0 0
        %3608 = vmatmul.mubr.bf16.gmra.mrb[0].mxu0 %v3483
        %v3609 = vpop.f32.mrb[0].mxu0
        %v3610 = vadd.f32 0.0, %v3609
        %v3611 = vpop.f32.mrb[0].mxu0
        %v3612 = vpop.f32.mrb[0].mxu0
        %v3613 = vadd.f32 0.0, %v3612
        %v3614 = vpop.f32.mrb[0].mxu0
        %3615 = vmatprep.mubr.bf16.mxu0 0
        %3616 = vmatmul.mubr.bf16.gmra.mrb[0].mxu0 %v3486
        %v3617 = vpop.f32.mrb[0].mxu0
        %v3618 = vadd.f32 0.0, %v3617
        %v3619 = vpop.f32.mrb[0].mxu0
        %v3620 = vpop.f32.mrb[0].mxu0
        %v3621 = vadd.f32 0.0, %v3620
        %v3622 = vpop.f32.mrb[0].mxu0
        %3623 = vmatprep.mubr.bf16.mxu0 0
        %3624 = vmatmul.mubr.bf16.gmra.mrb[0].mxu0 %v3489
        %v3625 = vpop.f32.mrb[0].mxu0
        %v3626 = vadd.f32 0.0, %v3625
        %v3627 = vpop.f32.mrb[0].mxu0
        %v3628 = vpop.f32.mrb[0].mxu0
        %v3629 = vadd.f32 0.0, %v3628
        %v3630 = vpop.f32.mrb[0].mxu0
        %3631 = vmatprep.mubr.bf16.mxu0 0
        %3632 = vmatmul.mubr.bf16.gmra.mrb[0].mxu0 %v3492
        %v3633 = vpop.f32.mrb[0].mxu0
        %v3634 = vadd.f32 0.0, %v3633
        %v3635 = vpop.f32.mrb[0].mxu0
        %v3636 = vpop.f32.mrb[0].mxu0
        %v3637 = vadd.f32 0.0, %v3636
        %v3638 = vpop.f32.mrb[0].mxu0
        %3639 = vmatprep.mubr.bf16.mxu0 0
        %3640 = vmatmul.mubr.bf16.gmra.mrb[0].mxu0 %v3495
        %v3641 = vpop.f32.mrb[0].mxu0
        %v3642 = vadd.f32 0.0, %v3641
        %v3643 = vpop.f32.mrb[0].mxu0
        %v3644 = vpop.f32.mrb[0].mxu0
        %v3645 = vadd.f32 0.0, %v3644
        %v3646 = vpop.f32.mrb[0].mxu0
        %3647 = vmatprep.mubr.bf16.mxu0 0
        %3648 = vmatmul.mubr.bf16.gmra.mrb[0].mxu0 %v3498
        %v3649 = vpop.f32.mrb[0].mxu0
        %v3650 = vadd.f32 0.0, %v3649
        %v3651 = vpop.f32.mrb[0].mxu0
        %v3652 = vpop.f32.mrb[0].mxu0
        %v3653 = vadd.f32 0.0, %v3652
        %v3654 = vpop.f32.mrb[0].mxu0
        %3655 = vmatprep.mubr.bf16.mxu0 0
        %3656 = vmatmul.mubr.bf16.gmra.mrb[0].mxu0 %v3501
        %v3657 = vpop.f32.mrb[0].mxu0
        %v3658 = vadd.f32 0.0, %v3657
        %v3659 = vpop.f32.mrb[0].mxu0
        %v3660 = vpop.f32.mrb[0].mxu0
        %v3661 = vadd.f32 0.0, %v3660
        %v3662 = vpop.f32.mrb[0].mxu0
        %3663 = vdwg.mxu0
        %v3664 = vadd.f32 %v3165, %v3538
        %v3665 = vadd.f32 %v3166, %v3541
        %v3666 = vadd.f32 %v3167, %v3546
        %v3667 = vadd.f32 %v3168, %v3549
        %v3668 = vadd.f32 %v3169, %v3554
        %v3669 = vadd.f32 %v3170, %v3557
        %v3670 = vadd.f32 %v3171, %v3562
        %v3671 = vadd.f32 %v3172, %v3565
        %v3672 = vadd.f32 %v3173, %v3570
        %v3673 = vadd.f32 %v3174, %v3573
        %v3674 = vadd.f32 %v3175, %v3578
        %v3675 = vadd.f32 %v3176, %v3581
        %v3676 = vadd.f32 %v3177, %v3586
        %v3677 = vadd.f32 %v3178, %v3589
        %v3678 = vadd.f32 %v3179, %v3594
        %v3679 = vadd.f32 %v3180, %v3597
        %v3680 = vadd.f32 %v3181, %v3602
        %v3681 = vadd.f32 %v3182, %v3605
        %v3682 = vadd.f32 %v3183, %v3610
        %v3683 = vadd.f32 %v3184, %v3613
        %v3684 = vadd.f32 %v3185, %v3618
        %v3685 = vadd.f32 %v3186, %v3621
        %v3686 = vadd.f32 %v3187, %v3626
        %v3687 = vadd.f32 %v3188, %v3629
        %v3688 = vadd.f32 %v3189, %v3634
        %v3689 = vadd.f32 %v3190, %v3637
        %v3690 = vadd.f32 %v3191, %v3642
        %v3691 = vadd.f32 %v3192, %v3645
        %v3692 = vadd.f32 %v3193, %v3650
        %v3693 = vadd.f32 %v3194, %v3653
        %v3694 = vadd.f32 %v3195, %v3658
        %v3695 = vadd.f32 %v3196, %v3661
        %s3696 = scalar_lea.vmem %s3, 224
        %v3697 = vld [vmem:[%s3696] sm:$0xf]
        %v3698 = vld [vmem:[%s3696 + $0x4] sm:$0xf]
        %v3699 = vld [vmem:[%s3696 + $0x8] sm:$0xf]
        %v3700 = vld [vmem:[%s3696 + $0xc] sm:$0xf]
        %v3701 = vld [vmem:[%s3696 + $0x10] sm:$0xf]
        %v3702 = vld [vmem:[%s3696 + $0x14] sm:$0xf]
        %v3703 = vld [vmem:[%s3696 + $0x18] sm:$0xf]
        %v3704 = vld [vmem:[%s3696 + $0x1c] sm:$0xf]
        %v3713 = vunpack.c.l.b16 %v3697
        %v3714 = vunpack.c.l.b16 %v3698
        %v3715 = vunpack.c.l.b16 %v3699
        %v3716 = vunpack.c.l.b16 %v3700
        %v3717 = vunpack.c.l.b16 %v3701
        %v3718 = vunpack.c.l.b16 %v3702
        %v3719 = vunpack.c.l.b16 %v3703
        %v3720 = vunpack.c.l.b16 %v3704
        %v3721 = vpack.c.b16 %v3714, %v3713
        %v3722 = vpack.c.b16 %v3716, %v3715
        %v3723 = vpack.c.b16 %v3718, %v3717
        %v3724 = vpack.c.b16 %v3720, %v3719
        %v3729 = vsel %vm679, %v3199, 0
        %v3731 = vsel %vm679, %v3201, 0
        %v3733 = vsel %vm679, %v3203, 0
        %v3735 = vsel %vm679, %v3205, 0
        %v3737 = vsel %vm679, %v3207, 0
        %v3739 = vsel %vm679, %v3209, 0
        %v3741 = vsel %vm679, %v3211, 0
        %v3743 = vsel %vm679, %v3213, 0
        %v3745 = vsel %vm679, %v3215, 0
        %v3747 = vsel %vm679, %v3217, 0
        %v3749 = vsel %vm679, %v3219, 0
        %v3751 = vsel %vm679, %v3221, 0
        %v3753 = vsel %vm679, %v3223, 0
        %v3755 = vsel %vm679, %v3225, 0
        %v3757 = vsel %vm679, %v3227, 0
        %v3759 = vsel %vm679, %v3229, 0
        %3761 = vmatprep.subr.bf16.mxu0 0
        %3762 = vmatpush1.bf16.msra.mxu0 %v3721
        %3763 = vmatprep.subr.bf16.mxu0 0
        %3764 = vmatpush1.bf16.msra.mxu0 %v3722
        %3765 = vmatprep.subr.bf16.mxu0 0
        %3766 = vmatpush1.bf16.msra.mxu0 %v3723
        %3767 = vmatprep.subr.bf16.mxu0 0
        %3768 = vmatpush1.bf16.msra.mxu0 %v3724
        %3769 = vmatprep.subr.bf16.mxu0 0
        %3770 = vmatpush1.bf16.msra.mxu0 0
        %3771 = vmatprep.subr.bf16.mxu0 0
        %3772 = vmatpush1.bf16.msra.mxu0 0
        %3773 = vmatprep.subr.bf16.mxu0 0
        %3774 = vmatpush1.bf16.msra.mxu0 0
        %3775 = vmatprep.subr.bf16.mxu0 0
        %3776 = vmatpush1.bf16.msra.mxu0 0
        %3777 = vmatprep.subr.bf16.mxu0 0
        %3778 = vmatpush1.bf16.msra.mxu0 0
        %3779 = vmatprep.subr.bf16.mxu0 0
        %3780 = vmatpush1.bf16.msra.mxu0 0
        %3781 = vmatprep.subr.bf16.mxu0 0
        %3782 = vmatpush1.bf16.msra.mxu0 0
        %3783 = vmatprep.subr.bf16.mxu0 0
        %3784 = vmatpush1.bf16.msra.mxu0 0
        %3785 = vmatprep.subr.bf16.mxu0 0
        %3786 = vmatpush1.bf16.msra.mxu0 0
        %3787 = vmatprep.subr.bf16.mxu0 0
        %3788 = vmatpush1.bf16.msra.mxu0 0
        %3789 = vmatprep.subr.bf16.mxu0 0
        %3790 = vmatpush1.bf16.msra.mxu0 0
        %3791 = vmatprep.subr.bf16.mxu0 0
        %3792 = vmatpush1.bf16.msra.mxu0 0
        %3793 = vmatprep.mubr.bf16.mxu0 0
        %3794 = vmatmul.mubr.bf16.gmra.mrb[0].mxu0 %v3729
        %v3795 = vpop.f32.mrb[0].mxu0
        %v3796 = vadd.f32 0.0, %v3795
        %v3797 = vpop.f32.mrb[0].mxu0
        %v3798 = vpop.f32.mrb[0].mxu0
        %v3799 = vadd.f32 0.0, %v3798
        %v3800 = vpop.f32.mrb[0].mxu0
        %3801 = vmatprep.mubr.bf16.mxu0 0
        %3802 = vmatmul.mubr.bf16.gmra.mrb[0].mxu0 %v3731
        %v3803 = vpop.f32.mrb[0].mxu0
        %v3804 = vadd.f32 0.0, %v3803
        %v3805 = vpop.f32.mrb[0].mxu0
        %v3806 = vpop.f32.mrb[0].mxu0
        %v3807 = vadd.f32 0.0, %v3806
        %v3808 = vpop.f32.mrb[0].mxu0
        %3809 = vmatprep.mubr.bf16.mxu0 0
        %3810 = vmatmul.mubr.bf16.gmra.mrb[0].mxu0 %v3733
        %v3811 = vpop.f32.mrb[0].mxu0
        %v3812 = vadd.f32 0.0, %v3811
        %v3813 = vpop.f32.mrb[0].mxu0
        %v3814 = vpop.f32.mrb[0].mxu0
        %v3815 = vadd.f32 0.0, %v3814
        %v3816 = vpop.f32.mrb[0].mxu0
        %3817 = vmatprep.mubr.bf16.mxu0 0
        %3818 = vmatmul.mubr.bf16.gmra.mrb[0].mxu0 %v3735
        %v3819 = vpop.f32.mrb[0].mxu0
        %v3820 = vadd.f32 0.0, %v3819
        %v3821 = vpop.f32.mrb[0].mxu0
        %v3822 = vpop.f32.mrb[0].mxu0
        %v3823 = vadd.f32 0.0, %v3822
        %v3824 = vpop.f32.mrb[0].mxu0
        %3825 = vmatprep.mubr.bf16.mxu0 0
        %3826 = vmatmul.mubr.bf16.gmra.mrb[0].mxu0 %v3737
        %v3827 = vpop.f32.mrb[0].mxu0
        %v3828 = vadd.f32 0.0, %v3827
        %v3829 = vpop.f32.mrb[0].mxu0
        %v3830 = vpop.f32.mrb[0].mxu0
        %v3831 = vadd.f32 0.0, %v3830
        %v3832 = vpop.f32.mrb[0].mxu0
        %3833 = vmatprep.mubr.bf16.mxu0 0
        %3834 = vmatmul.mubr.bf16.gmra.mrb[0].mxu0 %v3739
        %v3835 = vpop.f32.mrb[0].mxu0
        %v3836 = vadd.f32 0.0, %v3835
        %v3837 = vpop.f32.mrb[0].mxu0
        %v3838 = vpop.f32.mrb[0].mxu0
        %v3839 = vadd.f32 0.0, %v3838
        %v3840 = vpop.f32.mrb[0].mxu0
        %3841 = vmatprep.mubr.bf16.mxu0 0
        %3842 = vmatmul.mubr.bf16.gmra.mrb[0].mxu0 %v3741
        %v3843 = vpop.f32.mrb[0].mxu0
        %v3844 = vadd.f32 0.0, %v3843
        %v3845 = vpop.f32.mrb[0].mxu0
        %v3846 = vpop.f32.mrb[0].mxu0
        %v3847 = vadd.f32 0.0, %v3846
        %v3848 = vpop.f32.mrb[0].mxu0
        %3849 = vmatprep.mubr.bf16.mxu0 0
        %3850 = vmatmul.mubr.bf16.gmra.mrb[0].mxu0 %v3743
        %v3851 = vpop.f32.mrb[0].mxu0
        %v3852 = vadd.f32 0.0, %v3851
        %v3853 = vpop.f32.mrb[0].mxu0
        %v3854 = vpop.f32.mrb[0].mxu0
        %v3855 = vadd.f32 0.0, %v3854
        %v3856 = vpop.f32.mrb[0].mxu0
        %3857 = vmatprep.mubr.bf16.mxu0 0
        %3858 = vmatmul.mubr.bf16.gmra.mrb[0].mxu0 %v3745
        %v3859 = vpop.f32.mrb[0].mxu0
        %v3860 = vadd.f32 0.0, %v3859
        %v3861 = vpop.f32.mrb[0].mxu0
        %v3862 = vpop.f32.mrb[0].mxu0
        %v3863 = vadd.f32 0.0, %v3862
        %v3864 = vpop.f32.mrb[0].mxu0
        %3865 = vmatprep.mubr.bf16.mxu0 0
        %3866 = vmatmul.mubr.bf16.gmra.mrb[0].mxu0 %v3747
        %v3867 = vpop.f32.mrb[0].mxu0
        %v3868 = vadd.f32 0.0, %v3867
        %v3869 = vpop.f32.mrb[0].mxu0
        %v3870 = vpop.f32.mrb[0].mxu0
        %v3871 = vadd.f32 0.0, %v3870
        %v3872 = vpop.f32.mrb[0].mxu0
        %3873 = vmatprep.mubr.bf16.mxu0 0
        %3874 = vmatmul.mubr.bf16.gmra.mrb[0].mxu0 %v3749
        %v3875 = vpop.f32.mrb[0].mxu0
        %v3876 = vadd.f32 0.0, %v3875
        %v3877 = vpop.f32.mrb[0].mxu0
        %v3878 = vpop.f32.mrb[0].mxu0
        %v3879 = vadd.f32 0.0, %v3878
        %v3880 = vpop.f32.mrb[0].mxu0
        %3881 = vmatprep.mubr.bf16.mxu0 0
        %3882 = vmatmul.mubr.bf16.gmra.mrb[0].mxu0 %v3751
        %v3883 = vpop.f32.mrb[0].mxu0
        %v3884 = vadd.f32 0.0, %v3883
        %v3885 = vpop.f32.mrb[0].mxu0
        %v3886 = vpop.f32.mrb[0].mxu0
        %v3887 = vadd.f32 0.0, %v3886
        %v3888 = vpop.f32.mrb[0].mxu0
        %3889 = vmatprep.mubr.bf16.mxu0 0
        %3890 = vmatmul.mubr.bf16.gmra.mrb[0].mxu0 %v3753
        %v3891 = vpop.f32.mrb[0].mxu0
        %v3892 = vadd.f32 0.0, %v3891
        %v3893 = vpop.f32.mrb[0].mxu0
        %v3894 = vpop.f32.mrb[0].mxu0
        %v3895 = vadd.f32 0.0, %v3894
        %v3896 = vpop.f32.mrb[0].mxu0
        %3897 = vmatprep.mubr.bf16.mxu0 0
        %3898 = vmatmul.mubr.bf16.gmra.mrb[0].mxu0 %v3755
        %v3899 = vpop.f32.mrb[0].mxu0
        %v3900 = vadd.f32 0.0, %v3899
        %v3901 = vpop.f32.mrb[0].mxu0
        %v3902 = vpop.f32.mrb[0].mxu0
        %v3903 = vadd.f32 0.0, %v3902
        %v3904 = vpop.f32.mrb[0].mxu0
        %3905 = vmatprep.mubr.bf16.mxu0 0
        %3906 = vmatmul.mubr.bf16.gmra.mrb[0].mxu0 %v3757
        %v3907 = vpop.f32.mrb[0].mxu0
        %v3908 = vadd.f32 0.0, %v3907
        %v3909 = vpop.f32.mrb[0].mxu0
        %v3910 = vpop.f32.mrb[0].mxu0
        %v3911 = vadd.f32 0.0, %v3910
        %v3912 = vpop.f32.mrb[0].mxu0
        %3913 = vmatprep.mubr.bf16.mxu0 0
        %3914 = vmatmul.mubr.bf16.gmra.mrb[0].mxu0 %v3759
        %v3915 = vpop.f32.mrb[0].mxu0
        %v3916 = vadd.f32 0.0, %v3915
        %v3917 = vpop.f32.mrb[0].mxu0
        %v3918 = vpop.f32.mrb[0].mxu0
        %v3919 = vadd.f32 0.0, %v3918
        %v3920 = vpop.f32.mrb[0].mxu0
        %3921 = vdwg.mxu0
        %v3922 = vadd.f32 %v3664, %v3796
        %v3923 = vadd.f32 %v3665, %v3799
        %v3924 = vadd.f32 %v3666, %v3804
        %v3925 = vadd.f32 %v3667, %v3807
        %v3926 = vadd.f32 %v3668, %v3812
        %v3927 = vadd.f32 %v3669, %v3815
        %v3928 = vadd.f32 %v3670, %v3820
        %v3929 = vadd.f32 %v3671, %v3823
        %v3930 = vadd.f32 %v3672, %v3828
        %v3931 = vadd.f32 %v3673, %v3831
        %v3932 = vadd.f32 %v3674, %v3836
        %v3933 = vadd.f32 %v3675, %v3839
        %v3934 = vadd.f32 %v3676, %v3844
        %v3935 = vadd.f32 %v3677, %v3847
        %v3936 = vadd.f32 %v3678, %v3852
        %v3937 = vadd.f32 %v3679, %v3855
        %v3938 = vadd.f32 %v3680, %v3860
        %v3939 = vadd.f32 %v3681, %v3863
        %v3940 = vadd.f32 %v3682, %v3868
        %v3941 = vadd.f32 %v3683, %v3871
        %v3942 = vadd.f32 %v3684, %v3876
        %v3943 = vadd.f32 %v3685, %v3879
        %v3944 = vadd.f32 %v3686, %v3884
        %v3945 = vadd.f32 %v3687, %v3887
        %v3946 = vadd.f32 %v3688, %v3892
        %v3947 = vadd.f32 %v3689, %v3895
        %v3948 = vadd.f32 %v3690, %v3900
        %v3949 = vadd.f32 %v3691, %v3903
        %v3950 = vadd.f32 %v3692, %v3908
        %v3951 = vadd.f32 %v3693, %v3911
        %v3952 = vadd.f32 %v3694, %v3916
        %v3953 = vadd.f32 %v3695, %v3919
        %v3954 = vld [vmem:[%s3197 + $0x8] sm:$0xff]
        %v3955 = vld [vmem:[%s3197 + $0x10] sm:$0x1]
        %v3956 = vld [vmem:[%s3197 + $0x20] sm:$0xff]
        %v3957 = vld [vmem:[%s3197 + $0x28] sm:$0x1]
        %v3958 = vld [vmem:[%s3197 + $0x38] sm:$0xff]
        %v3959 = vld [vmem:[%s3197 + $0x40] sm:$0x1]
        %v3960 = vld [vmem:[%s3197 + $0x50] sm:$0xff]
        %v3961 = vld [vmem:[%s3197 + $0x58] sm:$0x1]
        %v3962 = vld [vmem:[%s3197 + $0x68] sm:$0xff]
        %v3963 = vld [vmem:[%s3197 + $0x70] sm:$0x1]
        %v3964 = vld [vmem:[%s3197 + $0x80] sm:$0xff]
        %v3965 = vld [vmem:[%s3197 + $0x88] sm:$0x1]
        %v3966 = vld [vmem:[%s3197 + $0x98] sm:$0xff]
        %v3967 = vld [vmem:[%s3197 + $0xa0] sm:$0x1]
        %v3968 = vld [vmem:[%s3197 + $0xb0] sm:$0xff]
        %v3969 = vld [vmem:[%s3197 + $0xb8] sm:$0x1]
        %v3970 = vld [vmem:[%s3197 + $0xc8] sm:$0xff]
        %v3971 = vld [vmem:[%s3197 + $0xd0] sm:$0x1]
        %v3972 = vld [vmem:[%s3197 + $0xe0] sm:$0xff]
        %v3973 = vld [vmem:[%s3197 + $0xe8] sm:$0x1]
        %v3974 = vld [vmem:[%s3197 + $0xf8] sm:$0xff]
        %v3975 = vld [vmem:[%s3197 + $0x100] sm:$0x1]
        %v3976 = vld [vmem:[%s3197 + $0x110] sm:$0xff]
        %v3977 = vld [vmem:[%s3197 + $0x118] sm:$0x1]
        %v3978 = vld [vmem:[%s3197 + $0x128] sm:$0xff]
        %v3979 = vld [vmem:[%s3197 + $0x130] sm:$0x1]
        %v3980 = vld [vmem:[%s3197 + $0x140] sm:$0xff]
        %v3981 = vld [vmem:[%s3197 + $0x148] sm:$0x1]
        %v3982 = vld [vmem:[%s3197 + $0x158] sm:$0xff]
        %v3983 = vld [vmem:[%s3197 + $0x160] sm:$0x1]
        %v3984 = vld [vmem:[%s3197 + $0x170] sm:$0xff]
        %v3985 = vld [vmem:[%s3197 + $0x178] sm:$0x1]
        %v3987 = vshrl.u32 %v3954, 16
        %v3989 = vshll.u32 %v3954, 16
        %v3991 = vrot.slane %v3989, 1
        %v3992 = vor.u32 %v3987, %v3991
        %v3994 = vshll.u32 %v3955, 16
        %v3996 = vrot.slane %v3994, 1
        %v3997 = vsel %vm1476, %v3992, %v3996
        %v3999 = vshrl.u32 %v3956, 16
        %v4001 = vshll.u32 %v3956, 16
        %v4003 = vrot.slane %v4001, 1
        %v4004 = vor.u32 %v3999, %v4003
        %v4006 = vshll.u32 %v3957, 16
        %v4008 = vrot.slane %v4006, 1
        %v4009 = vsel %vm1476, %v4004, %v4008
        %v4011 = vshrl.u32 %v3958, 16
        %v4013 = vshll.u32 %v3958, 16
        %v4015 = vrot.slane %v4013, 1
        %v4016 = vor.u32 %v4011, %v4015
        %v4018 = vshll.u32 %v3959, 16
        %v4020 = vrot.slane %v4018, 1
        %v4021 = vsel %vm1476, %v4016, %v4020
        %v4023 = vshrl.u32 %v3960, 16
        %v4025 = vshll.u32 %v3960, 16
        %v4027 = vrot.slane %v4025, 1
        %v4028 = vor.u32 %v4023, %v4027
        %v4030 = vshll.u32 %v3961, 16
        %v4032 = vrot.slane %v4030, 1
        %v4033 = vsel %vm1476, %v4028, %v4032
        %v4035 = vshrl.u32 %v3962, 16
        %v4037 = vshll.u32 %v3962, 16
        %v4039 = vrot.slane %v4037, 1
        %v4040 = vor.u32 %v4035, %v4039
        %v4042 = vshll.u32 %v3963, 16
        %v4044 = vrot.slane %v4042, 1
        %v4045 = vsel %vm1476, %v4040, %v4044
        %v4047 = vshrl.u32 %v3964, 16
        %v4049 = vshll.u32 %v3964, 16
        %v4051 = vrot.slane %v4049, 1
        %v4052 = vor.u32 %v4047, %v4051
        %v4054 = vshll.u32 %v3965, 16
        %v4056 = vrot.slane %v4054, 1
        %v4057 = vsel %vm1476, %v4052, %v4056
        %v4059 = vshrl.u32 %v3966, 16
        %v4061 = vshll.u32 %v3966, 16
        %v4063 = vrot.slane %v4061, 1
        %v4064 = vor.u32 %v4059, %v4063
        %v4066 = vshll.u32 %v3967, 16
        %v4068 = vrot.slane %v4066, 1
        %v4069 = vsel %vm1476, %v4064, %v4068
        %v4071 = vshrl.u32 %v3968, 16
        %v4073 = vshll.u32 %v3968, 16
        %v4075 = vrot.slane %v4073, 1
        %v4076 = vor.u32 %v4071, %v4075
        %v4078 = vshll.u32 %v3969, 16
        %v4080 = vrot.slane %v4078, 1
        %v4081 = vsel %vm1476, %v4076, %v4080
        %v4083 = vshrl.u32 %v3970, 16
        %v4085 = vshll.u32 %v3970, 16
        %v4087 = vrot.slane %v4085, 1
        %v4088 = vor.u32 %v4083, %v4087
        %v4090 = vshll.u32 %v3971, 16
        %v4092 = vrot.slane %v4090, 1
        %v4093 = vsel %vm1476, %v4088, %v4092
        %v4095 = vshrl.u32 %v3972, 16
        %v4097 = vshll.u32 %v3972, 16
        %v4099 = vrot.slane %v4097, 1
        %v4100 = vor.u32 %v4095, %v4099
        %v4102 = vshll.u32 %v3973, 16
        %v4104 = vrot.slane %v4102, 1
        %v4105 = vsel %vm1476, %v4100, %v4104
        %v4107 = vshrl.u32 %v3974, 16
        %v4109 = vshll.u32 %v3974, 16
        %v4111 = vrot.slane %v4109, 1
        %v4112 = vor.u32 %v4107, %v4111
        %v4114 = vshll.u32 %v3975, 16
        %v4116 = vrot.slane %v4114, 1
        %v4117 = vsel %vm1476, %v4112, %v4116
        %v4119 = vshrl.u32 %v3976, 16
        %v4121 = vshll.u32 %v3976, 16
        %v4123 = vrot.slane %v4121, 1
        %v4124 = vor.u32 %v4119, %v4123
        %v4126 = vshll.u32 %v3977, 16
        %v4128 = vrot.slane %v4126, 1
        %v4129 = vsel %vm1476, %v4124, %v4128
        %v4131 = vshrl.u32 %v3978, 16
        %v4133 = vshll.u32 %v3978, 16
        %v4135 = vrot.slane %v4133, 1
        %v4136 = vor.u32 %v4131, %v4135
        %v4138 = vshll.u32 %v3979, 16
        %v4140 = vrot.slane %v4138, 1
        %v4141 = vsel %vm1476, %v4136, %v4140
        %v4143 = vshrl.u32 %v3980, 16
        %v4145 = vshll.u32 %v3980, 16
        %v4147 = vrot.slane %v4145, 1
        %v4148 = vor.u32 %v4143, %v4147
        %v4150 = vshll.u32 %v3981, 16
        %v4152 = vrot.slane %v4150, 1
        %v4153 = vsel %vm1476, %v4148, %v4152
        %v4155 = vshrl.u32 %v3982, 16
        %v4157 = vshll.u32 %v3982, 16
        %v4159 = vrot.slane %v4157, 1
        %v4160 = vor.u32 %v4155, %v4159
        %v4162 = vshll.u32 %v3983, 16
        %v4164 = vrot.slane %v4162, 1
        %v4165 = vsel %vm1476, %v4160, %v4164
        %v4167 = vshrl.u32 %v3984, 16
        %v4169 = vshll.u32 %v3984, 16
        %v4171 = vrot.slane %v4169, 1
        %v4172 = vor.u32 %v4167, %v4171
        %v4174 = vshll.u32 %v3985, 16
        %v4176 = vrot.slane %v4174, 1
        %v4177 = vsel %vm1476, %v4172, %v4176
        %s4178 = scalar_lea.vmem %s3, 256
        %v4179 = vld [vmem:[%s4178] sm:$0xf]
        %v4180 = vld [vmem:[%s4178 + $0x4] sm:$0xf]
        %v4181 = vld [vmem:[%s4178 + $0x8] sm:$0xf]
        %v4182 = vld [vmem:[%s4178 + $0xc] sm:$0xf]
        %v4183 = vld [vmem:[%s4178 + $0x10] sm:$0xf]
        %v4184 = vld [vmem:[%s4178 + $0x14] sm:$0xf]
        %v4185 = vld [vmem:[%s4178 + $0x18] sm:$0xf]
        %v4186 = vld [vmem:[%s4178 + $0x1c] sm:$0xf]
        %v4195 = vunpack.c.l.b16 %v4179
        %v4196 = vunpack.c.l.b16 %v4180
        %v4197 = vunpack.c.l.b16 %v4181
        %v4198 = vunpack.c.l.b16 %v4182
        %v4199 = vunpack.c.l.b16 %v4183
        %v4200 = vunpack.c.l.b16 %v4184
        %v4201 = vunpack.c.l.b16 %v4185
        %v4202 = vunpack.c.l.b16 %v4186
        %v4203 = vpack.c.b16 %v4196, %v4195
        %v4204 = vpack.c.b16 %v4198, %v4197
        %v4205 = vpack.c.b16 %v4200, %v4199
        %v4206 = vpack.c.b16 %v4202, %v4201
        %v4212 = vsel %vm679, %v3997, 0
        %v4215 = vsel %vm679, %v4009, 0
        %v4218 = vsel %vm679, %v4021, 0
        %v4221 = vsel %vm679, %v4033, 0
        %v4224 = vsel %vm679, %v4045, 0
        %v4227 = vsel %vm679, %v4057, 0
        %v4230 = vsel %vm679, %v4069, 0
        %v4233 = vsel %vm679, %v4081, 0
        %v4236 = vsel %vm679, %v4093, 0
        %v4239 = vsel %vm679, %v4105, 0
        %v4242 = vsel %vm679, %v4117, 0
        %v4245 = vsel %vm679, %v4129, 0
        %v4248 = vsel %vm679, %v4141, 0
        %v4251 = vsel %vm679, %v4153, 0
        %v4254 = vsel %vm679, %v4165, 0
        %v4257 = vsel %vm679, %v4177, 0
        %4259 = vmatprep.subr.bf16.mxu0 0
        %4260 = vmatpush1.bf16.msra.mxu0 %v4203
        %4261 = vmatprep.subr.bf16.mxu0 0
        %4262 = vmatpush1.bf16.msra.mxu0 %v4204
        %4263 = vmatprep.subr.bf16.mxu0 0
        %4264 = vmatpush1.bf16.msra.mxu0 %v4205
        %4265 = vmatprep.subr.bf16.mxu0 0
        %4266 = vmatpush1.bf16.msra.mxu0 %v4206
        %4267 = vmatprep.subr.bf16.mxu0 0
        %4268 = vmatpush1.bf16.msra.mxu0 0
        %4269 = vmatprep.subr.bf16.mxu0 0
        %4270 = vmatpush1.bf16.msra.mxu0 0
        %4271 = vmatprep.subr.bf16.mxu0 0
        %4272 = vmatpush1.bf16.msra.mxu0 0
        %4273 = vmatprep.subr.bf16.mxu0 0
        %4274 = vmatpush1.bf16.msra.mxu0 0
        %4275 = vmatprep.subr.bf16.mxu0 0
        %4276 = vmatpush1.bf16.msra.mxu0 0
        %4277 = vmatprep.subr.bf16.mxu0 0
        %4278 = vmatpush1.bf16.msra.mxu0 0
        %4279 = vmatprep.subr.bf16.mxu0 0
        %4280 = vmatpush1.bf16.msra.mxu0 0
        %4281 = vmatprep.subr.bf16.mxu0 0
        %4282 = vmatpush1.bf16.msra.mxu0 0
        %4283 = vmatprep.subr.bf16.mxu0 0
        %4284 = vmatpush1.bf16.msra.mxu0 0
        %4285 = vmatprep.subr.bf16.mxu0 0
        %4286 = vmatpush1.bf16.msra.mxu0 0
        %4287 = vmatprep.subr.bf16.mxu0 0
        %4288 = vmatpush1.bf16.msra.mxu0 0
        %4289 = vmatprep.subr.bf16.mxu0 0
        %4290 = vmatpush1.bf16.msra.mxu0 0
        %4291 = vmatprep.mubr.bf16.mxu0 0
        %4292 = vmatmul.mubr.bf16.gmra.mrb[0].mxu0 %v4212
        %v4293 = vpop.f32.mrb[0].mxu0
        %v4294 = vadd.f32 0.0, %v4293
        %v4295 = vpop.f32.mrb[0].mxu0
        %v4296 = vpop.f32.mrb[0].mxu0
        %v4297 = vadd.f32 0.0, %v4296
        %v4298 = vpop.f32.mrb[0].mxu0
        %4299 = vmatprep.mubr.bf16.mxu0 0
        %4300 = vmatmul.mubr.bf16.gmra.mrb[0].mxu0 %v4215
        %v4301 = vpop.f32.mrb[0].mxu0
        %v4302 = vadd.f32 0.0, %v4301
        %v4303 = vpop.f32.mrb[0].mxu0
        %v4304 = vpop.f32.mrb[0].mxu0
        %v4305 = vadd.f32 0.0, %v4304
        %v4306 = vpop.f32.mrb[0].mxu0
        %4307 = vmatprep.mubr.bf16.mxu0 0
        %4308 = vmatmul.mubr.bf16.gmra.mrb[0].mxu0 %v4218
        %v4309 = vpop.f32.mrb[0].mxu0
        %v4310 = vadd.f32 0.0, %v4309
        %v4311 = vpop.f32.mrb[0].mxu0
        %v4312 = vpop.f32.mrb[0].mxu0
        %v4313 = vadd.f32 0.0, %v4312
        %v4314 = vpop.f32.mrb[0].mxu0
        %4315 = vmatprep.mubr.bf16.mxu0 0
        %4316 = vmatmul.mubr.bf16.gmra.mrb[0].mxu0 %v4221
        %v4317 = vpop.f32.mrb[0].mxu0
        %v4318 = vadd.f32 0.0, %v4317
        %v4319 = vpop.f32.mrb[0].mxu0
        %v4320 = vpop.f32.mrb[0].mxu0
        %v4321 = vadd.f32 0.0, %v4320
        %v4322 = vpop.f32.mrb[0].mxu0
        %4323 = vmatprep.mubr.bf16.mxu0 0
        %4324 = vmatmul.mubr.bf16.gmra.mrb[0].mxu0 %v4224
        %v4325 = vpop.f32.mrb[0].mxu0
        %v4326 = vadd.f32 0.0, %v4325
        %v4327 = vpop.f32.mrb[0].mxu0
        %v4328 = vpop.f32.mrb[0].mxu0
        %v4329 = vadd.f32 0.0, %v4328
        %v4330 = vpop.f32.mrb[0].mxu0
        %4331 = vmatprep.mubr.bf16.mxu0 0
        %4332 = vmatmul.mubr.bf16.gmra.mrb[0].mxu0 %v4227
        %v4333 = vpop.f32.mrb[0].mxu0
        %v4334 = vadd.f32 0.0, %v4333
        %v4335 = vpop.f32.mrb[0].mxu0
        %v4336 = vpop.f32.mrb[0].mxu0
        %v4337 = vadd.f32 0.0, %v4336
        %v4338 = vpop.f32.mrb[0].mxu0
        %4339 = vmatprep.mubr.bf16.mxu0 0
        %4340 = vmatmul.mubr.bf16.gmra.mrb[0].mxu0 %v4230
        %v4341 = vpop.f32.mrb[0].mxu0
        %v4342 = vadd.f32 0.0, %v4341
        %v4343 = vpop.f32.mrb[0].mxu0
        %v4344 = vpop.f32.mrb[0].mxu0
        %v4345 = vadd.f32 0.0, %v4344
        %v4346 = vpop.f32.mrb[0].mxu0
        %4347 = vmatprep.mubr.bf16.mxu0 0
        %4348 = vmatmul.mubr.bf16.gmra.mrb[0].mxu0 %v4233
        %v4349 = vpop.f32.mrb[0].mxu0
        %v4350 = vadd.f32 0.0, %v4349
        %v4351 = vpop.f32.mrb[0].mxu0
        %v4352 = vpop.f32.mrb[0].mxu0
        %v4353 = vadd.f32 0.0, %v4352
        %v4354 = vpop.f32.mrb[0].mxu0
        %4355 = vmatprep.mubr.bf16.mxu0 0
        %4356 = vmatmul.mubr.bf16.gmra.mrb[0].mxu0 %v4236
        %v4357 = vpop.f32.mrb[0].mxu0
        %v4358 = vadd.f32 0.0, %v4357
        %v4359 = vpop.f32.mrb[0].mxu0
        %v4360 = vpop.f32.mrb[0].mxu0
        %v4361 = vadd.f32 0.0, %v4360
        %v4362 = vpop.f32.mrb[0].mxu0
        %4363 = vmatprep.mubr.bf16.mxu0 0
        %4364 = vmatmul.mubr.bf16.gmra.mrb[0].mxu0 %v4239
        %v4365 = vpop.f32.mrb[0].mxu0
        %v4366 = vadd.f32 0.0, %v4365
        %v4367 = vpop.f32.mrb[0].mxu0
        %v4368 = vpop.f32.mrb[0].mxu0
        %v4369 = vadd.f32 0.0, %v4368
        %v4370 = vpop.f32.mrb[0].mxu0
        %4371 = vmatprep.mubr.bf16.mxu0 0
        %4372 = vmatmul.mubr.bf16.gmra.mrb[0].mxu0 %v4242
        %v4373 = vpop.f32.mrb[0].mxu0
        %v4374 = vadd.f32 0.0, %v4373
        %v4375 = vpop.f32.mrb[0].mxu0
        %v4376 = vpop.f32.mrb[0].mxu0
        %v4377 = vadd.f32 0.0, %v4376
        %v4378 = vpop.f32.mrb[0].mxu0
        %4379 = vmatprep.mubr.bf16.mxu0 0
        %4380 = vmatmul.mubr.bf16.gmra.mrb[0].mxu0 %v4245
        %v4381 = vpop.f32.mrb[0].mxu0
        %v4382 = vadd.f32 0.0, %v4381
        %v4383 = vpop.f32.mrb[0].mxu0
        %v4384 = vpop.f32.mrb[0].mxu0
        %v4385 = vadd.f32 0.0, %v4384
        %v4386 = vpop.f32.mrb[0].mxu0
        %4387 = vmatprep.mubr.bf16.mxu0 0
        %4388 = vmatmul.mubr.bf16.gmra.mrb[0].mxu0 %v4248
        %v4389 = vpop.f32.mrb[0].mxu0
        %v4390 = vadd.f32 0.0, %v4389
        %v4391 = vpop.f32.mrb[0].mxu0
        %v4392 = vpop.f32.mrb[0].mxu0
        %v4393 = vadd.f32 0.0, %v4392
        %v4394 = vpop.f32.mrb[0].mxu0
        %4395 = vmatprep.mubr.bf16.mxu0 0
        %4396 = vmatmul.mubr.bf16.gmra.mrb[0].mxu0 %v4251
        %v4397 = vpop.f32.mrb[0].mxu0
        %v4398 = vadd.f32 0.0, %v4397
        %v4399 = vpop.f32.mrb[0].mxu0
        %v4400 = vpop.f32.mrb[0].mxu0
        %v4401 = vadd.f32 0.0, %v4400
        %v4402 = vpop.f32.mrb[0].mxu0
        %4403 = vmatprep.mubr.bf16.mxu0 0
        %4404 = vmatmul.mubr.bf16.gmra.mrb[0].mxu0 %v4254
        %v4405 = vpop.f32.mrb[0].mxu0
        %v4406 = vadd.f32 0.0, %v4405
        %v4407 = vpop.f32.mrb[0].mxu0
        %v4408 = vpop.f32.mrb[0].mxu0
        %v4409 = vadd.f32 0.0, %v4408
        %v4410 = vpop.f32.mrb[0].mxu0
        %4411 = vmatprep.mubr.bf16.mxu0 0
        %4412 = vmatmul.mubr.bf16.gmra.mrb[0].mxu0 %v4257
        %v4413 = vpop.f32.mrb[0].mxu0
        %v4414 = vadd.f32 0.0, %v4413
        %v4415 = vpop.f32.mrb[0].mxu0
        %v4416 = vpop.f32.mrb[0].mxu0
        %v4417 = vadd.f32 0.0, %v4416
        %v4418 = vpop.f32.mrb[0].mxu0
        %4419 = vdwg.mxu0
        %v4420 = vadd.f32 %v3922, %v4294
        %v4421 = vadd.f32 %v3923, %v4297
        %v4422 = vadd.f32 %v3924, %v4302
        %v4423 = vadd.f32 %v3925, %v4305
        %v4424 = vadd.f32 %v3926, %v4310
        %v4425 = vadd.f32 %v3927, %v4313
        %v4426 = vadd.f32 %v3928, %v4318
        %v4427 = vadd.f32 %v3929, %v4321
        %v4428 = vadd.f32 %v3930, %v4326
        %v4429 = vadd.f32 %v3931, %v4329
        %v4430 = vadd.f32 %v3932, %v4334
        %v4431 = vadd.f32 %v3933, %v4337
        %v4432 = vadd.f32 %v3934, %v4342
        %v4433 = vadd.f32 %v3935, %v4345
        %v4434 = vadd.f32 %v3936, %v4350
        %v4435 = vadd.f32 %v3937, %v4353
        %v4436 = vadd.f32 %v3938, %v4358
        %v4437 = vadd.f32 %v3939, %v4361
        %v4438 = vadd.f32 %v3940, %v4366
        %v4439 = vadd.f32 %v3941, %v4369
        %v4440 = vadd.f32 %v3942, %v4374
        %v4441 = vadd.f32 %v3943, %v4377
        %v4442 = vadd.f32 %v3944, %v4382
        %v4443 = vadd.f32 %v3945, %v4385
        %v4444 = vadd.f32 %v3946, %v4390
        %v4445 = vadd.f32 %v3947, %v4393
        %v4446 = vadd.f32 %v3948, %v4398
        %v4447 = vadd.f32 %v3949, %v4401
        %v4448 = vadd.f32 %v3950, %v4406
        %v4449 = vadd.f32 %v3951, %v4409
        %v4450 = vadd.f32 %v3952, %v4414
        %v4451 = vadd.f32 %v3953, %v4417
        %v4452 = vld [vmem:[%s4] sm:$0x1]
        %v4454 = vlaneseq
        %v4455 = vshrl.u32 %v4454, 7
        %v4456 = vsub.s32 0, %v4455
        %v4457 = vrot.slane %v4452, %v4456
        %v4459 = vadd.f32 %v4420, %v4457
        %v4460 = vadd.f32 %v4421, %v4457
        %v4461 = vadd.f32 %v4422, %v4457
        %v4462 = vadd.f32 %v4423, %v4457
        %v4463 = vadd.f32 %v4424, %v4457
        %v4464 = vadd.f32 %v4425, %v4457
        %v4465 = vadd.f32 %v4426, %v4457
        %v4466 = vadd.f32 %v4427, %v4457
        %v4467 = vadd.f32 %v4428, %v4457
        %v4468 = vadd.f32 %v4429, %v4457
        %v4469 = vadd.f32 %v4430, %v4457
        %v4470 = vadd.f32 %v4431, %v4457
        %v4471 = vadd.f32 %v4432, %v4457
        %v4472 = vadd.f32 %v4433, %v4457
        %v4473 = vadd.f32 %v4434, %v4457
        %v4474 = vadd.f32 %v4435, %v4457
        %v4475 = vadd.f32 %v4436, %v4457
        %v4476 = vadd.f32 %v4437, %v4457
        %v4477 = vadd.f32 %v4438, %v4457
        %v4478 = vadd.f32 %v4439, %v4457
        %v4479 = vadd.f32 %v4440, %v4457
        %v4480 = vadd.f32 %v4441, %v4457
        %v4481 = vadd.f32 %v4442, %v4457
        %v4482 = vadd.f32 %v4443, %v4457
        %v4483 = vadd.f32 %v4444, %v4457
        %v4484 = vadd.f32 %v4445, %v4457
        %v4485 = vadd.f32 %v4446, %v4457
        %v4486 = vadd.f32 %v4447, %v4457
        %v4487 = vadd.f32 %v4448, %v4457
        %v4488 = vadd.f32 %v4449, %v4457
        %v4489 = vadd.f32 %v4450, %v4457
        %v4490 = vadd.f32 %v4451, %v4457
        %v4491 = vmax.f32 %v4459, 0.0
        %v4492 = vmax.f32 %v4460, 0.0
        %v4493 = vmax.f32 %v4461, 0.0
        %v4494 = vmax.f32 %v4462, 0.0
        %v4495 = vmax.f32 %v4463, 0.0
        %v4496 = vmax.f32 %v4464, 0.0
        %v4497 = vmax.f32 %v4465, 0.0
        %v4498 = vmax.f32 %v4466, 0.0
        %v4499 = vmax.f32 %v4467, 0.0
        %v4500 = vmax.f32 %v4468, 0.0
        %v4501 = vmax.f32 %v4469, 0.0
        %v4502 = vmax.f32 %v4470, 0.0
        %v4503 = vmax.f32 %v4471, 0.0
        %v4504 = vmax.f32 %v4472, 0.0
        %v4505 = vmax.f32 %v4473, 0.0
        %v4506 = vmax.f32 %v4474, 0.0
        %v4507 = vmax.f32 %v4475, 0.0
        %v4508 = vmax.f32 %v4476, 0.0
        %v4509 = vmax.f32 %v4477, 0.0
        %v4510 = vmax.f32 %v4478, 0.0
        %v4511 = vmax.f32 %v4479, 0.0
        %v4512 = vmax.f32 %v4480, 0.0
        %v4513 = vmax.f32 %v4481, 0.0
        %v4514 = vmax.f32 %v4482, 0.0
        %v4515 = vmax.f32 %v4483, 0.0
        %v4516 = vmax.f32 %v4484, 0.0
        %v4517 = vmax.f32 %v4485, 0.0
        %v4518 = vmax.f32 %v4486, 0.0
        %v4519 = vmax.f32 %v4487, 0.0
        %v4520 = vmax.f32 %v4488, 0.0
        %v4521 = vmax.f32 %v4489, 0.0
        %v4522 = vmax.f32 %v4490, 0.0
        %v4523 = vadd.f32 %v4491, %v4492
        %v4524 = vadd.f32 %v4523, %v4493
        %v4525 = vadd.f32 %v4524, %v4494
        %v4526 = vadd.f32 %v4525, %v4495
        %v4527 = vadd.f32 %v4526, %v4496
        %v4528 = vadd.f32 %v4527, %v4497
        %v4529 = vadd.f32 %v4528, %v4498
        %v4530 = vadd.f32 %v4529, %v4499
        %v4531 = vadd.f32 %v4530, %v4500
        %v4532 = vadd.f32 %v4531, %v4501
        %v4533 = vadd.f32 %v4532, %v4502
        %v4534 = vadd.f32 %v4533, %v4503
        %v4535 = vadd.f32 %v4534, %v4504
        %v4536 = vadd.f32 %v4535, %v4505
        %v4537 = vadd.f32 %v4536, %v4506
        %v4538 = vadd.f32 %v4537, %v4507
        %v4539 = vadd.f32 %v4538, %v4508
        %v4540 = vadd.f32 %v4539, %v4509
        %v4541 = vadd.f32 %v4540, %v4510
        %v4542 = vadd.f32 %v4541, %v4511
        %v4543 = vadd.f32 %v4542, %v4512
        %v4544 = vadd.f32 %v4543, %v4513
        %v4545 = vadd.f32 %v4544, %v4514
        %v4546 = vadd.f32 %v4545, %v4515
        %v4547 = vadd.f32 %v4546, %v4516
        %v4548 = vadd.f32 %v4547, %v4517
        %v4549 = vadd.f32 %v4548, %v4518
        %v4550 = vadd.f32 %v4549, %v4519
        %v4551 = vadd.f32 %v4550, %v4520
        %v4552 = vadd.f32 %v4551, %v4521
        %v4553 = vadd.f32 %v4552, %v4522
        %v4554 = vrot.slane %v4553, 4
        %v4555 = vadd.f32 %v4553, %v4554
        %v4556 = vrot.slane %v4555, 2
        %v4557 = vadd.f32 %v4555, %v4556
        %v4558 = vrot.slane %v4557, 1
        %v4559 = vadd.f32 %v4557, %v4558
        %v4560 = vmul.f32 %v4559, 0.00390625
        %v4561 = vld [vmem:[#allocation3] sm:$0xff]
        %v4562 = vld [vmem:[#allocation3 + $0x8] sm:$0xff]
        %v4563 = vld [vmem:[#allocation3 + $0x10] sm:$0xff]
        %v4564 = vld [vmem:[#allocation3 + $0x18] sm:$0xff]
        %v4565 = vld [vmem:[#allocation3 + $0x20] sm:$0xff]
        %v4566 = vld [vmem:[#allocation3 + $0x28] sm:$0xff]
        %v4567 = vld [vmem:[#allocation3 + $0x30] sm:$0xff]
        %v4568 = vld [vmem:[#allocation3 + $0x38] sm:$0xff]
        %v4569 = vld [vmem:[#allocation3 + $0x40] sm:$0xff]
        %v4570 = vld [vmem:[#allocation3 + $0x48] sm:$0xff]
        %v4571 = vld [vmem:[#allocation3 + $0x50] sm:$0xff]
        %v4572 = vld [vmem:[#allocation3 + $0x58] sm:$0xff]
        %v4573 = vld [vmem:[#allocation3 + $0x60] sm:$0xff]
        %v4574 = vld [vmem:[#allocation3 + $0x68] sm:$0xff]
        %v4575 = vld [vmem:[#allocation3 + $0x70] sm:$0xff]
        %v4576 = vld [vmem:[#allocation3 + $0x78] sm:$0xff]
        %v4577 = vld [vmem:[%s6] sm:$0x1]
        %4578 = vmatprep.subr.mxu0 0.0
        %4579 = vmatpush1.msra.mxu0 %v4561
        %4580 = vmatprep.subr.mxu0 0.0
        %4581 = vmatpush1.msra.mxu0 %v4562
        %4582 = vmatprep.subr.mxu0 0.0
        %4583 = vmatpush1.msra.mxu0 %v4563
        %4584 = vmatprep.subr.mxu0 0.0
        %4585 = vmatpush1.msra.mxu0 %v4564
        %4586 = vmatprep.subr.mxu0 0.0
        %4587 = vmatpush1.msra.mxu0 %v4565
        %4588 = vmatprep.subr.mxu0 0.0
        %4589 = vmatpush1.msra.mxu0 %v4566
        %4590 = vmatprep.subr.mxu0 0.0
        %4591 = vmatpush1.msra.mxu0 %v4567
        %4592 = vmatprep.subr.mxu0 0.0
        %4593 = vmatpush1.msra.mxu0 %v4568
        %4594 = vmatprep.subr.mxu0 0.0
        %4595 = vmatpush1.msra.mxu0 %v4569
        %4596 = vmatprep.subr.mxu0 0.0
        %4597 = vmatpush1.msra.mxu0 %v4570
        %4598 = vmatprep.subr.mxu0 0.0
        %4599 = vmatpush1.msra.mxu0 %v4571
        %4600 = vmatprep.subr.mxu0 0.0
        %4601 = vmatpush1.msra.mxu0 %v4572
        %4602 = vmatprep.subr.mxu0 0.0
        %4603 = vmatpush1.msra.mxu0 %v4573
        %4604 = vmatprep.subr.mxu0 0.0
        %4605 = vmatpush1.msra.mxu0 %v4574
        %4606 = vmatprep.subr.mxu0 0.0
        %4607 = vmatpush1.msra.mxu0 %v4575
        %4608 = vmatprep.subr.mxu0 0.0
        %4609 = vmatpush1.msra.mxu0 %v4576
        %4610 = vmatprep.subr.mxu0 0.0
        %4611 = vmatpush1.msra.mxu0 0.0
        %4612 = vmatprep.subr.mxu0 0.0
        %4613 = vmatpush1.msra.mxu0 0.0
        %4614 = vmatprep.subr.mxu0 0.0
        %4615 = vmatpush1.msra.mxu0 0.0
        %4616 = vmatprep.subr.mxu0 0.0
        %4617 = vmatpush1.msra.mxu0 0.0
        %4618 = vmatprep.subr.mxu0 0.0
        %4619 = vmatpush1.msra.mxu0 0.0
        %4620 = vmatprep.subr.mxu0 0.0
        %4621 = vmatpush1.msra.mxu0 0.0
        %4622 = vmatprep.subr.mxu0 0.0
        %4623 = vmatpush1.msra.mxu0 0.0
        %4624 = vmatprep.subr.mxu0 0.0
        %4625 = vmatpush1.msra.mxu0 0.0
        %4626 = vmatprep.subr.mxu0 0.0
        %4627 = vmatpush1.msra.mxu0 0.0
        %4628 = vmatprep.subr.mxu0 0.0
        %4629 = vmatpush1.msra.mxu0 0.0
        %4630 = vmatprep.subr.mxu0 0.0
        %4631 = vmatpush1.msra.mxu0 0.0
        %4632 = vmatprep.subr.mxu0 0.0
        %4633 = vmatpush1.msra.mxu0 0.0
        %4634 = vmatprep.subr.mxu0 0.0
        %4635 = vmatpush1.msra.mxu0 0.0
        %4636 = vmatprep.subr.mxu0 0.0
        %4637 = vmatpush1.msra.mxu0 0.0
        %4638 = vmatprep.subr.mxu0 0.0
        %4639 = vmatpush1.msra.mxu0 0.0
        %4640 = vmatprep.subr.mxu0 0.0
        %4641 = vmatpush1.msra.mxu0 0.0
        %4642 = vmatprep.mubr.f32.mxu0 0.0
        %4643 = vmatmul.mubr.f32.gmra.mrb[0].mxu0 %v4560
        %v4644 = vpop.f32.mrb[0].mxu0
        %v4645 = vadd.f32 %v4577, %v4644
        %v4646 = vpop.f32.mrb[0].mxu0
        %4647 = vdwg.mxu0
        %4648 = vst [vmem:[%s286] sm:$0x1] %v4645
        %s4649 = sand.u32 %s182, 1
        %s4650 = scalar_lea.sflag [#allocation5], %s4649
        %s4651 = sand.u32 %s182, 1
        %s4652 = scalar_lea.vmem [#allocation6], %s4651
        // Predicated region
        $region53: #{tpu_custom_call.1} parent=47 // pred_check
          %p4653 = pneg %p192
        $region54: #{tpu_custom_call.1} parent=47 // pred_check_branch
          %4655 = sbr.rel (%p4653) target = $region56
        $region55: #{tpu_custom_call.1} parent=47 // pred_region
          %s4657 = ssub.s32 16, 16
          %4658 = vsyncadd %s4650, %s4657
          %s4659 = smul.addr %s22, 16
          %s4660 = scalar_lea.hbm %s7, %s4659
          %s4662 = sshll.u32 %s4652, 4
          %s4663 = int_to_ptr.vmem [resolvable:$true] %s4662
          %4665 = dma.vmem_to_hbm [thread:$0]  %s4663, 16, %s4660, %s4650
        $region56: #{tpu_custom_call.1} parent=47 // pred_fallthru
          _
      $region48: #{tpu_custom_call.1} parent=5 // pred_fallthru
        _
      %p4666 = scmp.le.s32.totalorder 2, %s17
      // Predicated region
      $region57: #{tpu_custom_call.1} parent=5 // pred_check
        %p4667 = pneg %p4666
      $region58: #{tpu_custom_call.1} parent=5 // pred_check_branch
        %4669 = sbr.rel (%p4667) target = $region60
      $region59: #{tpu_custom_call.1} parent=5 // pred_region
        %s4670 = ssub.s32 %s17, 2
        // Predicated region
        $region61: #{tpu_custom_call.1} parent=59 // pred_check
          %p4671 = pneg %p198
        $region62: #{tpu_custom_call.1} parent=59 // pred_check_branch
          %4673 = sbr.rel (%p4671) target = $region64
        $region63: #{tpu_custom_call.1} parent=59 // pred_region
          %s4674 = sand.u32 %s183, 1
          %s4675 = scalar_lea.sflag [#allocation5], %s4674
          %s4676 = sand.u32 %s183, 1
          %s4677 = scalar_lea.vmem [#allocation6], %s4676
          %4678 = dma.done %s4675, 16
        $region64: #{tpu_custom_call.1} parent=59 // pred_fallthru
          _
      $region60: #{tpu_custom_call.1} parent=5 // pred_fallthru
        _
    $region6: #{tpu_custom_call.1} parent=1 // loop_footer
      %s21 = sadd.s32 1, %s17
    $region7: #{tpu_custom_call.1} parent=1 // loop_footer_branch
      %16 = sbr.rel target = $region3
    $region8: #{tpu_custom_call.1} parent=1 // loop_exit
      _
    %4679 = vsyncpa [#allocation4], 1
    %s4680 = scalar_lea.sflag [#allocation4], 1
    %4681 = vsyncpa %s4680, 1
    %4682 = vsyncpa [#allocation5], 1
    %s4683 = scalar_lea.sflag [#allocation5], 1
    %4684 = vsyncpa %s4683, 1

</llo_original>
